<compile_context>
chip_gen: v7x
topology: tpu7x:2x2x1
jax: 0.10.0
libtpu: 0.0.40
codegen_flags: <defaults>
</compile_context>

<pallas_src>
import jax
import jax.numpy as jnp
from jax.experimental import pallas as pl
from jax.experimental.pallas import tpu as pltpu


_LAYER_DIMS = [1024, 512, 256, 128, 64, 1]   # nn.Linear out_features chain
_LANE = 128                                  # TPU lane width


def _round_up(x, m):
    return ((x + m - 1) // m) * m


# --------------------------- fused kernel ----------------------------------


def _fused_mlp_kernel(x_ref,
                      w1, b1, w2, b2, w3, b3, w4, b4, w5, b5, w6, b6,
                      o_ref):
    """Six Linear(+ReLU) layers in one pass; activations stay in vregs/VMEM."""

    def layer(h, w_ref, b_ref, relu):
        # Feed the MXU in the weight dtype (bf16 in production), accumulate f32.
        y = jnp.dot(h.astype(w_ref.dtype), w_ref[...],
                    preferred_element_type=jnp.float32)
        y = y + b_ref[...]
        if relu:
            y = jnp.maximum(y, 0.0)
        return y

    h = x_ref[...]                         # (tm, 128) padded input features
    h = layer(h, w1, b1, True)
    h = layer(h, w2, b2, True)
    h = layer(h, w3, b3, True)
    h = layer(h, w4, b4, True)
    h = layer(h, w5, b5, True)             # 64 real cols + 64 zero-padded
    y = layer(h, w6, b6, False)            # (tm, 128) f32; lane 0 = real output

    # Lane-dense store: transpose (vxpose on the XLU, which has slack) and keep
    # only row 0 -> batch lies along lanes in a (1, tm) output block.
    o_ref[...] = y.T[0:1, :].astype(o_ref.dtype)


# --------------------------- parameters ------------------------------------


def init_mlp_params(input_dim, key):
    """PyTorch nn.Linear layout & init: W is (out, in), b is (out,)."""
    params = []
    fan_in = input_dim
    for out_dim in _LAYER_DIMS:
        key, kw, kb = jax.random.split(key, 3)
        bound = 1.0 / (fan_in ** 0.5)
        w = jax.random.uniform(kw, (out_dim, fan_in), jnp.float32, -bound, bound)
        b = jax.random.uniform(kb, (out_dim,), jnp.float32, -bound, bound)
        params.append((w, b))
        fan_in = out_dim
    return params


def prepare_fused_params(params, param_dtype=jnp.bfloat16):
    """One-time layout pass (hoisted out of the forward hot path):
    transpose W to (in, out), zero-pad both dims to multiples of 128,
    reshape bias to (1, N_pad) f32, cast weights to `param_dtype`
    (bf16 default: ~2-4x MXU rate and half the weight VMEM on every
    TPU generation; use f32 only for tight correctness checks)."""
    fused = []
    for w, b in params:
        wt = jnp.asarray(w, jnp.float32).T                 # (in, out)
        bias = jnp.asarray(b, jnp.float32).reshape(1, -1)  # (1, out)
        k, n = wt.shape
        k_pad = _round_up(k, _LANE)
        n_pad = _round_up(n, _LANE)
        wt = jnp.pad(wt, ((0, k_pad - k), (0, n_pad - n)))
        bias = jnp.pad(bias, ((0, 0), (0, n_pad - n)))
        fused.append((wt.astype(param_dtype), bias))
    return fused


# --------------------------- forward ----------------------------------------


def _pick_tm(M):
    """Batch tile: multiple of 128 (lane-dense output block), up to 512 rows,
    and >=2 grid steps when the batch allows it so v7x's two TensorCores can
    split the 'parallel' axis."""
    m_ceil = _round_up(max(M, 1), _LANE)
    if m_ceil <= _LANE:
        return _LANE
    return min(512, _round_up(pl.cdiv(m_ceil, 2), _LANE))


def mlp_forward(x, fused_params, *, tm=None):
    """Equivalent of MLPModel.forward: Sequential(Linear+ReLU ... Linear).squeeze(1)."""
    M, K = x.shape
    if tm is None:
        tm = _pick_tm(M)
    tm = _round_up(tm, _LANE)
    m_pad = _round_up(M, tm)
    k_pad = fused_params[0][0].shape[0]        # padded input-feature dim (128)

    # One small, lane-aligning pad of the input (rows -> m_pad, cols -> k_pad).
    x_pad = jnp.pad(x, ((0, m_pad - M), (0, k_pad - K)))

    grid = (m_pad // tm,)

    in_specs = [pl.BlockSpec((tm, k_pad), lambda i: (i, 0))]   # batch tile of x
    flat_args = [x_pad]
    for w, b in fused_params:
        # Constant index_map => VMEM-resident; Buffered(1) drops the useless
        # second pipeline buffer.
        in_specs.append(pl.BlockSpec(w.shape, lambda i: (0, 0),
                                     pipeline_mode=pl.Buffered(1)))
        in_specs.append(pl.BlockSpec(b.shape, lambda i: (0, 0),
                                     pipeline_mode=pl.Buffered(1)))
        flat_args.extend([w, b])

    out = pl.pallas_call(
        _fused_mlp_kernel,
        out_shape=jax.ShapeDtypeStruct((1, m_pad), jnp.float32),  # batch on lanes
        grid=grid,
        in_specs=in_specs,
        out_specs=pl.BlockSpec((1, tm), lambda i: (0, i)),
        compiler_params=pltpu.CompilerParams(
            dimension_semantics=("parallel",),
            vmem_limit_bytes=32 * 1024 * 1024),
    )(*flat_args)
    return out[0, :M]                       # .squeeze(1)


def mlp_forward_ref(x, params):
    """Pure-JAX reference (PyTorch-layout params) for correctness checking."""
    h = x
    for li, (w, b) in enumerate(params):
        h = h @ w.T + b
        if li < len(params) - 1:
            h = jnp.maximum(h, 0.0)
    return h[:, 0]


# TODO(synk): cal_loss (nn.MSELoss) is a training-time loss, not part of the
# forward pass, so it is intentionally not implemented as a kernel.


if __name__ == "__main__":
    key = jax.random.PRNGKey(0)
    key, kx1, kx2 = jax.random.split(key, 3)

    input_dim = 32
    params = init_mlp_params(input_dim, key)

    fused_f32 = prepare_fused_params(params, param_dtype=jnp.float32)
    fused_bf16 = prepare_fused_params(params, param_dtype=jnp.bfloat16)

    # Small batch (single tile), f32 weights: tight check vs PyTorch-equivalent ref.
    x1 = jax.random.normal(kx1, (8, input_dim), jnp.float32)
    ref1 = mlp_forward_ref(x1, params)
    out1 = jax.block_until_ready(mlp_forward(x1, fused_f32))
    assert out1.shape == (8,), out1.shape
    assert jnp.allclose(out1, ref1, atol=1e-4, rtol=1e-4), (out1, ref1)

    # Ragged batch spanning two grid steps (exercises row padding + the
    # "parallel" megacore split on v7x).
    x2 = jax.random.normal(kx2, (300, input_dim), jnp.float32)
    ref2 = mlp_forward_ref(x2, params)
    out2 = jax.block_until_ready(mlp_forward(x2, fused_f32))
    assert out2.shape == (300,), out2.shape
    assert jnp.allclose(out2, ref2, atol=1e-4, rtol=1e-4), (out2, ref2)

    # Production path: bf16 weights (faster MXU + half weight VMEM on every
    # generation), f32 accumulation: loose check.
    out_bf16 = jax.block_until_ready(mlp_forward(x1, fused_bf16))
    assert out_bf16.shape == (8,), out_bf16.shape
    assert jnp.allclose(out_bf16, ref1, atol=1e-1, rtol=1e-1), (out_bf16, ref1)

    print("KERNEL_OK")
</pallas_src>

<mosaic_0001>
module attributes {stable_mosaic.version = 11 : i64} {
  func.func @_fused_mlp_kernel(%arg0: i32, %arg1: memref<128x128xf32, #tpu.memory_space<vmem>>, %arg2: memref<128x1024xf32, #tpu.memory_space<vmem>>, %arg3: memref<1x1024xf32, #tpu.memory_space<vmem>>, %arg4: memref<1024x512xf32, #tpu.memory_space<vmem>>, %arg5: memref<1x512xf32, #tpu.memory_space<vmem>>, %arg6: memref<512x256xf32, #tpu.memory_space<vmem>>, %arg7: memref<1x256xf32, #tpu.memory_space<vmem>>, %arg8: memref<256x128xf32, #tpu.memory_space<vmem>>, %arg9: memref<1x128xf32, #tpu.memory_space<vmem>>, %arg10: memref<128x128xf32, #tpu.memory_space<vmem>>, %arg11: memref<1x128xf32, #tpu.memory_space<vmem>>, %arg12: memref<128x128xf32, #tpu.memory_space<vmem>>, %arg13: memref<1x128xf32, #tpu.memory_space<vmem>>, %arg14: memref<1x128xf32, #tpu.memory_space<vmem>>) attributes {dimension_semantics = [#tpu.dimension_semantics<parallel>], iteration_bounds = array<i64: 1>, scalar_prefetch = 0 : i64, scratch_operands = 0 : i64, tpu.core_type = #tpu.core_type<tc>, window_params = [{transform_indices = @transform_0, window_bounds = array<i64: 128, 128>}, {pipeline_mode = #tpu.pipeline_mode<synchronous>, transform_indices = @transform_1, window_bounds = array<i64: 128, 1024>}, {pipeline_mode = #tpu.pipeline_mode<synchronous>, transform_indices = @transform_2, window_bounds = array<i64: 1, 1024>}, {pipeline_mode = #tpu.pipeline_mode<synchronous>, transform_indices = @transform_3, window_bounds = array<i64: 1024, 512>}, {pipeline_mode = #tpu.pipeline_mode<synchronous>, transform_indices = @transform_4, window_bounds = array<i64: 1, 512>}, {pipeline_mode = #tpu.pipeline_mode<synchronous>, transform_indices = @transform_5, window_bounds = array<i64: 512, 256>}, {pipeline_mode = #tpu.pipeline_mode<synchronous>, transform_indices = @transform_6, window_bounds = array<i64: 1, 256>}, {pipeline_mode = #tpu.pipeline_mode<synchronous>, transform_indices = @transform_7, window_bounds = array<i64: 256, 128>}, {pipeline_mode = #tpu.pipeline_mode<synchronous>, transform_indices = @transform_8, window_bounds = array<i64: 1, 128>}, {pipeline_mode = #tpu.pipeline_mode<synchronous>, transform_indices = @transform_9, window_bounds = array<i64: 128, 128>}, {pipeline_mode = #tpu.pipeline_mode<synchronous>, transform_indices = @transform_10, window_bounds = array<i64: 1, 128>}, {pipeline_mode = #tpu.pipeline_mode<synchronous>, transform_indices = @transform_11, window_bounds = array<i64: 128, 128>}, {pipeline_mode = #tpu.pipeline_mode<synchronous>, transform_indices = @transform_12, window_bounds = array<i64: 1, 128>}, {transform_indices = @transform_13, window_bounds = array<i64: 1, 128>}]} {
    %c0 = arith.constant 0 : index
    %c0_0 = arith.constant 0 : index
    %0 = vector.load %arg1[%c0, %c0_0] : memref<128x128xf32, #tpu.memory_space<vmem>>, vector<128x128xf32>
    %c0_1 = arith.constant 0 : index
    %c0_2 = arith.constant 0 : index
    %1 = vector.load %arg2[%c0_1, %c0_2] : memref<128x1024xf32, #tpu.memory_space<vmem>>, vector<128x1024xf32>
    %cst = arith.constant dense<0.000000e+00> : vector<128x1024xf32>
    %2 = tpu.matmul %0, %1, %cst {dimension_numbers = #tpu.dot_dimension_numbers<[1], [0], [0], [1], [0, 0, 1, 1], [], []>} : vector<128x128xf32>, vector<128x1024xf32>, vector<128x1024xf32> -> vector<128x1024xf32>
    %c0_3 = arith.constant 0 : index
    %c0_4 = arith.constant 0 : index
    %3 = vector.load %arg3[%c0_3, %c0_4] : memref<1x1024xf32, #tpu.memory_space<vmem>>, vector<1x1024xf32>
    %4 = vector.broadcast %3 : vector<1x1024xf32> to vector<128x1024xf32>
    %5 = arith.addf %2, %4 : vector<128x1024xf32>
    %cst_5 = arith.constant 0.000000e+00 : f32
    %6 = vector.broadcast %cst_5 : f32 to vector<128x1024xf32>
    %7 = arith.maximumf %5, %6 : vector<128x1024xf32>
    %c0_6 = arith.constant 0 : index
    %c0_7 = arith.constant 0 : index
    %8 = vector.load %arg4[%c0_6, %c0_7] : memref<1024x512xf32, #tpu.memory_space<vmem>>, vector<1024x512xf32>
    %cst_8 = arith.constant dense<0.000000e+00> : vector<128x512xf32>
    %9 = tpu.matmul %7, %8, %cst_8 {dimension_numbers = #tpu.dot_dimension_numbers<[1], [0], [0], [1], [0, 0, 1, 1], [], []>} : vector<128x1024xf32>, vector<1024x512xf32>, vector<128x512xf32> -> vector<128x512xf32>
    %c0_9 = arith.constant 0 : index
    %c0_10 = arith.constant 0 : index
    %10 = vector.load %arg5[%c0_9, %c0_10] : memref<1x512xf32, #tpu.memory_space<vmem>>, vector<1x512xf32>
    %11 = vector.broadcast %10 : vector<1x512xf32> to vector<128x512xf32>
    %12 = arith.addf %9, %11 : vector<128x512xf32>
    %cst_11 = arith.constant 0.000000e+00 : f32
    %13 = vector.broadcast %cst_11 : f32 to vector<128x512xf32>
    %14 = arith.maximumf %12, %13 : vector<128x512xf32>
    %c0_12 = arith.constant 0 : index
    %c0_13 = arith.constant 0 : index
    %15 = vector.load %arg6[%c0_12, %c0_13] : memref<512x256xf32, #tpu.memory_space<vmem>>, vector<512x256xf32>
    %cst_14 = arith.constant dense<0.000000e+00> : vector<128x256xf32>
    %16 = tpu.matmul %14, %15, %cst_14 {dimension_numbers = #tpu.dot_dimension_numbers<[1], [0], [0], [1], [0, 0, 1, 1], [], []>} : vector<128x512xf32>, vector<512x256xf32>, vector<128x256xf32> -> vector<128x256xf32>
    %c0_15 = arith.constant 0 : index
    %c0_16 = arith.constant 0 : index
    %17 = vector.load %arg7[%c0_15, %c0_16] : memref<1x256xf32, #tpu.memory_space<vmem>>, vector<1x256xf32>
    %18 = vector.broadcast %17 : vector<1x256xf32> to vector<128x256xf32>
    %19 = arith.addf %16, %18 : vector<128x256xf32>
    %cst_17 = arith.constant 0.000000e+00 : f32
    %20 = vector.broadcast %cst_17 : f32 to vector<128x256xf32>
    %21 = arith.maximumf %19, %20 : vector<128x256xf32>
    %c0_18 = arith.constant 0 : index
    %c0_19 = arith.constant 0 : index
    %22 = vector.load %arg8[%c0_18, %c0_19] : memref<256x128xf32, #tpu.memory_space<vmem>>, vector<256x128xf32>
    %cst_20 = arith.constant dense<0.000000e+00> : vector<128x128xf32>
    %23 = tpu.matmul %21, %22, %cst_20 {dimension_numbers = #tpu.dot_dimension_numbers<[1], [0], [0], [1], [0, 0, 1, 1], [], []>} : vector<128x256xf32>, vector<256x128xf32>, vector<128x128xf32> -> vector<128x128xf32>
    %c0_21 = arith.constant 0 : index
    %c0_22 = arith.constant 0 : index
    %24 = vector.load %arg9[%c0_21, %c0_22] : memref<1x128xf32, #tpu.memory_space<vmem>>, vector<1x128xf32>
    %25 = vector.broadcast %24 : vector<1x128xf32> to vector<128x128xf32>
    %26 = arith.addf %23, %25 : vector<128x128xf32>
    %cst_23 = arith.constant 0.000000e+00 : f32
    %27 = vector.broadcast %cst_23 : f32 to vector<128x128xf32>
    %28 = arith.maximumf %26, %27 : vector<128x128xf32>
    %c0_24 = arith.constant 0 : index
    %c0_25 = arith.constant 0 : index
    %29 = vector.load %arg10[%c0_24, %c0_25] : memref<128x128xf32, #tpu.memory_space<vmem>>, vector<128x128xf32>
    %cst_26 = arith.constant dense<0.000000e+00> : vector<128x128xf32>
    %30 = tpu.matmul %28, %29, %cst_26 {dimension_numbers = #tpu.dot_dimension_numbers<[1], [0], [0], [1], [0, 0, 1, 1], [], []>} : vector<128x128xf32>, vector<128x128xf32>, vector<128x128xf32> -> vector<128x128xf32>
    %c0_27 = arith.constant 0 : index
    %c0_28 = arith.constant 0 : index
    %31 = vector.load %arg11[%c0_27, %c0_28] : memref<1x128xf32, #tpu.memory_space<vmem>>, vector<1x128xf32>
    %32 = vector.broadcast %31 : vector<1x128xf32> to vector<128x128xf32>
    %33 = arith.addf %30, %32 : vector<128x128xf32>
    %cst_29 = arith.constant 0.000000e+00 : f32
    %34 = vector.broadcast %cst_29 : f32 to vector<128x128xf32>
    %35 = arith.maximumf %33, %34 : vector<128x128xf32>
    %c0_30 = arith.constant 0 : index
    %c0_31 = arith.constant 0 : index
    %36 = vector.load %arg12[%c0_30, %c0_31] : memref<128x128xf32, #tpu.memory_space<vmem>>, vector<128x128xf32>
    %cst_32 = arith.constant dense<0.000000e+00> : vector<128x128xf32>
    %37 = tpu.matmul %35, %36, %cst_32 {dimension_numbers = #tpu.dot_dimension_numbers<[1], [0], [0], [1], [0, 0, 1, 1], [], []>} : vector<128x128xf32>, vector<128x128xf32>, vector<128x128xf32> -> vector<128x128xf32>
    %c0_33 = arith.constant 0 : index
    %c0_34 = arith.constant 0 : index
    %38 = vector.load %arg13[%c0_33, %c0_34] : memref<1x128xf32, #tpu.memory_space<vmem>>, vector<1x128xf32>
    %39 = vector.broadcast %38 : vector<1x128xf32> to vector<128x128xf32>
    %40 = arith.addf %37, %39 : vector<128x128xf32>
    %41 = tpu.transpose %40, [1, 0] : vector<128x128xf32> -> vector<128x128xf32>
    %42 = vector.extract_strided_slice %41 {offsets = [0, 0], sizes = [1, 128], strides = [1, 1]} : vector<128x128xf32> to vector<1x128xf32>
    %c0_35 = arith.constant 0 : index
    %c0_36 = arith.constant 0 : index
    %43 = vector.load %arg14[%c0_35, %c0_36] : memref<1x128xf32, #tpu.memory_space<vmem>>, vector<1x128xf32>
    tpu.vector_store %arg14[%c0_35, %c0_36], %42 {strides = array<i32>} : memref<1x128xf32, #tpu.memory_space<vmem>>, vector<1x128xf32>,
    return
  }
  func.func @transform_0(%arg0: i32) -> (i32, i32) {
    %c0_i32 = arith.constant 0 : i32
    %c0_i32_0 = arith.constant 0 : i32
    return %arg0, %c0_i32 : i32, i32
  }
  func.func @transform_1(%arg0: i32) -> (i32, i32) {
    %c0_i32 = arith.constant 0 : i32
    %c0_i32_0 = arith.constant 0 : i32
    %c0_i32_1 = arith.constant 0 : i32
    return %c0_i32, %c0_i32_0 : i32, i32
  }
  func.func @transform_2(%arg0: i32) -> (i32, i32) {
    %c0_i32 = arith.constant 0 : i32
    %c0_i32_0 = arith.constant 0 : i32
    %c0_i32_1 = arith.constant 0 : i32
    return %c0_i32, %c0_i32_0 : i32, i32
  }
  func.func @transform_3(%arg0: i32) -> (i32, i32) {
    %c0_i32 = arith.constant 0 : i32
    %c0_i32_0 = arith.constant 0 : i32
    %c0_i32_1 = arith.constant 0 : i32
    return %c0_i32, %c0_i32_0 : i32, i32
  }
  func.func @transform_4(%arg0: i32) -> (i32, i32) {
    %c0_i32 = arith.constant 0 : i32
    %c0_i32_0 = arith.constant 0 : i32
    %c0_i32_1 = arith.constant 0 : i32
    return %c0_i32, %c0_i32_0 : i32, i32
  }
  func.func @transform_5(%arg0: i32) -> (i32, i32) {
    %c0_i32 = arith.constant 0 : i32
    %c0_i32_0 = arith.constant 0 : i32
    %c0_i32_1 = arith.constant 0 : i32
    return %c0_i32, %c0_i32_0 : i32, i32
  }
  func.func @transform_6(%arg0: i32) -> (i32, i32) {
    %c0_i32 = arith.constant 0 : i32
    %c0_i32_0 = arith.constant 0 : i32
    %c0_i32_1 = arith.constant 0 : i32
    return %c0_i32, %c0_i32_0 : i32, i32
  }
  func.func @transform_7(%arg0: i32) -> (i32, i32) {
    %c0_i32 = arith.constant 0 : i32
    %c0_i32_0 = arith.constant 0 : i32
    %c0_i32_1 = arith.constant 0 : i32
    return %c0_i32, %c0_i32_0 : i32, i32
  }
  func.func @transform_8(%arg0: i32) -> (i32, i32) {
    %c0_i32 = arith.constant 0 : i32
    %c0_i32_0 = arith.constant 0 : i32
    %c0_i32_1 = arith.constant 0 : i32
    return %c0_i32, %c0_i32_0 : i32, i32
  }
  func.func @transform_9(%arg0: i32) -> (i32, i32) {
    %c0_i32 = arith.constant 0 : i32
    %c0_i32_0 = arith.constant 0 : i32
    %c0_i32_1 = arith.constant 0 : i32
    return %c0_i32, %c0_i32_0 : i32, i32
  }
  func.func @transform_10(%arg0: i32) -> (i32, i32) {
    %c0_i32 = arith.constant 0 : i32
    %c0_i32_0 = arith.constant 0 : i32
    %c0_i32_1 = arith.constant 0 : i32
    return %c0_i32, %c0_i32_0 : i32, i32
  }
  func.func @transform_11(%arg0: i32) -> (i32, i32) {
    %c0_i32 = arith.constant 0 : i32
    %c0_i32_0 = arith.constant 0 : i32
    %c0_i32_1 = arith.constant 0 : i32
    return %c0_i32, %c0_i32_0 : i32, i32
  }
  func.func @transform_12(%arg0: i32) -> (i32, i32) {
    %c0_i32 = arith.constant 0 : i32
    %c0_i32_0 = arith.constant 0 : i32
    %c0_i32_1 = arith.constant 0 : i32
    return %c0_i32, %c0_i32_0 : i32, i32
  }
  func.func @transform_13(%arg0: i32) -> (i32, i32) {
    %c0_i32 = arith.constant 0 : i32
    %c0_i32_0 = arith.constant 0 : i32
    return %c0_i32, %arg0 : i32, i32
  }
}

</mosaic_0001>

<llo_original>
// kernel: tpu_custom_call.1
$region0: #{tpu_custom_call.1}
  #allocation0 [shape = 'u32[]', space=smem, size = 0x4, offset = 0x4, fixed_abs, tag = 'smem constant byte address 0x4 - core index']
  #allocation1 [shape = 'u32[144,128]{1,0:T(1,128)}', space=vmem, size = 0x12000, scoped, tag = 'internal scratch']
  %s0 = inlined_call_operand.hbm [shape: f32[128,128], index: 0, kind: input, shape index: {}]
  %s1 = inlined_call_operand.hbm [shape: f32[128,1024], index: 1, kind: input, shape index: {}]
  %s2 = inlined_call_operand.hbm [shape: f32[1,1024], index: 2, kind: input, shape index: {}]
  %s3 = inlined_call_operand.hbm [shape: f32[1024,512], index: 3, kind: input, shape index: {}]
  %s4 = inlined_call_operand.hbm [shape: f32[1,512], index: 4, kind: input, shape index: {}]
  %s5 = inlined_call_operand.hbm [shape: f32[512,256], index: 5, kind: input, shape index: {}]
  %s6 = inlined_call_operand.hbm [shape: f32[1,256], index: 6, kind: input, shape index: {}]
  %s7 = inlined_call_operand.hbm [shape: f32[256,128], index: 7, kind: input, shape index: {}]
  %s8 = inlined_call_operand.hbm [shape: f32[1,128], index: 8, kind: input, shape index: {}]
  %s9 = inlined_call_operand.hbm [shape: f32[128,128], index: 9, kind: input, shape index: {}]
  %s10 = inlined_call_operand.hbm [shape: f32[1,128], index: 10, kind: input, shape index: {}]
  %s11 = inlined_call_operand.hbm [shape: f32[128,128], index: 11, kind: input, shape index: {}]
  %s12 = inlined_call_operand.hbm [shape: f32[1,128], index: 12, kind: input, shape index: {}]
  %s13 = inlined_call_operand.hbm [shape: f32[1,128], index: 13, kind: output, shape index: {}]
  %s14 = sld [smem:[#allocation0]]
  $region114: #{tpu_custom_call.1} parent=0
    _
  %s16 = ssub.s32 1, %s14
  %s17 = scalar_select 0, %s16, %s14
  $region1: #{tpu_custom_call.1} parent=0
    #allocation2 [shape = 'u8[65536]{0}', space=vmem, size = 0x10000, scoped, tag = 'input window, operand 0, single buffered']
    #allocation3 [shape = 's32[1]{0}', space=sflag, size = 0x4, scoped, tag = 'scoped memory for tpu_custom_call.1']
    #allocation4 [shape = 's32[1]{0}', space=sflag, size = 0x4, scoped, tag = 'scoped memory for tpu_custom_call.1']
    #allocation5 [shape = 'u8[524288]{0}', space=vmem, size = 0x80000, scoped, tag = 'input window, operand 1, single buffered']
    #allocation6 [shape = 's32[1]{0}', space=sflag, size = 0x4, scoped, tag = 'scoped memory for tpu_custom_call.1']
    #allocation7 [shape = 'u8[4096]{0}', space=vmem, size = 0x1000, scoped, tag = 'input window, operand 2, single buffered']
    #allocation8 [shape = 'u8[2097152]{0}', space=vmem, size = 0x200000, scoped, tag = 'input window, operand 3, single buffered']
    #allocation9 [shape = 's32[1]{0}', space=sflag, size = 0x4, scoped, tag = 'scoped memory for tpu_custom_call.1']
    #allocation10 [shape = 'u8[2048]{0}', space=vmem, size = 0x800, scoped, tag = 'input window, operand 4, single buffered']
    #allocation11 [shape = 'u8[524288]{0}', space=vmem, size = 0x80000, scoped, tag = 'input window, operand 5, single buffered']
    #allocation12 [shape = 's32[1]{0}', space=sflag, size = 0x4, scoped, tag = 'scoped memory for tpu_custom_call.1']
    #allocation13 [shape = 'u8[1024]{0}', space=vmem, size = 0x400, scoped, tag = 'input window, operand 6, single buffered']
    #allocation14 [shape = 'u8[131072]{0}', space=vmem, size = 0x20000, scoped, tag = 'input window, operand 7, single buffered']
    #allocation15 [shape = 's32[1]{0}', space=sflag, size = 0x4, scoped, tag = 'scoped memory for tpu_custom_call.1']
    #allocation16 [shape = 'u8[512]{0}', space=vmem, size = 0x400, scoped, tag = 'input window, operand 8, single buffered']
    #allocation17 [shape = 'u8[65536]{0}', space=vmem, size = 0x10000, scoped, tag = 'input window, operand 9, single buffered']
    #allocation18 [shape = 's32[1]{0}', space=sflag, size = 0x4, scoped, tag = 'scoped memory for tpu_custom_call.1']
    #allocation19 [shape = 'u8[512]{0}', space=vmem, size = 0x400, scoped, tag = 'input window, operand 10, single buffered']
    #allocation20 [shape = 'u8[65536]{0}', space=vmem, size = 0x10000, scoped, tag = 'input window, operand 11, single buffered']
    #allocation21 [shape = 's32[1]{0}', space=sflag, size = 0x4, scoped, tag = 'scoped memory for tpu_custom_call.1']
    #allocation22 [shape = 'u8[512]{0}', space=vmem, size = 0x400, scoped, tag = 'input window, operand 12, single buffered']
    #allocation23 [shape = 'u8[512]{0}', space=vmem, size = 0x400, scoped, tag = 'output window, operand 0, single buffered']
    %18 = vsyncpa [#allocation3], 0
    %19 = vsyncpa [#allocation6], 0
    %20 = vsyncpa [#allocation9], 0
    %21 = vsyncpa [#allocation12], 0
    %22 = vsyncpa [#allocation15], 0
    %23 = vsyncpa [#allocation18], 0
    %24 = vsyncpa [#allocation21], 0
    %25 = vsyncpa [#allocation4], 0
    // Predicated region
    $region2: #{tpu_custom_call.1} parent=1 // pred_check
      _
    $region3: #{tpu_custom_call.1} parent=1 // pred_check_branch
      %27 = sbr.rel (0) target = $region5
    $region4: #{tpu_custom_call.1} parent=1 // pred_region
      %s29 = ssub.s32 2048, 2048
      %30 = vsyncadd [#allocation3], %s29
      %s31 = sshll.u32 [#allocation2], 4
      %s32 = int_to_ptr.vmem [resolvable:$true] %s31
      %37 = dma.hbm_to_vmem [thread:$0]  %s0, 2048, %s32, [#allocation3], 128, 128, 8
    $region5: #{tpu_custom_call.1} parent=1 // pred_fallthru
      _
    // Predicated region
    $region6: #{tpu_custom_call.1} parent=1 // pred_check
      _
    $region7: #{tpu_custom_call.1} parent=1 // pred_check_branch
      %39 = sbr.rel (0) target = $region9
    $region8: #{tpu_custom_call.1} parent=1 // pred_region
      %s41 = ssub.s32 16384, 16384
      %42 = vsyncadd [#allocation6], %s41
      %s43 = sshll.u32 [#allocation5], 4
      %s44 = int_to_ptr.vmem [resolvable:$true] %s43
      %49 = dma.hbm_to_vmem [thread:$0]  %s1, 16384, %s44, [#allocation6], 1024, 1024, 64
    $region9: #{tpu_custom_call.1} parent=1 // pred_fallthru
      _
    // Predicated region
    $region10: #{tpu_custom_call.1} parent=1 // pred_check
      _
    $region11: #{tpu_custom_call.1} parent=1 // pred_check_branch
      %51 = sbr.rel (0) target = $region13
    $region12: #{tpu_custom_call.1} parent=1 // pred_region
      %s53 = ssub.s32 128, 128
      %54 = vsyncadd [#allocation6], %s53
      %s56 = sshll.u32 [#allocation7], 4
      %s57 = int_to_ptr.vmem [resolvable:$true] %s56
      %59 = dma.hbm_to_vmem [thread:$0]  %s2, 128, %s57, [#allocation6]
    $region13: #{tpu_custom_call.1} parent=1 // pred_fallthru
      _
    // Predicated region
    $region14: #{tpu_custom_call.1} parent=1 // pred_check
      _
    $region15: #{tpu_custom_call.1} parent=1 // pred_check_branch
      %61 = sbr.rel (0) target = $region17
    $region16: #{tpu_custom_call.1} parent=1 // pred_region
      %s63 = ssub.s32 65536, 65536
      %64 = vsyncadd [#allocation9], %s63
      %s65 = sshll.u32 [#allocation8], 4
      %s66 = int_to_ptr.vmem [resolvable:$true] %s65
      %71 = dma.hbm_to_vmem [thread:$0]  %s3, 65536, %s66, [#allocation9], 512, 512, 32
    $region17: #{tpu_custom_call.1} parent=1 // pred_fallthru
      _
    // Predicated region
    $region18: #{tpu_custom_call.1} parent=1 // pred_check
      _
    $region19: #{tpu_custom_call.1} parent=1 // pred_check_branch
      %73 = sbr.rel (0) target = $region21
    $region20: #{tpu_custom_call.1} parent=1 // pred_region
      %s75 = ssub.s32 64, 64
      %76 = vsyncadd [#allocation9], %s75
      %s78 = sshll.u32 [#allocation10], 4
      %s79 = int_to_ptr.vmem [resolvable:$true] %s78
      %81 = dma.hbm_to_vmem [thread:$0]  %s4, 64, %s79, [#allocation9]
    $region21: #{tpu_custom_call.1} parent=1 // pred_fallthru
      _
    // Predicated region
    $region22: #{tpu_custom_call.1} parent=1 // pred_check
      _
    $region23: #{tpu_custom_call.1} parent=1 // pred_check_branch
      %83 = sbr.rel (0) target = $region25
    $region24: #{tpu_custom_call.1} parent=1 // pred_region
      %s85 = ssub.s32 16384, 16384
      %86 = vsyncadd [#allocation12], %s85
      %s87 = sshll.u32 [#allocation11], 4
      %s88 = int_to_ptr.vmem [resolvable:$true] %s87
      %93 = dma.hbm_to_vmem [thread:$0]  %s5, 16384, %s88, [#allocation12], 256, 256, 16
    $region25: #{tpu_custom_call.1} parent=1 // pred_fallthru
      _
    // Predicated region
    $region26: #{tpu_custom_call.1} parent=1 // pred_check
      _
    $region27: #{tpu_custom_call.1} parent=1 // pred_check_branch
      %95 = sbr.rel (0) target = $region29
    $region28: #{tpu_custom_call.1} parent=1 // pred_region
      %s97 = ssub.s32 32, 32
      %98 = vsyncadd [#allocation12], %s97
      %s100 = sshll.u32 [#allocation13], 4
      %s101 = int_to_ptr.vmem [resolvable:$true] %s100
      %103 = dma.hbm_to_vmem [thread:$0]  %s6, 32, %s101, [#allocation12]
    $region29: #{tpu_custom_call.1} parent=1 // pred_fallthru
      _
    // Predicated region
    $region30: #{tpu_custom_call.1} parent=1 // pred_check
      _
    $region31: #{tpu_custom_call.1} parent=1 // pred_check_branch
      %105 = sbr.rel (0) target = $region33
    $region32: #{tpu_custom_call.1} parent=1 // pred_region
      %s107 = ssub.s32 4096, 4096
      %108 = vsyncadd [#allocation15], %s107
      %s109 = sshll.u32 [#allocation14], 4
      %s110 = int_to_ptr.vmem [resolvable:$true] %s109
      %115 = dma.hbm_to_vmem [thread:$0]  %s7, 4096, %s110, [#allocation15], 128, 128, 8
    $region33: #{tpu_custom_call.1} parent=1 // pred_fallthru
      _
    // Predicated region
    $region34: #{tpu_custom_call.1} parent=1 // pred_check
      _
    $region35: #{tpu_custom_call.1} parent=1 // pred_check_branch
      %117 = sbr.rel (0) target = $region37
    $region36: #{tpu_custom_call.1} parent=1 // pred_region
      %s119 = ssub.s32 16, 16
      %120 = vsyncadd [#allocation15], %s119
      %s122 = sshll.u32 [#allocation16], 4
      %s123 = int_to_ptr.vmem [resolvable:$true] %s122
      %125 = dma.hbm_to_vmem [thread:$0]  %s8, 16, %s123, [#allocation15]
    $region37: #{tpu_custom_call.1} parent=1 // pred_fallthru
      _
    // Predicated region
    $region38: #{tpu_custom_call.1} parent=1 // pred_check
      _
    $region39: #{tpu_custom_call.1} parent=1 // pred_check_branch
      %127 = sbr.rel (0) target = $region41
    $region40: #{tpu_custom_call.1} parent=1 // pred_region
      %s129 = ssub.s32 2048, 2048
      %130 = vsyncadd [#allocation18], %s129
      %s131 = sshll.u32 [#allocation17], 4
      %s132 = int_to_ptr.vmem [resolvable:$true] %s131
      %137 = dma.hbm_to_vmem [thread:$0]  %s9, 2048, %s132, [#allocation18], 128, 128, 8
    $region41: #{tpu_custom_call.1} parent=1 // pred_fallthru
      _
    // Predicated region
    $region42: #{tpu_custom_call.1} parent=1 // pred_check
      _
    $region43: #{tpu_custom_call.1} parent=1 // pred_check_branch
      %139 = sbr.rel (0) target = $region45
    $region44: #{tpu_custom_call.1} parent=1 // pred_region
      %s141 = ssub.s32 16, 16
      %142 = vsyncadd [#allocation18], %s141
      %s144 = sshll.u32 [#allocation19], 4
      %s145 = int_to_ptr.vmem [resolvable:$true] %s144
      %147 = dma.hbm_to_vmem [thread:$0]  %s10, 16, %s145, [#allocation18]
    $region45: #{tpu_custom_call.1} parent=1 // pred_fallthru
      _
    // Predicated region
    $region46: #{tpu_custom_call.1} parent=1 // pred_check
      _
    $region47: #{tpu_custom_call.1} parent=1 // pred_check_branch
      %149 = sbr.rel (0) target = $region49
    $region48: #{tpu_custom_call.1} parent=1 // pred_region
      %s151 = ssub.s32 2048, 2048
      %152 = vsyncadd [#allocation21], %s151
      %s153 = sshll.u32 [#allocation20], 4
      %s154 = int_to_ptr.vmem [resolvable:$true] %s153
      %159 = dma.hbm_to_vmem [thread:$0]  %s11, 2048, %s154, [#allocation21], 128, 128, 8
    $region49: #{tpu_custom_call.1} parent=1 // pred_fallthru
      _
    // Predicated region
    $region50: #{tpu_custom_call.1} parent=1 // pred_check
      _
    $region51: #{tpu_custom_call.1} parent=1 // pred_check_branch
      %161 = sbr.rel (0) target = $region53
    $region52: #{tpu_custom_call.1} parent=1 // pred_region
      %s163 = ssub.s32 16, 16
      %164 = vsyncadd [#allocation21], %s163
      %s166 = sshll.u32 [#allocation22], 4
      %s167 = int_to_ptr.vmem [resolvable:$true] %s166
      %169 = dma.hbm_to_vmem [thread:$0]  %s12, 16, %s167, [#allocation21]
    $region53: #{tpu_custom_call.1} parent=1 // pred_fallthru
      _
    // Predicated region
    $region54: #{tpu_custom_call.1} parent=1 // pred_check
      _
    $region55: #{tpu_custom_call.1} parent=1 // pred_check_branch
      %171 = sbr.rel (0) target = $region57
    $region56: #{tpu_custom_call.1} parent=1 // pred_region
      %172 = dma.done [#allocation3], 2048
    $region57: #{tpu_custom_call.1} parent=1 // pred_fallthru
      _
    // Predicated region
    $region58: #{tpu_custom_call.1} parent=1 // pred_check
      _
    $region59: #{tpu_custom_call.1} parent=1 // pred_check_branch
      %174 = sbr.rel (0) target = $region61
    $region60: #{tpu_custom_call.1} parent=1 // pred_region
      %175 = dma.done [#allocation6], 16384
    $region61: #{tpu_custom_call.1} parent=1 // pred_fallthru
      _
    // Predicated region
    $region62: #{tpu_custom_call.1} parent=1 // pred_check
      _
    $region63: #{tpu_custom_call.1} parent=1 // pred_check_branch
      %177 = sbr.rel (0) target = $region65
    $region64: #{tpu_custom_call.1} parent=1 // pred_region
      %178 = dma.done [#allocation6], 128
    $region65: #{tpu_custom_call.1} parent=1 // pred_fallthru
      _
    // Predicated region
    $region66: #{tpu_custom_call.1} parent=1 // pred_check
      _
    $region67: #{tpu_custom_call.1} parent=1 // pred_check_branch
      %180 = sbr.rel (0) target = $region69
    $region68: #{tpu_custom_call.1} parent=1 // pred_region
      %181 = dma.done [#allocation9], 65536
    $region69: #{tpu_custom_call.1} parent=1 // pred_fallthru
      _
    // Predicated region
    $region70: #{tpu_custom_call.1} parent=1 // pred_check
      _
    $region71: #{tpu_custom_call.1} parent=1 // pred_check_branch
      %183 = sbr.rel (0) target = $region73
    $region72: #{tpu_custom_call.1} parent=1 // pred_region
      %184 = dma.done [#allocation9], 64
    $region73: #{tpu_custom_call.1} parent=1 // pred_fallthru
      _
    // Predicated region
    $region74: #{tpu_custom_call.1} parent=1 // pred_check
      _
    $region75: #{tpu_custom_call.1} parent=1 // pred_check_branch
      %186 = sbr.rel (0) target = $region77
    $region76: #{tpu_custom_call.1} parent=1 // pred_region
      %187 = dma.done [#allocation12], 16384
    $region77: #{tpu_custom_call.1} parent=1 // pred_fallthru
      _
    // Predicated region
    $region78: #{tpu_custom_call.1} parent=1 // pred_check
      _
    $region79: #{tpu_custom_call.1} parent=1 // pred_check_branch
      %189 = sbr.rel (0) target = $region81
    $region80: #{tpu_custom_call.1} parent=1 // pred_region
      %190 = dma.done [#allocation12], 32
    $region81: #{tpu_custom_call.1} parent=1 // pred_fallthru
      _
    // Predicated region
    $region82: #{tpu_custom_call.1} parent=1 // pred_check
      _
    $region83: #{tpu_custom_call.1} parent=1 // pred_check_branch
      %192 = sbr.rel (0) target = $region85
    $region84: #{tpu_custom_call.1} parent=1 // pred_region
      %193 = dma.done [#allocation15], 4096
    $region85: #{tpu_custom_call.1} parent=1 // pred_fallthru
      _
    // Predicated region
    $region86: #{tpu_custom_call.1} parent=1 // pred_check
      _
    $region87: #{tpu_custom_call.1} parent=1 // pred_check_branch
      %195 = sbr.rel (0) target = $region89
    $region88: #{tpu_custom_call.1} parent=1 // pred_region
      %196 = dma.done [#allocation15], 16
    $region89: #{tpu_custom_call.1} parent=1 // pred_fallthru
      _
    // Predicated region
    $region90: #{tpu_custom_call.1} parent=1 // pred_check
      _
    $region91: #{tpu_custom_call.1} parent=1 // pred_check_branch
      %198 = sbr.rel (0) target = $region93
    $region92: #{tpu_custom_call.1} parent=1 // pred_region
      %199 = dma.done [#allocation18], 2048
    $region93: #{tpu_custom_call.1} parent=1 // pred_fallthru
      _
    // Predicated region
    $region94: #{tpu_custom_call.1} parent=1 // pred_check
      _
    $region95: #{tpu_custom_call.1} parent=1 // pred_check_branch
      %201 = sbr.rel (0) target = $region97
    $region96: #{tpu_custom_call.1} parent=1 // pred_region
      %202 = dma.done [#allocation18], 16
    $region97: #{tpu_custom_call.1} parent=1 // pred_fallthru
      _
    // Predicated region
    $region98: #{tpu_custom_call.1} parent=1 // pred_check
      _
    $region99: #{tpu_custom_call.1} parent=1 // pred_check_branch
      %204 = sbr.rel (0) target = $region101
    $region100: #{tpu_custom_call.1} parent=1 // pred_region
      %205 = dma.done [#allocation21], 2048
    $region101: #{tpu_custom_call.1} parent=1 // pred_fallthru
      _
    // Predicated region
    $region102: #{tpu_custom_call.1} parent=1 // pred_check
      _
    $region103: #{tpu_custom_call.1} parent=1 // pred_check_branch
      %207 = sbr.rel (0) target = $region105
    $region104: #{tpu_custom_call.1} parent=1 // pred_region
      %208 = dma.done [#allocation21], 16
    $region105: #{tpu_custom_call.1} parent=1 // pred_fallthru
      _
    %v209 = vld [vmem:[#allocation2] sm:$0xff]
    %v210 = vld [vmem:[#allocation2 + $0x8] sm:$0xff]
    %v211 = vld [vmem:[#allocation2 + $0x10] sm:$0xff]
    %v212 = vld [vmem:[#allocation2 + $0x18] sm:$0xff]
    %v213 = vld [vmem:[#allocation2 + $0x20] sm:$0xff]
    %v214 = vld [vmem:[#allocation2 + $0x28] sm:$0xff]
    %v215 = vld [vmem:[#allocation2 + $0x30] sm:$0xff]
    %v216 = vld [vmem:[#allocation2 + $0x38] sm:$0xff]
    %v217 = vld [vmem:[#allocation2 + $0x40] sm:$0xff]
    %v218 = vld [vmem:[#allocation2 + $0x48] sm:$0xff]
    %v219 = vld [vmem:[#allocation2 + $0x50] sm:$0xff]
    %v220 = vld [vmem:[#allocation2 + $0x58] sm:$0xff]
    %v221 = vld [vmem:[#allocation2 + $0x60] sm:$0xff]
    %v222 = vld [vmem:[#allocation2 + $0x68] sm:$0xff]
    %v223 = vld [vmem:[#allocation2 + $0x70] sm:$0xff]
    %v224 = vld [vmem:[#allocation2 + $0x78] sm:$0xff]
    %v225 = vld [vmem:[#allocation5] sm:$0xff]
    %v226 = vld [vmem:[#allocation5 + $0x8] sm:$0xff]
    %v227 = vld [vmem:[#allocation5 + $0x10] sm:$0xff]
    %v228 = vld [vmem:[#allocation5 + $0x18] sm:$0xff]
    %v229 = vld [vmem:[#allocation5 + $0x20] sm:$0xff]
    %v230 = vld [vmem:[#allocation5 + $0x28] sm:$0xff]
    %v231 = vld [vmem:[#allocation5 + $0x30] sm:$0xff]
    %v232 = vld [vmem:[#allocation5 + $0x38] sm:$0xff]
    %v233 = vld [vmem:[#allocation5 + $0x40] sm:$0xff]
    %v234 = vld [vmem:[#allocation5 + $0x48] sm:$0xff]
    %v235 = vld [vmem:[#allocation5 + $0x50] sm:$0xff]
    %v236 = vld [vmem:[#allocation5 + $0x58] sm:$0xff]
    %v237 = vld [vmem:[#allocation5 + $0x60] sm:$0xff]
    %v238 = vld [vmem:[#allocation5 + $0x68] sm:$0xff]
    %v239 = vld [vmem:[#allocation5 + $0x70] sm:$0xff]
    %v240 = vld [vmem:[#allocation5 + $0x78] sm:$0xff]
    %v241 = vld [vmem:[#allocation5 + $0x80] sm:$0xff]
    %v242 = vld [vmem:[#allocation5 + $0x88] sm:$0xff]
    %v243 = vld [vmem:[#allocation5 + $0x90] sm:$0xff]
    %v244 = vld [vmem:[#allocation5 + $0x98] sm:$0xff]
    %v245 = vld [vmem:[#allocation5 + $0xa0] sm:$0xff]
    %v246 = vld [vmem:[#allocation5 + $0xa8] sm:$0xff]
    %v247 = vld [vmem:[#allocation5 + $0xb0] sm:$0xff]
    %v248 = vld [vmem:[#allocation5 + $0xb8] sm:$0xff]
    %v249 = vld [vmem:[#allocation5 + $0xc0] sm:$0xff]
    %v250 = vld [vmem:[#allocation5 + $0xc8] sm:$0xff]
    %v251 = vld [vmem:[#allocation5 + $0xd0] sm:$0xff]
    %v252 = vld [vmem:[#allocation5 + $0xd8] sm:$0xff]
    %v253 = vld [vmem:[#allocation5 + $0xe0] sm:$0xff]
    %v254 = vld [vmem:[#allocation5 + $0xe8] sm:$0xff]
    %v255 = vld [vmem:[#allocation5 + $0xf0] sm:$0xff]
    %v256 = vld [vmem:[#allocation5 + $0xf8] sm:$0xff]
    %v257 = vld [vmem:[#allocation5 + $0x100] sm:$0xff]
    %v258 = vld [vmem:[#allocation5 + $0x108] sm:$0xff]
    %v259 = vld [vmem:[#allocation5 + $0x110] sm:$0xff]
    %v260 = vld [vmem:[#allocation5 + $0x118] sm:$0xff]
    %v261 = vld [vmem:[#allocation5 + $0x120] sm:$0xff]
    %v262 = vld [vmem:[#allocation5 + $0x128] sm:$0xff]
    %v263 = vld [vmem:[#allocation5 + $0x130] sm:$0xff]
    %v264 = vld [vmem:[#allocation5 + $0x138] sm:$0xff]
    %v265 = vld [vmem:[#allocation5 + $0x140] sm:$0xff]
    %v266 = vld [vmem:[#allocation5 + $0x148] sm:$0xff]
    %v267 = vld [vmem:[#allocation5 + $0x150] sm:$0xff]
    %v268 = vld [vmem:[#allocation5 + $0x158] sm:$0xff]
    %v269 = vld [vmem:[#allocation5 + $0x160] sm:$0xff]
    %v270 = vld [vmem:[#allocation5 + $0x168] sm:$0xff]
    %v271 = vld [vmem:[#allocation5 + $0x170] sm:$0xff]
    %v272 = vld [vmem:[#allocation5 + $0x178] sm:$0xff]
    %v273 = vld [vmem:[#allocation5 + $0x180] sm:$0xff]
    %v274 = vld [vmem:[#allocation5 + $0x188] sm:$0xff]
    %v275 = vld [vmem:[#allocation5 + $0x190] sm:$0xff]
    %v276 = vld [vmem:[#allocation5 + $0x198] sm:$0xff]
    %v277 = vld [vmem:[#allocation5 + $0x1a0] sm:$0xff]
    %v278 = vld [vmem:[#allocation5 + $0x1a8] sm:$0xff]
    %v279 = vld [vmem:[#allocation5 + $0x1b0] sm:$0xff]
    %v280 = vld [vmem:[#allocation5 + $0x1b8] sm:$0xff]
    %v281 = vld [vmem:[#allocation5 + $0x1c0] sm:$0xff]
    %v282 = vld [vmem:[#allocation5 + $0x1c8] sm:$0xff]
    %v283 = vld [vmem:[#allocation5 + $0x1d0] sm:$0xff]
    %v284 = vld [vmem:[#allocation5 + $0x1d8] sm:$0xff]
    %v285 = vld [vmem:[#allocation5 + $0x1e0] sm:$0xff]
    %v286 = vld [vmem:[#allocation5 + $0x1e8] sm:$0xff]
    %v287 = vld [vmem:[#allocation5 + $0x1f0] sm:$0xff]
    %v288 = vld [vmem:[#allocation5 + $0x1f8] sm:$0xff]
    %v289 = vld [vmem:[#allocation5 + $0x200] sm:$0xff]
    %v290 = vld [vmem:[#allocation5 + $0x208] sm:$0xff]
    %v291 = vld [vmem:[#allocation5 + $0x210] sm:$0xff]
    %v292 = vld [vmem:[#allocation5 + $0x218] sm:$0xff]
    %v293 = vld [vmem:[#allocation5 + $0x220] sm:$0xff]
    %v294 = vld [vmem:[#allocation5 + $0x228] sm:$0xff]
    %v295 = vld [vmem:[#allocation5 + $0x230] sm:$0xff]
    %v296 = vld [vmem:[#allocation5 + $0x238] sm:$0xff]
    %v297 = vld [vmem:[#allocation5 + $0x240] sm:$0xff]
    %v298 = vld [vmem:[#allocation5 + $0x248] sm:$0xff]
    %v299 = vld [vmem:[#allocation5 + $0x250] sm:$0xff]
    %v300 = vld [vmem:[#allocation5 + $0x258] sm:$0xff]
    %v301 = vld [vmem:[#allocation5 + $0x260] sm:$0xff]
    %v302 = vld [vmem:[#allocation5 + $0x268] sm:$0xff]
    %v303 = vld [vmem:[#allocation5 + $0x270] sm:$0xff]
    %v304 = vld [vmem:[#allocation5 + $0x278] sm:$0xff]
    %v305 = vld [vmem:[#allocation5 + $0x280] sm:$0xff]
    %v306 = vld [vmem:[#allocation5 + $0x288] sm:$0xff]
    %v307 = vld [vmem:[#allocation5 + $0x290] sm:$0xff]
    %v308 = vld [vmem:[#allocation5 + $0x298] sm:$0xff]
    %v309 = vld [vmem:[#allocation5 + $0x2a0] sm:$0xff]
    %v310 = vld [vmem:[#allocation5 + $0x2a8] sm:$0xff]
    %v311 = vld [vmem:[#allocation5 + $0x2b0] sm:$0xff]
    %v312 = vld [vmem:[#allocation5 + $0x2b8] sm:$0xff]
    %v313 = vld [vmem:[#allocation5 + $0x2c0] sm:$0xff]
    %v314 = vld [vmem:[#allocation5 + $0x2c8] sm:$0xff]
    %v315 = vld [vmem:[#allocation5 + $0x2d0] sm:$0xff]
    %v316 = vld [vmem:[#allocation5 + $0x2d8] sm:$0xff]
    %v317 = vld [vmem:[#allocation5 + $0x2e0] sm:$0xff]
    %v318 = vld [vmem:[#allocation5 + $0x2e8] sm:$0xff]
    %v319 = vld [vmem:[#allocation5 + $0x2f0] sm:$0xff]
    %v320 = vld [vmem:[#allocation5 + $0x2f8] sm:$0xff]
    %v321 = vld [vmem:[#allocation5 + $0x300] sm:$0xff]
    %v322 = vld [vmem:[#allocation5 + $0x308] sm:$0xff]
    %v323 = vld [vmem:[#allocation5 + $0x310] sm:$0xff]
    %v324 = vld [vmem:[#allocation5 + $0x318] sm:$0xff]
    %v325 = vld [vmem:[#allocation5 + $0x320] sm:$0xff]
    %v326 = vld [vmem:[#allocation5 + $0x328] sm:$0xff]
    %v327 = vld [vmem:[#allocation5 + $0x330] sm:$0xff]
    %v328 = vld [vmem:[#allocation5 + $0x338] sm:$0xff]
    %v329 = vld [vmem:[#allocation5 + $0x340] sm:$0xff]
    %v330 = vld [vmem:[#allocation5 + $0x348] sm:$0xff]
    %v331 = vld [vmem:[#allocation5 + $0x350] sm:$0xff]
    %v332 = vld [vmem:[#allocation5 + $0x358] sm:$0xff]
    %v333 = vld [vmem:[#allocation5 + $0x360] sm:$0xff]
    %v334 = vld [vmem:[#allocation5 + $0x368] sm:$0xff]
    %v335 = vld [vmem:[#allocation5 + $0x370] sm:$0xff]
    %v336 = vld [vmem:[#allocation5 + $0x378] sm:$0xff]
    %v337 = vld [vmem:[#allocation5 + $0x380] sm:$0xff]
    %v338 = vld [vmem:[#allocation5 + $0x388] sm:$0xff]
    %v339 = vld [vmem:[#allocation5 + $0x390] sm:$0xff]
    %v340 = vld [vmem:[#allocation5 + $0x398] sm:$0xff]
    %v341 = vld [vmem:[#allocation5 + $0x3a0] sm:$0xff]
    %v342 = vld [vmem:[#allocation5 + $0x3a8] sm:$0xff]
    %v343 = vld [vmem:[#allocation5 + $0x3b0] sm:$0xff]
    %v344 = vld [vmem:[#allocation5 + $0x3b8] sm:$0xff]
    %v345 = vld [vmem:[#allocation5 + $0x3c0] sm:$0xff]
    %v346 = vld [vmem:[#allocation5 + $0x3c8] sm:$0xff]
    %v347 = vld [vmem:[#allocation5 + $0x3d0] sm:$0xff]
    %v348 = vld [vmem:[#allocation5 + $0x3d8] sm:$0xff]
    %v349 = vld [vmem:[#allocation5 + $0x3e0] sm:$0xff]
    %v350 = vld [vmem:[#allocation5 + $0x3e8] sm:$0xff]
    %v351 = vld [vmem:[#allocation5 + $0x3f0] sm:$0xff]
    %v352 = vld [vmem:[#allocation5 + $0x3f8] sm:$0xff]
    %v353 = vld [vmem:[#allocation7] sm:$0xff]
    %v355 = vlaneseq
    %v356 = vshrl.u32 %v355, 7
    %v357 = vsub.s32 0, %v356
    %v358 = vrot.slane %v353, %v357
    %v359 = vlaneseq
    %v360 = vshrl.u32 %v359, 7
    %v361 = vsub.s32 1, %v360
    %v362 = vrot.slane %v353, %v361
    %v363 = vlaneseq
    %v364 = vshrl.u32 %v363, 7
    %v365 = vsub.s32 2, %v364
    %v366 = vrot.slane %v353, %v365
    %v367 = vlaneseq
    %v368 = vshrl.u32 %v367, 7
    %v369 = vsub.s32 3, %v368
    %v370 = vrot.slane %v353, %v369
    %v371 = vlaneseq
    %v372 = vshrl.u32 %v371, 7
    %v373 = vsub.s32 4, %v372
    %v374 = vrot.slane %v353, %v373
    %v375 = vlaneseq
    %v376 = vshrl.u32 %v375, 7
    %v377 = vsub.s32 5, %v376
    %v378 = vrot.slane %v353, %v377
    %v379 = vlaneseq
    %v380 = vshrl.u32 %v379, 7
    %v381 = vsub.s32 6, %v380
    %v382 = vrot.slane %v353, %v381
    %v383 = vlaneseq
    %v384 = vshrl.u32 %v383, 7
    %v385 = vsub.s32 7, %v384
    %v386 = vrot.slane %v353, %v385
    %395 = vmatprep.subr.mxu0 %v226
    %396 = vmatpush1.msra.mxu0 %v225
    %397 = vmatprep.subr.mxu0 %v234
    %398 = vmatpush1.msra.mxu0 %v233
    %399 = vmatprep.subr.mxu0 %v242
    %400 = vmatpush1.msra.mxu0 %v241
    %401 = vmatprep.subr.mxu0 %v250
    %402 = vmatpush1.msra.mxu0 %v249
    %403 = vmatprep.subr.mxu0 %v258
    %404 = vmatpush1.msra.mxu0 %v257
    %405 = vmatprep.subr.mxu0 %v266
    %406 = vmatpush1.msra.mxu0 %v265
    %407 = vmatprep.subr.mxu0 %v274
    %408 = vmatpush1.msra.mxu0 %v273
    %409 = vmatprep.subr.mxu0 %v282
    %410 = vmatpush1.msra.mxu0 %v281
    %411 = vmatprep.subr.mxu0 %v290
    %412 = vmatpush1.msra.mxu0 %v289
    %413 = vmatprep.subr.mxu0 %v298
    %414 = vmatpush1.msra.mxu0 %v297
    %415 = vmatprep.subr.mxu0 %v306
    %416 = vmatpush1.msra.mxu0 %v305
    %417 = vmatprep.subr.mxu0 %v314
    %418 = vmatpush1.msra.mxu0 %v313
    %419 = vmatprep.subr.mxu0 %v322
    %420 = vmatpush1.msra.mxu0 %v321
    %421 = vmatprep.subr.mxu0 %v330
    %422 = vmatpush1.msra.mxu0 %v329
    %423 = vmatprep.subr.mxu0 %v338
    %424 = vmatpush1.msra.mxu0 %v337
    %425 = vmatprep.subr.mxu0 %v346
    %426 = vmatpush1.msra.mxu0 %v345
    %427 = vmatprep.subr.mxu0 0.0
    %428 = vmatpush1.msra.mxu0 0.0
    %429 = vmatprep.subr.mxu0 0.0
    %430 = vmatpush1.msra.mxu0 0.0
    %431 = vmatprep.subr.mxu0 0.0
    %432 = vmatpush1.msra.mxu0 0.0
    %433 = vmatprep.subr.mxu0 0.0
    %434 = vmatpush1.msra.mxu0 0.0
    %435 = vmatprep.subr.mxu0 0.0
    %436 = vmatpush1.msra.mxu0 0.0
    %437 = vmatprep.subr.mxu0 0.0
    %438 = vmatpush1.msra.mxu0 0.0
    %439 = vmatprep.subr.mxu0 0.0
    %440 = vmatpush1.msra.mxu0 0.0
    %441 = vmatprep.subr.mxu0 0.0
    %442 = vmatpush1.msra.mxu0 0.0
    %443 = vmatprep.subr.mxu0 0.0
    %444 = vmatpush1.msra.mxu0 0.0
    %445 = vmatprep.subr.mxu0 0.0
    %446 = vmatpush1.msra.mxu0 0.0
    %447 = vmatprep.subr.mxu0 0.0
    %448 = vmatpush1.msra.mxu0 0.0
    %449 = vmatprep.subr.mxu0 0.0
    %450 = vmatpush1.msra.mxu0 0.0
    %451 = vmatprep.subr.mxu0 0.0
    %452 = vmatpush1.msra.mxu0 0.0
    %453 = vmatprep.subr.mxu0 0.0
    %454 = vmatpush1.msra.mxu0 0.0
    %455 = vmatprep.subr.mxu0 0.0
    %456 = vmatpush1.msra.mxu0 0.0
    %457 = vmatprep.subr.mxu0 0.0
    %458 = vmatpush1.msra.mxu0 0.0
    %459 = vmatprep.mubr.f32.mxu0 0.0
    %460 = vmatmul.mubr.f32.gmra.mrb[0].mxu0 %v209
    %v461 = vpop.f32.mrb[0].mxu0
    %v462 = vadd.f32 %v358, %v461
    %v463 = vpop.f32.mrb[0].mxu0
    %v464 = vadd.f32 %v362, %v463
    %465 = vmatprep.mubr.f32.mxu0 0.0
    %466 = vmatmul.mubr.f32.gmra.mrb[0].mxu0 %v210
    %v467 = vpop.f32.mrb[0].mxu0
    %v468 = vadd.f32 %v358, %v467
    %v469 = vpop.f32.mrb[0].mxu0
    %v470 = vadd.f32 %v362, %v469
    %471 = vmatprep.mubr.f32.mxu0 0.0
    %472 = vmatmul.mubr.f32.gmra.mrb[0].mxu0 %v211
    %v473 = vpop.f32.mrb[0].mxu0
    %v474 = vadd.f32 %v358, %v473
    %v475 = vpop.f32.mrb[0].mxu0
    %v476 = vadd.f32 %v362, %v475
    %477 = vmatprep.mubr.f32.mxu0 0.0
    %478 = vmatmul.mubr.f32.gmra.mrb[0].mxu0 %v212
    %v479 = vpop.f32.mrb[0].mxu0
    %v480 = vadd.f32 %v358, %v479
    %v481 = vpop.f32.mrb[0].mxu0
    %v482 = vadd.f32 %v362, %v481
    %483 = vmatprep.mubr.f32.mxu0 0.0
    %484 = vmatmul.mubr.f32.gmra.mrb[0].mxu0 %v213
    %v485 = vpop.f32.mrb[0].mxu0
    %v486 = vadd.f32 %v358, %v485
    %v487 = vpop.f32.mrb[0].mxu0
    %v488 = vadd.f32 %v362, %v487
    %489 = vmatprep.mubr.f32.mxu0 0.0
    %490 = vmatmul.mubr.f32.gmra.mrb[0].mxu0 %v214
    %v491 = vpop.f32.mrb[0].mxu0
    %v492 = vadd.f32 %v358, %v491
    %v493 = vpop.f32.mrb[0].mxu0
    %v494 = vadd.f32 %v362, %v493
    %495 = vmatprep.mubr.f32.mxu0 0.0
    %496 = vmatmul.mubr.f32.gmra.mrb[0].mxu0 %v215
    %v497 = vpop.f32.mrb[0].mxu0
    %v498 = vadd.f32 %v358, %v497
    %v499 = vpop.f32.mrb[0].mxu0
    %v500 = vadd.f32 %v362, %v499
    %501 = vmatprep.mubr.f32.mxu0 0.0
    %502 = vmatmul.mubr.f32.gmra.mrb[0].mxu0 %v216
    %v503 = vpop.f32.mrb[0].mxu0
    %v504 = vadd.f32 %v358, %v503
    %v505 = vpop.f32.mrb[0].mxu0
    %v506 = vadd.f32 %v362, %v505
    %507 = vmatprep.mubr.f32.mxu0 0.0
    %508 = vmatmul.mubr.f32.gmra.mrb[0].mxu0 %v217
    %v509 = vpop.f32.mrb[0].mxu0
    %v510 = vadd.f32 %v358, %v509
    %v511 = vpop.f32.mrb[0].mxu0
    %v512 = vadd.f32 %v362, %v511
    %513 = vmatprep.mubr.f32.mxu0 0.0
    %514 = vmatmul.mubr.f32.gmra.mrb[0].mxu0 %v218
    %v515 = vpop.f32.mrb[0].mxu0
    %v516 = vadd.f32 %v358, %v515
    %v517 = vpop.f32.mrb[0].mxu0
    %v518 = vadd.f32 %v362, %v517
    %519 = vmatprep.mubr.f32.mxu0 0.0
    %520 = vmatmul.mubr.f32.gmra.mrb[0].mxu0 %v219
    %v521 = vpop.f32.mrb[0].mxu0
    %v522 = vadd.f32 %v358, %v521
    %v523 = vpop.f32.mrb[0].mxu0
    %v524 = vadd.f32 %v362, %v523
    %525 = vmatprep.mubr.f32.mxu0 0.0
    %526 = vmatmul.mubr.f32.gmra.mrb[0].mxu0 %v220
    %v527 = vpop.f32.mrb[0].mxu0
    %v528 = vadd.f32 %v358, %v527
    %v529 = vpop.f32.mrb[0].mxu0
    %v530 = vadd.f32 %v362, %v529
    %531 = vmatprep.mubr.f32.mxu0 0.0
    %532 = vmatmul.mubr.f32.gmra.mrb[0].mxu0 %v221
    %v533 = vpop.f32.mrb[0].mxu0
    %v534 = vadd.f32 %v358, %v533
    %v535 = vpop.f32.mrb[0].mxu0
    %v536 = vadd.f32 %v362, %v535
    %537 = vmatprep.mubr.f32.mxu0 0.0
    %538 = vmatmul.mubr.f32.gmra.mrb[0].mxu0 %v222
    %v539 = vpop.f32.mrb[0].mxu0
    %v540 = vadd.f32 %v358, %v539
    %v541 = vpop.f32.mrb[0].mxu0
    %v542 = vadd.f32 %v362, %v541
    %543 = vmatprep.mubr.f32.mxu0 0.0
    %544 = vmatmul.mubr.f32.gmra.mrb[0].mxu0 %v223
    %v545 = vpop.f32.mrb[0].mxu0
    %v546 = vadd.f32 %v358, %v545
    %v547 = vpop.f32.mrb[0].mxu0
    %v548 = vadd.f32 %v362, %v547
    %549 = vmatprep.mubr.f32.mxu0 0.0
    %550 = vmatmul.mubr.f32.gmra.mrb[0].mxu0 %v224
    %v551 = vpop.f32.mrb[0].mxu0
    %v552 = vadd.f32 %v358, %v551
    %v553 = vpop.f32.mrb[0].mxu0
    %v554 = vadd.f32 %v362, %v553
    %555 = vdwg.mxu0
    %556 = vmatprep.subr.mxu0 %v228
    %557 = vmatpush1.msra.mxu0 %v227
    %558 = vmatprep.subr.mxu0 %v236
    %559 = vmatpush1.msra.mxu0 %v235
    %560 = vmatprep.subr.mxu0 %v244
    %561 = vmatpush1.msra.mxu0 %v243
    %562 = vmatprep.subr.mxu0 %v252
    %563 = vmatpush1.msra.mxu0 %v251
    %564 = vmatprep.subr.mxu0 %v260
    %565 = vmatpush1.msra.mxu0 %v259
    %566 = vmatprep.subr.mxu0 %v268
    %567 = vmatpush1.msra.mxu0 %v267
    %568 = vmatprep.subr.mxu0 %v276
    %569 = vmatpush1.msra.mxu0 %v275
    %570 = vmatprep.subr.mxu0 %v284
    %571 = vmatpush1.msra.mxu0 %v283
    %572 = vmatprep.subr.mxu0 %v292
    %573 = vmatpush1.msra.mxu0 %v291
    %574 = vmatprep.subr.mxu0 %v300
    %575 = vmatpush1.msra.mxu0 %v299
    %576 = vmatprep.subr.mxu0 %v308
    %577 = vmatpush1.msra.mxu0 %v307
    %578 = vmatprep.subr.mxu0 %v316
    %579 = vmatpush1.msra.mxu0 %v315
    %580 = vmatprep.subr.mxu0 %v324
    %581 = vmatpush1.msra.mxu0 %v323
    %582 = vmatprep.subr.mxu0 %v332
    %583 = vmatpush1.msra.mxu0 %v331
    %584 = vmatprep.subr.mxu0 %v340
    %585 = vmatpush1.msra.mxu0 %v339
    %586 = vmatprep.subr.mxu0 %v348
    %587 = vmatpush1.msra.mxu0 %v347
    %588 = vmatprep.subr.mxu0 0.0
    %589 = vmatpush1.msra.mxu0 0.0
    %590 = vmatprep.subr.mxu0 0.0
    %591 = vmatpush1.msra.mxu0 0.0
    %592 = vmatprep.subr.mxu0 0.0
    %593 = vmatpush1.msra.mxu0 0.0
    %594 = vmatprep.subr.mxu0 0.0
    %595 = vmatpush1.msra.mxu0 0.0
    %596 = vmatprep.subr.mxu0 0.0
    %597 = vmatpush1.msra.mxu0 0.0
    %598 = vmatprep.subr.mxu0 0.0
    %599 = vmatpush1.msra.mxu0 0.0
    %600 = vmatprep.subr.mxu0 0.0
    %601 = vmatpush1.msra.mxu0 0.0
    %602 = vmatprep.subr.mxu0 0.0
    %603 = vmatpush1.msra.mxu0 0.0
    %604 = vmatprep.subr.mxu0 0.0
    %605 = vmatpush1.msra.mxu0 0.0
    %606 = vmatprep.subr.mxu0 0.0
    %607 = vmatpush1.msra.mxu0 0.0
    %608 = vmatprep.subr.mxu0 0.0
    %609 = vmatpush1.msra.mxu0 0.0
    %610 = vmatprep.subr.mxu0 0.0
    %611 = vmatpush1.msra.mxu0 0.0
    %612 = vmatprep.subr.mxu0 0.0
    %613 = vmatpush1.msra.mxu0 0.0
    %614 = vmatprep.subr.mxu0 0.0
    %615 = vmatpush1.msra.mxu0 0.0
    %616 = vmatprep.subr.mxu0 0.0
    %617 = vmatpush1.msra.mxu0 0.0
    %618 = vmatprep.subr.mxu0 0.0
    %619 = vmatpush1.msra.mxu0 0.0
    %620 = vmatprep.mubr.f32.mxu0 0.0
    %621 = vmatmul.mubr.f32.gmra.mrb[0].mxu0 %v209
    %v622 = vpop.f32.mrb[0].mxu0
    %v623 = vadd.f32 %v366, %v622
    %v624 = vpop.f32.mrb[0].mxu0
    %v625 = vadd.f32 %v370, %v624
    %626 = vmatprep.mubr.f32.mxu0 0.0
    %627 = vmatmul.mubr.f32.gmra.mrb[0].mxu0 %v210
    %v628 = vpop.f32.mrb[0].mxu0
    %v629 = vadd.f32 %v366, %v628
    %v630 = vpop.f32.mrb[0].mxu0
    %v631 = vadd.f32 %v370, %v630
    %632 = vmatprep.mubr.f32.mxu0 0.0
    %633 = vmatmul.mubr.f32.gmra.mrb[0].mxu0 %v211
    %v634 = vpop.f32.mrb[0].mxu0
    %v635 = vadd.f32 %v366, %v634
    %v636 = vpop.f32.mrb[0].mxu0
    %v637 = vadd.f32 %v370, %v636
    %638 = vmatprep.mubr.f32.mxu0 0.0
    %639 = vmatmul.mubr.f32.gmra.mrb[0].mxu0 %v212
    %v640 = vpop.f32.mrb[0].mxu0
    %v641 = vadd.f32 %v366, %v640
    %v642 = vpop.f32.mrb[0].mxu0
    %v643 = vadd.f32 %v370, %v642
    %644 = vmatprep.mubr.f32.mxu0 0.0
    %645 = vmatmul.mubr.f32.gmra.mrb[0].mxu0 %v213
    %v646 = vpop.f32.mrb[0].mxu0
    %v647 = vadd.f32 %v366, %v646
    %v648 = vpop.f32.mrb[0].mxu0
    %v649 = vadd.f32 %v370, %v648
    %650 = vmatprep.mubr.f32.mxu0 0.0
    %651 = vmatmul.mubr.f32.gmra.mrb[0].mxu0 %v214
    %v652 = vpop.f32.mrb[0].mxu0
    %v653 = vadd.f32 %v366, %v652
    %v654 = vpop.f32.mrb[0].mxu0
    %v655 = vadd.f32 %v370, %v654
    %656 = vmatprep.mubr.f32.mxu0 0.0
    %657 = vmatmul.mubr.f32.gmra.mrb[0].mxu0 %v215
    %v658 = vpop.f32.mrb[0].mxu0
    %v659 = vadd.f32 %v366, %v658
    %v660 = vpop.f32.mrb[0].mxu0
    %v661 = vadd.f32 %v370, %v660
    %662 = vmatprep.mubr.f32.mxu0 0.0
    %663 = vmatmul.mubr.f32.gmra.mrb[0].mxu0 %v216
    %v664 = vpop.f32.mrb[0].mxu0
    %v665 = vadd.f32 %v366, %v664
    %v666 = vpop.f32.mrb[0].mxu0
    %v667 = vadd.f32 %v370, %v666
    %668 = vmatprep.mubr.f32.mxu0 0.0
    %669 = vmatmul.mubr.f32.gmra.mrb[0].mxu0 %v217
    %v670 = vpop.f32.mrb[0].mxu0
    %v671 = vadd.f32 %v366, %v670
    %v672 = vpop.f32.mrb[0].mxu0
    %v673 = vadd.f32 %v370, %v672
    %674 = vmatprep.mubr.f32.mxu0 0.0
    %675 = vmatmul.mubr.f32.gmra.mrb[0].mxu0 %v218
    %v676 = vpop.f32.mrb[0].mxu0
    %v677 = vadd.f32 %v366, %v676
    %v678 = vpop.f32.mrb[0].mxu0
    %v679 = vadd.f32 %v370, %v678
    %680 = vmatprep.mubr.f32.mxu0 0.0
    %681 = vmatmul.mubr.f32.gmra.mrb[0].mxu0 %v219
    %v682 = vpop.f32.mrb[0].mxu0
    %v683 = vadd.f32 %v366, %v682
    %v684 = vpop.f32.mrb[0].mxu0
    %v685 = vadd.f32 %v370, %v684
    %686 = vmatprep.mubr.f32.mxu0 0.0
    %687 = vmatmul.mubr.f32.gmra.mrb[0].mxu0 %v220
    %v688 = vpop.f32.mrb[0].mxu0
    %v689 = vadd.f32 %v366, %v688
    %v690 = vpop.f32.mrb[0].mxu0
    %v691 = vadd.f32 %v370, %v690
    %692 = vmatprep.mubr.f32.mxu0 0.0
    %693 = vmatmul.mubr.f32.gmra.mrb[0].mxu0 %v221
    %v694 = vpop.f32.mrb[0].mxu0
    %v695 = vadd.f32 %v366, %v694
    %v696 = vpop.f32.mrb[0].mxu0
    %v697 = vadd.f32 %v370, %v696
    %698 = vmatprep.mubr.f32.mxu0 0.0
    %699 = vmatmul.mubr.f32.gmra.mrb[0].mxu0 %v222
    %v700 = vpop.f32.mrb[0].mxu0
    %v701 = vadd.f32 %v366, %v700
    %v702 = vpop.f32.mrb[0].mxu0
    %v703 = vadd.f32 %v370, %v702
    %704 = vmatprep.mubr.f32.mxu0 0.0
    %705 = vmatmul.mubr.f32.gmra.mrb[0].mxu0 %v223
    %v706 = vpop.f32.mrb[0].mxu0
    %v707 = vadd.f32 %v366, %v706
    %v708 = vpop.f32.mrb[0].mxu0
    %v709 = vadd.f32 %v370, %v708
    %710 = vmatprep.mubr.f32.mxu0 0.0
    %711 = vmatmul.mubr.f32.gmra.mrb[0].mxu0 %v224
    %v712 = vpop.f32.mrb[0].mxu0
    %v713 = vadd.f32 %v366, %v712
    %v714 = vpop.f32.mrb[0].mxu0
    %v715 = vadd.f32 %v370, %v714
    %716 = vdwg.mxu0
    %717 = vmatprep.subr.mxu0 %v230
    %718 = vmatpush1.msra.mxu0 %v229
    %719 = vmatprep.subr.mxu0 %v238
    %720 = vmatpush1.msra.mxu0 %v237
    %721 = vmatprep.subr.mxu0 %v246
    %722 = vmatpush1.msra.mxu0 %v245
    %723 = vmatprep.subr.mxu0 %v254
    %724 = vmatpush1.msra.mxu0 %v253
    %725 = vmatprep.subr.mxu0 %v262
    %726 = vmatpush1.msra.mxu0 %v261
    %727 = vmatprep.subr.mxu0 %v270
    %728 = vmatpush1.msra.mxu0 %v269
    %729 = vmatprep.subr.mxu0 %v278
    %730 = vmatpush1.msra.mxu0 %v277
    %731 = vmatprep.subr.mxu0 %v286
    %732 = vmatpush1.msra.mxu0 %v285
    %733 = vmatprep.subr.mxu0 %v294
    %734 = vmatpush1.msra.mxu0 %v293
    %735 = vmatprep.subr.mxu0 %v302
    %736 = vmatpush1.msra.mxu0 %v301
    %737 = vmatprep.subr.mxu0 %v310
    %738 = vmatpush1.msra.mxu0 %v309
    %739 = vmatprep.subr.mxu0 %v318
    %740 = vmatpush1.msra.mxu0 %v317
    %741 = vmatprep.subr.mxu0 %v326
    %742 = vmatpush1.msra.mxu0 %v325
    %743 = vmatprep.subr.mxu0 %v334
    %744 = vmatpush1.msra.mxu0 %v333
    %745 = vmatprep.subr.mxu0 %v342
    %746 = vmatpush1.msra.mxu0 %v341
    %747 = vmatprep.subr.mxu0 %v350
    %748 = vmatpush1.msra.mxu0 %v349
    %749 = vmatprep.subr.mxu0 0.0
    %750 = vmatpush1.msra.mxu0 0.0
    %751 = vmatprep.subr.mxu0 0.0
    %752 = vmatpush1.msra.mxu0 0.0
    %753 = vmatprep.subr.mxu0 0.0
    %754 = vmatpush1.msra.mxu0 0.0
    %755 = vmatprep.subr.mxu0 0.0
    %756 = vmatpush1.msra.mxu0 0.0
    %757 = vmatprep.subr.mxu0 0.0
    %758 = vmatpush1.msra.mxu0 0.0
    %759 = vmatprep.subr.mxu0 0.0
    %760 = vmatpush1.msra.mxu0 0.0
    %761 = vmatprep.subr.mxu0 0.0
    %762 = vmatpush1.msra.mxu0 0.0
    %763 = vmatprep.subr.mxu0 0.0
    %764 = vmatpush1.msra.mxu0 0.0
    %765 = vmatprep.subr.mxu0 0.0
    %766 = vmatpush1.msra.mxu0 0.0
    %767 = vmatprep.subr.mxu0 0.0
    %768 = vmatpush1.msra.mxu0 0.0
    %769 = vmatprep.subr.mxu0 0.0
    %770 = vmatpush1.msra.mxu0 0.0
    %771 = vmatprep.subr.mxu0 0.0
    %772 = vmatpush1.msra.mxu0 0.0
    %773 = vmatprep.subr.mxu0 0.0
    %774 = vmatpush1.msra.mxu0 0.0
    %775 = vmatprep.subr.mxu0 0.0
    %776 = vmatpush1.msra.mxu0 0.0
    %777 = vmatprep.subr.mxu0 0.0
    %778 = vmatpush1.msra.mxu0 0.0
    %779 = vmatprep.subr.mxu0 0.0
    %780 = vmatpush1.msra.mxu0 0.0
    %781 = vmatprep.mubr.f32.mxu0 0.0
    %782 = vmatmul.mubr.f32.gmra.mrb[0].mxu0 %v209
    %v783 = vpop.f32.mrb[0].mxu0
    %v784 = vadd.f32 %v374, %v783
    %v785 = vpop.f32.mrb[0].mxu0
    %v786 = vadd.f32 %v378, %v785
    %787 = vmatprep.mubr.f32.mxu0 0.0
    %788 = vmatmul.mubr.f32.gmra.mrb[0].mxu0 %v210
    %v789 = vpop.f32.mrb[0].mxu0
    %v790 = vadd.f32 %v374, %v789
    %v791 = vpop.f32.mrb[0].mxu0
    %v792 = vadd.f32 %v378, %v791
    %793 = vmatprep.mubr.f32.mxu0 0.0
    %794 = vmatmul.mubr.f32.gmra.mrb[0].mxu0 %v211
    %v795 = vpop.f32.mrb[0].mxu0
    %v796 = vadd.f32 %v374, %v795
    %v797 = vpop.f32.mrb[0].mxu0
    %v798 = vadd.f32 %v378, %v797
    %799 = vmatprep.mubr.f32.mxu0 0.0
    %800 = vmatmul.mubr.f32.gmra.mrb[0].mxu0 %v212
    %v801 = vpop.f32.mrb[0].mxu0
    %v802 = vadd.f32 %v374, %v801
    %v803 = vpop.f32.mrb[0].mxu0
    %v804 = vadd.f32 %v378, %v803
    %805 = vmatprep.mubr.f32.mxu0 0.0
    %806 = vmatmul.mubr.f32.gmra.mrb[0].mxu0 %v213
    %v807 = vpop.f32.mrb[0].mxu0
    %v808 = vadd.f32 %v374, %v807
    %v809 = vpop.f32.mrb[0].mxu0
    %v810 = vadd.f32 %v378, %v809
    %811 = vmatprep.mubr.f32.mxu0 0.0
    %812 = vmatmul.mubr.f32.gmra.mrb[0].mxu0 %v214
    %v813 = vpop.f32.mrb[0].mxu0
    %v814 = vadd.f32 %v374, %v813
    %v815 = vpop.f32.mrb[0].mxu0
    %v816 = vadd.f32 %v378, %v815
    %817 = vmatprep.mubr.f32.mxu0 0.0
    %818 = vmatmul.mubr.f32.gmra.mrb[0].mxu0 %v215
    %v819 = vpop.f32.mrb[0].mxu0
    %v820 = vadd.f32 %v374, %v819
    %v821 = vpop.f32.mrb[0].mxu0
    %v822 = vadd.f32 %v378, %v821
    %823 = vmatprep.mubr.f32.mxu0 0.0
    %824 = vmatmul.mubr.f32.gmra.mrb[0].mxu0 %v216
    %v825 = vpop.f32.mrb[0].mxu0
    %v826 = vadd.f32 %v374, %v825
    %v827 = vpop.f32.mrb[0].mxu0
    %v828 = vadd.f32 %v378, %v827
    %829 = vmatprep.mubr.f32.mxu0 0.0
    %830 = vmatmul.mubr.f32.gmra.mrb[0].mxu0 %v217
    %v831 = vpop.f32.mrb[0].mxu0
    %v832 = vadd.f32 %v374, %v831
    %v833 = vpop.f32.mrb[0].mxu0
    %v834 = vadd.f32 %v378, %v833
    %835 = vmatprep.mubr.f32.mxu0 0.0
    %836 = vmatmul.mubr.f32.gmra.mrb[0].mxu0 %v218
    %v837 = vpop.f32.mrb[0].mxu0
    %v838 = vadd.f32 %v374, %v837
    %v839 = vpop.f32.mrb[0].mxu0
    %v840 = vadd.f32 %v378, %v839
    %841 = vmatprep.mubr.f32.mxu0 0.0
    %842 = vmatmul.mubr.f32.gmra.mrb[0].mxu0 %v219
    %v843 = vpop.f32.mrb[0].mxu0
    %v844 = vadd.f32 %v374, %v843
    %v845 = vpop.f32.mrb[0].mxu0
    %v846 = vadd.f32 %v378, %v845
    %847 = vmatprep.mubr.f32.mxu0 0.0
    %848 = vmatmul.mubr.f32.gmra.mrb[0].mxu0 %v220
    %v849 = vpop.f32.mrb[0].mxu0
    %v850 = vadd.f32 %v374, %v849
    %v851 = vpop.f32.mrb[0].mxu0
    %v852 = vadd.f32 %v378, %v851
    %853 = vmatprep.mubr.f32.mxu0 0.0
    %854 = vmatmul.mubr.f32.gmra.mrb[0].mxu0 %v221
    %v855 = vpop.f32.mrb[0].mxu0
    %v856 = vadd.f32 %v374, %v855
    %v857 = vpop.f32.mrb[0].mxu0
    %v858 = vadd.f32 %v378, %v857
    %859 = vmatprep.mubr.f32.mxu0 0.0
    %860 = vmatmul.mubr.f32.gmra.mrb[0].mxu0 %v222
    %v861 = vpop.f32.mrb[0].mxu0
    %v862 = vadd.f32 %v374, %v861
    %v863 = vpop.f32.mrb[0].mxu0
    %v864 = vadd.f32 %v378, %v863
    %865 = vmatprep.mubr.f32.mxu0 0.0
    %866 = vmatmul.mubr.f32.gmra.mrb[0].mxu0 %v223
    %v867 = vpop.f32.mrb[0].mxu0
    %v868 = vadd.f32 %v374, %v867
    %v869 = vpop.f32.mrb[0].mxu0
    %v870 = vadd.f32 %v378, %v869
    %871 = vmatprep.mubr.f32.mxu0 0.0
    %872 = vmatmul.mubr.f32.gmra.mrb[0].mxu0 %v224
    %v873 = vpop.f32.mrb[0].mxu0
    %v874 = vadd.f32 %v374, %v873
    %v875 = vpop.f32.mrb[0].mxu0
    %v876 = vadd.f32 %v378, %v875
    %877 = vdwg.mxu0
    %878 = vmatprep.subr.mxu0 %v232
    %879 = vmatpush1.msra.mxu0 %v231
    %880 = vmatprep.subr.mxu0 %v240
    %881 = vmatpush1.msra.mxu0 %v239
    %882 = vmatprep.subr.mxu0 %v248
    %883 = vmatpush1.msra.mxu0 %v247
    %884 = vmatprep.subr.mxu0 %v256
    %885 = vmatpush1.msra.mxu0 %v255
    %886 = vmatprep.subr.mxu0 %v264
    %887 = vmatpush1.msra.mxu0 %v263
    %888 = vmatprep.subr.mxu0 %v272
    %889 = vmatpush1.msra.mxu0 %v271
    %890 = vmatprep.subr.mxu0 %v280
    %891 = vmatpush1.msra.mxu0 %v279
    %892 = vmatprep.subr.mxu0 %v288
    %893 = vmatpush1.msra.mxu0 %v287
    %894 = vmatprep.subr.mxu0 %v296
    %895 = vmatpush1.msra.mxu0 %v295
    %896 = vmatprep.subr.mxu0 %v304
    %897 = vmatpush1.msra.mxu0 %v303
    %898 = vmatprep.subr.mxu0 %v312
    %899 = vmatpush1.msra.mxu0 %v311
    %900 = vmatprep.subr.mxu0 %v320
    %901 = vmatpush1.msra.mxu0 %v319
    %902 = vmatprep.subr.mxu0 %v328
    %903 = vmatpush1.msra.mxu0 %v327
    %904 = vmatprep.subr.mxu0 %v336
    %905 = vmatpush1.msra.mxu0 %v335
    %906 = vmatprep.subr.mxu0 %v344
    %907 = vmatpush1.msra.mxu0 %v343
    %908 = vmatprep.subr.mxu0 %v352
    %909 = vmatpush1.msra.mxu0 %v351
    %910 = vmatprep.subr.mxu0 0.0
    %911 = vmatpush1.msra.mxu0 0.0
    %912 = vmatprep.subr.mxu0 0.0
    %913 = vmatpush1.msra.mxu0 0.0
    %914 = vmatprep.subr.mxu0 0.0
    %915 = vmatpush1.msra.mxu0 0.0
    %916 = vmatprep.subr.mxu0 0.0
    %917 = vmatpush1.msra.mxu0 0.0
    %918 = vmatprep.subr.mxu0 0.0
    %919 = vmatpush1.msra.mxu0 0.0
    %920 = vmatprep.subr.mxu0 0.0
    %921 = vmatpush1.msra.mxu0 0.0
    %922 = vmatprep.subr.mxu0 0.0
    %923 = vmatpush1.msra.mxu0 0.0
    %924 = vmatprep.subr.mxu0 0.0
    %925 = vmatpush1.msra.mxu0 0.0
    %926 = vmatprep.subr.mxu0 0.0
    %927 = vmatpush1.msra.mxu0 0.0
    %928 = vmatprep.subr.mxu0 0.0
    %929 = vmatpush1.msra.mxu0 0.0
    %930 = vmatprep.subr.mxu0 0.0
    %931 = vmatpush1.msra.mxu0 0.0
    %932 = vmatprep.subr.mxu0 0.0
    %933 = vmatpush1.msra.mxu0 0.0
    %934 = vmatprep.subr.mxu0 0.0
    %935 = vmatpush1.msra.mxu0 0.0
    %936 = vmatprep.subr.mxu0 0.0
    %937 = vmatpush1.msra.mxu0 0.0
    %938 = vmatprep.subr.mxu0 0.0
    %939 = vmatpush1.msra.mxu0 0.0
    %940 = vmatprep.subr.mxu0 0.0
    %941 = vmatpush1.msra.mxu0 0.0
    %942 = vmatprep.mubr.f32.mxu0 0.0
    %943 = vmatmul.mubr.f32.gmra.mrb[0].mxu0 %v209
    %v944 = vpop.f32.mrb[0].mxu0
    %v945 = vadd.f32 %v382, %v944
    %v946 = vpop.f32.mrb[0].mxu0
    %v947 = vadd.f32 %v386, %v946
    %948 = vmatprep.mubr.f32.mxu0 0.0
    %949 = vmatmul.mubr.f32.gmra.mrb[0].mxu0 %v210
    %v950 = vpop.f32.mrb[0].mxu0
    %v951 = vadd.f32 %v382, %v950
    %v952 = vpop.f32.mrb[0].mxu0
    %v953 = vadd.f32 %v386, %v952
    %954 = vmatprep.mubr.f32.mxu0 0.0
    %955 = vmatmul.mubr.f32.gmra.mrb[0].mxu0 %v211
    %v956 = vpop.f32.mrb[0].mxu0
    %v957 = vadd.f32 %v382, %v956
    %v958 = vpop.f32.mrb[0].mxu0
    %v959 = vadd.f32 %v386, %v958
    %960 = vmatprep.mubr.f32.mxu0 0.0
    %961 = vmatmul.mubr.f32.gmra.mrb[0].mxu0 %v212
    %v962 = vpop.f32.mrb[0].mxu0
    %v963 = vadd.f32 %v382, %v962
    %v964 = vpop.f32.mrb[0].mxu0
    %v965 = vadd.f32 %v386, %v964
    %966 = vmatprep.mubr.f32.mxu0 0.0
    %967 = vmatmul.mubr.f32.gmra.mrb[0].mxu0 %v213
    %v968 = vpop.f32.mrb[0].mxu0
    %v969 = vadd.f32 %v382, %v968
    %v970 = vpop.f32.mrb[0].mxu0
    %v971 = vadd.f32 %v386, %v970
    %972 = vmatprep.mubr.f32.mxu0 0.0
    %973 = vmatmul.mubr.f32.gmra.mrb[0].mxu0 %v214
    %v974 = vpop.f32.mrb[0].mxu0
    %v975 = vadd.f32 %v382, %v974
    %v976 = vpop.f32.mrb[0].mxu0
    %v977 = vadd.f32 %v386, %v976
    %978 = vmatprep.mubr.f32.mxu0 0.0
    %979 = vmatmul.mubr.f32.gmra.mrb[0].mxu0 %v215
    %v980 = vpop.f32.mrb[0].mxu0
    %v981 = vadd.f32 %v382, %v980
    %v982 = vpop.f32.mrb[0].mxu0
    %v983 = vadd.f32 %v386, %v982
    %984 = vmatprep.mubr.f32.mxu0 0.0
    %985 = vmatmul.mubr.f32.gmra.mrb[0].mxu0 %v216
    %v986 = vpop.f32.mrb[0].mxu0
    %v987 = vadd.f32 %v382, %v986
    %v988 = vpop.f32.mrb[0].mxu0
    %v989 = vadd.f32 %v386, %v988
    %990 = vmatprep.mubr.f32.mxu0 0.0
    %991 = vmatmul.mubr.f32.gmra.mrb[0].mxu0 %v217
    %v992 = vpop.f32.mrb[0].mxu0
    %v993 = vadd.f32 %v382, %v992
    %v994 = vpop.f32.mrb[0].mxu0
    %v995 = vadd.f32 %v386, %v994
    %996 = vmatprep.mubr.f32.mxu0 0.0
    %997 = vmatmul.mubr.f32.gmra.mrb[0].mxu0 %v218
    %v998 = vpop.f32.mrb[0].mxu0
    %v999 = vadd.f32 %v382, %v998
    %v1000 = vpop.f32.mrb[0].mxu0
    %v1001 = vadd.f32 %v386, %v1000
    %1002 = vmatprep.mubr.f32.mxu0 0.0
    %1003 = vmatmul.mubr.f32.gmra.mrb[0].mxu0 %v219
    %v1004 = vpop.f32.mrb[0].mxu0
    %v1005 = vadd.f32 %v382, %v1004
    %v1006 = vpop.f32.mrb[0].mxu0
    %v1007 = vadd.f32 %v386, %v1006
    %1008 = vmatprep.mubr.f32.mxu0 0.0
    %1009 = vmatmul.mubr.f32.gmra.mrb[0].mxu0 %v220
    %v1010 = vpop.f32.mrb[0].mxu0
    %v1011 = vadd.f32 %v382, %v1010
    %v1012 = vpop.f32.mrb[0].mxu0
    %v1013 = vadd.f32 %v386, %v1012
    %1014 = vmatprep.mubr.f32.mxu0 0.0
    %1015 = vmatmul.mubr.f32.gmra.mrb[0].mxu0 %v221
    %v1016 = vpop.f32.mrb[0].mxu0
    %v1017 = vadd.f32 %v382, %v1016
    %v1018 = vpop.f32.mrb[0].mxu0
    %v1019 = vadd.f32 %v386, %v1018
    %1020 = vmatprep.mubr.f32.mxu0 0.0
    %1021 = vmatmul.mubr.f32.gmra.mrb[0].mxu0 %v222
    %v1022 = vpop.f32.mrb[0].mxu0
    %v1023 = vadd.f32 %v382, %v1022
    %v1024 = vpop.f32.mrb[0].mxu0
    %v1025 = vadd.f32 %v386, %v1024
    %1026 = vmatprep.mubr.f32.mxu0 0.0
    %1027 = vmatmul.mubr.f32.gmra.mrb[0].mxu0 %v223
    %v1028 = vpop.f32.mrb[0].mxu0
    %v1029 = vadd.f32 %v382, %v1028
    %v1030 = vpop.f32.mrb[0].mxu0
    %v1031 = vadd.f32 %v386, %v1030
    %1032 = vmatprep.mubr.f32.mxu0 0.0
    %1033 = vmatmul.mubr.f32.gmra.mrb[0].mxu0 %v224
    %v1034 = vpop.f32.mrb[0].mxu0
    %v1035 = vadd.f32 %v382, %v1034
    %v1036 = vpop.f32.mrb[0].mxu0
    %v1037 = vadd.f32 %v386, %v1036
    %1038 = vdwg.mxu0
    %v1039 = vmax.f32 %v462, 0.0
    %v1040 = vmax.f32 %v464, 0.0
    %v1041 = vmax.f32 %v623, 0.0
    %v1042 = vmax.f32 %v625, 0.0
    %v1043 = vmax.f32 %v784, 0.0
    %v1044 = vmax.f32 %v786, 0.0
    %v1045 = vmax.f32 %v945, 0.0
    %v1046 = vmax.f32 %v947, 0.0
    %v1047 = vmax.f32 %v468, 0.0
    %v1048 = vmax.f32 %v470, 0.0
    %v1049 = vmax.f32 %v629, 0.0
    %v1050 = vmax.f32 %v631, 0.0
    %v1051 = vmax.f32 %v790, 0.0
    %v1052 = vmax.f32 %v792, 0.0
    %v1053 = vmax.f32 %v951, 0.0
    %v1054 = vmax.f32 %v953, 0.0
    %v1055 = vmax.f32 %v474, 0.0
    %v1056 = vmax.f32 %v476, 0.0
    %v1057 = vmax.f32 %v635, 0.0
    %v1058 = vmax.f32 %v637, 0.0
    %v1059 = vmax.f32 %v796, 0.0
    %v1060 = vmax.f32 %v798, 0.0
    %v1061 = vmax.f32 %v957, 0.0
    %v1062 = vmax.f32 %v959, 0.0
    %v1063 = vmax.f32 %v480, 0.0
    %v1064 = vmax.f32 %v482, 0.0
    %v1065 = vmax.f32 %v641, 0.0
    %v1066 = vmax.f32 %v643, 0.0
    %v1067 = vmax.f32 %v802, 0.0
    %v1068 = vmax.f32 %v804, 0.0
    %v1069 = vmax.f32 %v963, 0.0
    %v1070 = vmax.f32 %v965, 0.0
    %v1071 = vmax.f32 %v486, 0.0
    %v1072 = vmax.f32 %v488, 0.0
    %v1073 = vmax.f32 %v647, 0.0
    %v1074 = vmax.f32 %v649, 0.0
    %v1075 = vmax.f32 %v808, 0.0
    %v1076 = vmax.f32 %v810, 0.0
    %v1077 = vmax.f32 %v969, 0.0
    %v1078 = vmax.f32 %v971, 0.0
    %v1079 = vmax.f32 %v492, 0.0
    %v1080 = vmax.f32 %v494, 0.0
    %v1081 = vmax.f32 %v653, 0.0
    %v1082 = vmax.f32 %v655, 0.0
    %v1083 = vmax.f32 %v814, 0.0
    %v1084 = vmax.f32 %v816, 0.0
    %v1085 = vmax.f32 %v975, 0.0
    %v1086 = vmax.f32 %v977, 0.0
    %v1087 = vmax.f32 %v498, 0.0
    %v1088 = vmax.f32 %v500, 0.0
    %v1089 = vmax.f32 %v659, 0.0
    %v1090 = vmax.f32 %v661, 0.0
    %v1091 = vmax.f32 %v820, 0.0
    %v1092 = vmax.f32 %v822, 0.0
    %v1093 = vmax.f32 %v981, 0.0
    %v1094 = vmax.f32 %v983, 0.0
    %v1095 = vmax.f32 %v504, 0.0
    %v1096 = vmax.f32 %v506, 0.0
    %v1097 = vmax.f32 %v665, 0.0
    %v1098 = vmax.f32 %v667, 0.0
    %v1099 = vmax.f32 %v826, 0.0
    %v1100 = vmax.f32 %v828, 0.0
    %v1101 = vmax.f32 %v987, 0.0
    %v1102 = vmax.f32 %v989, 0.0
    %v1103 = vmax.f32 %v510, 0.0
    %v1104 = vmax.f32 %v512, 0.0
    %v1105 = vmax.f32 %v671, 0.0
    %v1106 = vmax.f32 %v673, 0.0
    %v1107 = vmax.f32 %v832, 0.0
    %v1108 = vmax.f32 %v834, 0.0
    %v1109 = vmax.f32 %v993, 0.0
    %v1110 = vmax.f32 %v995, 0.0
    %v1111 = vmax.f32 %v516, 0.0
    %v1112 = vmax.f32 %v518, 0.0
    %v1113 = vmax.f32 %v677, 0.0
    %v1114 = vmax.f32 %v679, 0.0
    %v1115 = vmax.f32 %v838, 0.0
    %v1116 = vmax.f32 %v840, 0.0
    %v1117 = vmax.f32 %v999, 0.0
    %v1118 = vmax.f32 %v1001, 0.0
    %v1119 = vmax.f32 %v522, 0.0
    %v1120 = vmax.f32 %v524, 0.0
    %v1121 = vmax.f32 %v683, 0.0
    %v1122 = vmax.f32 %v685, 0.0
    %v1123 = vmax.f32 %v844, 0.0
    %v1124 = vmax.f32 %v846, 0.0
    %v1125 = vmax.f32 %v1005, 0.0
    %v1126 = vmax.f32 %v1007, 0.0
    %v1127 = vmax.f32 %v528, 0.0
    %v1128 = vmax.f32 %v530, 0.0
    %v1129 = vmax.f32 %v689, 0.0
    %v1130 = vmax.f32 %v691, 0.0
    %v1131 = vmax.f32 %v850, 0.0
    %v1132 = vmax.f32 %v852, 0.0
    %v1133 = vmax.f32 %v1011, 0.0
    %v1134 = vmax.f32 %v1013, 0.0
    %v1135 = vmax.f32 %v534, 0.0
    %v1136 = vmax.f32 %v536, 0.0
    %v1137 = vmax.f32 %v695, 0.0
    %v1138 = vmax.f32 %v697, 0.0
    %v1139 = vmax.f32 %v856, 0.0
    %v1140 = vmax.f32 %v858, 0.0
    %v1141 = vmax.f32 %v1017, 0.0
    %v1142 = vmax.f32 %v1019, 0.0
    %v1143 = vmax.f32 %v540, 0.0
    %v1144 = vmax.f32 %v542, 0.0
    %v1145 = vmax.f32 %v701, 0.0
    %v1146 = vmax.f32 %v703, 0.0
    %v1147 = vmax.f32 %v862, 0.0
    %v1148 = vmax.f32 %v864, 0.0
    %v1149 = vmax.f32 %v1023, 0.0
    %v1150 = vmax.f32 %v1025, 0.0
    %v1151 = vmax.f32 %v546, 0.0
    %v1152 = vmax.f32 %v548, 0.0
    %v1153 = vmax.f32 %v707, 0.0
    %v1154 = vmax.f32 %v709, 0.0
    %v1155 = vmax.f32 %v868, 0.0
    %v1156 = vmax.f32 %v870, 0.0
    %v1157 = vmax.f32 %v1029, 0.0
    %v1158 = vmax.f32 %v1031, 0.0
    %v1159 = vmax.f32 %v552, 0.0
    %v1160 = vmax.f32 %v554, 0.0
    %v1161 = vmax.f32 %v713, 0.0
    %v1162 = vmax.f32 %v715, 0.0
    %v1163 = vmax.f32 %v874, 0.0
    %v1164 = vmax.f32 %v876, 0.0
    %v1165 = vmax.f32 %v1035, 0.0
    %v1166 = vmax.f32 %v1037, 0.0
    %v1167 = vld [vmem:[#allocation8] sm:$0xff]
    %v1168 = vld [vmem:[#allocation8 + $0x8] sm:$0xff]
    %v1169 = vld [vmem:[#allocation8 + $0x10] sm:$0xff]
    %v1170 = vld [vmem:[#allocation8 + $0x18] sm:$0xff]
    %v1171 = vld [vmem:[#allocation8 + $0x20] sm:$0xff]
    %v1172 = vld [vmem:[#allocation8 + $0x28] sm:$0xff]
    %v1173 = vld [vmem:[#allocation8 + $0x30] sm:$0xff]
    %v1174 = vld [vmem:[#allocation8 + $0x38] sm:$0xff]
    %v1175 = vld [vmem:[#allocation8 + $0x40] sm:$0xff]
    %v1176 = vld [vmem:[#allocation8 + $0x48] sm:$0xff]
    %v1177 = vld [vmem:[#allocation8 + $0x50] sm:$0xff]
    %v1178 = vld [vmem:[#allocation8 + $0x58] sm:$0xff]
    %v1179 = vld [vmem:[#allocation8 + $0x60] sm:$0xff]
    %v1180 = vld [vmem:[#allocation8 + $0x68] sm:$0xff]
    %v1181 = vld [vmem:[#allocation8 + $0x70] sm:$0xff]
    %v1182 = vld [vmem:[#allocation8 + $0x78] sm:$0xff]
    %v1183 = vld [vmem:[#allocation8 + $0x80] sm:$0xff]
    %v1184 = vld [vmem:[#allocation8 + $0x88] sm:$0xff]
    %v1185 = vld [vmem:[#allocation8 + $0x90] sm:$0xff]
    %v1186 = vld [vmem:[#allocation8 + $0x98] sm:$0xff]
    %v1187 = vld [vmem:[#allocation8 + $0xa0] sm:$0xff]
    %v1188 = vld [vmem:[#allocation8 + $0xa8] sm:$0xff]
    %v1189 = vld [vmem:[#allocation8 + $0xb0] sm:$0xff]
    %v1190 = vld [vmem:[#allocation8 + $0xb8] sm:$0xff]
    %v1191 = vld [vmem:[#allocation8 + $0xc0] sm:$0xff]
    %v1192 = vld [vmem:[#allocation8 + $0xc8] sm:$0xff]
    %v1193 = vld [vmem:[#allocation8 + $0xd0] sm:$0xff]
    %v1194 = vld [vmem:[#allocation8 + $0xd8] sm:$0xff]
    %v1195 = vld [vmem:[#allocation8 + $0xe0] sm:$0xff]
    %v1196 = vld [vmem:[#allocation8 + $0xe8] sm:$0xff]
    %v1197 = vld [vmem:[#allocation8 + $0xf0] sm:$0xff]
    %v1198 = vld [vmem:[#allocation8 + $0xf8] sm:$0xff]
    %v1199 = vld [vmem:[#allocation8 + $0x100] sm:$0xff]
    %v1200 = vld [vmem:[#allocation8 + $0x108] sm:$0xff]
    %v1201 = vld [vmem:[#allocation8 + $0x110] sm:$0xff]
    %v1202 = vld [vmem:[#allocation8 + $0x118] sm:$0xff]
    %v1203 = vld [vmem:[#allocation8 + $0x120] sm:$0xff]
    %v1204 = vld [vmem:[#allocation8 + $0x128] sm:$0xff]
    %v1205 = vld [vmem:[#allocation8 + $0x130] sm:$0xff]
    %v1206 = vld [vmem:[#allocation8 + $0x138] sm:$0xff]
    %v1207 = vld [vmem:[#allocation8 + $0x140] sm:$0xff]
    %v1208 = vld [vmem:[#allocation8 + $0x148] sm:$0xff]
    %v1209 = vld [vmem:[#allocation8 + $0x150] sm:$0xff]
    %v1210 = vld [vmem:[#allocation8 + $0x158] sm:$0xff]
    %v1211 = vld [vmem:[#allocation8 + $0x160] sm:$0xff]
    %v1212 = vld [vmem:[#allocation8 + $0x168] sm:$0xff]
    %v1213 = vld [vmem:[#allocation8 + $0x170] sm:$0xff]
    %v1214 = vld [vmem:[#allocation8 + $0x178] sm:$0xff]
    %v1215 = vld [vmem:[#allocation8 + $0x180] sm:$0xff]
    %v1216 = vld [vmem:[#allocation8 + $0x188] sm:$0xff]
    %v1217 = vld [vmem:[#allocation8 + $0x190] sm:$0xff]
    %v1218 = vld [vmem:[#allocation8 + $0x198] sm:$0xff]
    %v1219 = vld [vmem:[#allocation8 + $0x1a0] sm:$0xff]
    %v1220 = vld [vmem:[#allocation8 + $0x1a8] sm:$0xff]
    %v1221 = vld [vmem:[#allocation8 + $0x1b0] sm:$0xff]
    %v1222 = vld [vmem:[#allocation8 + $0x1b8] sm:$0xff]
    %v1223 = vld [vmem:[#allocation8 + $0x1c0] sm:$0xff]
    %v1224 = vld [vmem:[#allocation8 + $0x1c8] sm:$0xff]
    %v1225 = vld [vmem:[#allocation8 + $0x1d0] sm:$0xff]
    %v1226 = vld [vmem:[#allocation8 + $0x1d8] sm:$0xff]
    %v1227 = vld [vmem:[#allocation8 + $0x1e0] sm:$0xff]
    %v1228 = vld [vmem:[#allocation8 + $0x1e8] sm:$0xff]
    %v1229 = vld [vmem:[#allocation8 + $0x1f0] sm:$0xff]
    %v1230 = vld [vmem:[#allocation8 + $0x1f8] sm:$0xff]
    %v1231 = vld [vmem:[#allocation8 + $0x200] sm:$0xff]
    %v1232 = vld [vmem:[#allocation8 + $0x208] sm:$0xff]
    %v1233 = vld [vmem:[#allocation8 + $0x210] sm:$0xff]
    %v1234 = vld [vmem:[#allocation8 + $0x218] sm:$0xff]
    %v1235 = vld [vmem:[#allocation8 + $0x220] sm:$0xff]
    %v1236 = vld [vmem:[#allocation8 + $0x228] sm:$0xff]
    %v1237 = vld [vmem:[#allocation8 + $0x230] sm:$0xff]
    %v1238 = vld [vmem:[#allocation8 + $0x238] sm:$0xff]
    %v1239 = vld [vmem:[#allocation8 + $0x240] sm:$0xff]
    %v1240 = vld [vmem:[#allocation8 + $0x248] sm:$0xff]
    %v1241 = vld [vmem:[#allocation8 + $0x250] sm:$0xff]
    %v1242 = vld [vmem:[#allocation8 + $0x258] sm:$0xff]
    %v1243 = vld [vmem:[#allocation8 + $0x260] sm:$0xff]
    %v1244 = vld [vmem:[#allocation8 + $0x268] sm:$0xff]
    %v1245 = vld [vmem:[#allocation8 + $0x270] sm:$0xff]
    %v1246 = vld [vmem:[#allocation8 + $0x278] sm:$0xff]
    %v1247 = vld [vmem:[#allocation8 + $0x280] sm:$0xff]
    %v1248 = vld [vmem:[#allocation8 + $0x288] sm:$0xff]
    %v1249 = vld [vmem:[#allocation8 + $0x290] sm:$0xff]
    %v1250 = vld [vmem:[#allocation8 + $0x298] sm:$0xff]
    %v1251 = vld [vmem:[#allocation8 + $0x2a0] sm:$0xff]
    %v1252 = vld [vmem:[#allocation8 + $0x2a8] sm:$0xff]
    %v1253 = vld [vmem:[#allocation8 + $0x2b0] sm:$0xff]
    %v1254 = vld [vmem:[#allocation8 + $0x2b8] sm:$0xff]
    %v1255 = vld [vmem:[#allocation8 + $0x2c0] sm:$0xff]
    %v1256 = vld [vmem:[#allocation8 + $0x2c8] sm:$0xff]
    %v1257 = vld [vmem:[#allocation8 + $0x2d0] sm:$0xff]
    %v1258 = vld [vmem:[#allocation8 + $0x2d8] sm:$0xff]
    %v1259 = vld [vmem:[#allocation8 + $0x2e0] sm:$0xff]
    %v1260 = vld [vmem:[#allocation8 + $0x2e8] sm:$0xff]
    %v1261 = vld [vmem:[#allocation8 + $0x2f0] sm:$0xff]
    %v1262 = vld [vmem:[#allocation8 + $0x2f8] sm:$0xff]
    %v1263 = vld [vmem:[#allocation8 + $0x300] sm:$0xff]
    %v1264 = vld [vmem:[#allocation8 + $0x308] sm:$0xff]
    %v1265 = vld [vmem:[#allocation8 + $0x310] sm:$0xff]
    %v1266 = vld [vmem:[#allocation8 + $0x318] sm:$0xff]
    %v1267 = vld [vmem:[#allocation8 + $0x320] sm:$0xff]
    %v1268 = vld [vmem:[#allocation8 + $0x328] sm:$0xff]
    %v1269 = vld [vmem:[#allocation8 + $0x330] sm:$0xff]
    %v1270 = vld [vmem:[#allocation8 + $0x338] sm:$0xff]
    %v1271 = vld [vmem:[#allocation8 + $0x340] sm:$0xff]
    %v1272 = vld [vmem:[#allocation8 + $0x348] sm:$0xff]
    %v1273 = vld [vmem:[#allocation8 + $0x350] sm:$0xff]
    %v1274 = vld [vmem:[#allocation8 + $0x358] sm:$0xff]
    %v1275 = vld [vmem:[#allocation8 + $0x360] sm:$0xff]
    %v1276 = vld [vmem:[#allocation8 + $0x368] sm:$0xff]
    %v1277 = vld [vmem:[#allocation8 + $0x370] sm:$0xff]
    %v1278 = vld [vmem:[#allocation8 + $0x378] sm:$0xff]
    %v1279 = vld [vmem:[#allocation8 + $0x380] sm:$0xff]
    %v1280 = vld [vmem:[#allocation8 + $0x388] sm:$0xff]
    %v1281 = vld [vmem:[#allocation8 + $0x390] sm:$0xff]
    %v1282 = vld [vmem:[#allocation8 + $0x398] sm:$0xff]
    %v1283 = vld [vmem:[#allocation8 + $0x3a0] sm:$0xff]
    %v1284 = vld [vmem:[#allocation8 + $0x3a8] sm:$0xff]
    %v1285 = vld [vmem:[#allocation8 + $0x3b0] sm:$0xff]
    %v1286 = vld [vmem:[#allocation8 + $0x3b8] sm:$0xff]
    %v1287 = vld [vmem:[#allocation8 + $0x3c0] sm:$0xff]
    %v1288 = vld [vmem:[#allocation8 + $0x3c8] sm:$0xff]
    %v1289 = vld [vmem:[#allocation8 + $0x3d0] sm:$0xff]
    %v1290 = vld [vmem:[#allocation8 + $0x3d8] sm:$0xff]
    %v1291 = vld [vmem:[#allocation8 + $0x3e0] sm:$0xff]
    %v1292 = vld [vmem:[#allocation8 + $0x3e8] sm:$0xff]
    %v1293 = vld [vmem:[#allocation8 + $0x3f0] sm:$0xff]
    %v1294 = vld [vmem:[#allocation8 + $0x3f8] sm:$0xff]
    %v1295 = vld [vmem:[#allocation8 + $0x400] sm:$0xff]
    %v1296 = vld [vmem:[#allocation8 + $0x408] sm:$0xff]
    %v1297 = vld [vmem:[#allocation8 + $0x410] sm:$0xff]
    %v1298 = vld [vmem:[#allocation8 + $0x418] sm:$0xff]
    %v1299 = vld [vmem:[#allocation8 + $0x420] sm:$0xff]
    %v1300 = vld [vmem:[#allocation8 + $0x428] sm:$0xff]
    %v1301 = vld [vmem:[#allocation8 + $0x430] sm:$0xff]
    %v1302 = vld [vmem:[#allocation8 + $0x438] sm:$0xff]
    %v1303 = vld [vmem:[#allocation8 + $0x440] sm:$0xff]
    %v1304 = vld [vmem:[#allocation8 + $0x448] sm:$0xff]
    %v1305 = vld [vmem:[#allocation8 + $0x450] sm:$0xff]
    %v1306 = vld [vmem:[#allocation8 + $0x458] sm:$0xff]
    %v1307 = vld [vmem:[#allocation8 + $0x460] sm:$0xff]
    %v1308 = vld [vmem:[#allocation8 + $0x468] sm:$0xff]
    %v1309 = vld [vmem:[#allocation8 + $0x470] sm:$0xff]
    %v1310 = vld [vmem:[#allocation8 + $0x478] sm:$0xff]
    %v1311 = vld [vmem:[#allocation8 + $0x480] sm:$0xff]
    %v1312 = vld [vmem:[#allocation8 + $0x488] sm:$0xff]
    %v1313 = vld [vmem:[#allocation8 + $0x490] sm:$0xff]
    %v1314 = vld [vmem:[#allocation8 + $0x498] sm:$0xff]
    %v1315 = vld [vmem:[#allocation8 + $0x4a0] sm:$0xff]
    %v1316 = vld [vmem:[#allocation8 + $0x4a8] sm:$0xff]
    %v1317 = vld [vmem:[#allocation8 + $0x4b0] sm:$0xff]
    %v1318 = vld [vmem:[#allocation8 + $0x4b8] sm:$0xff]
    %v1319 = vld [vmem:[#allocation8 + $0x4c0] sm:$0xff]
    %v1320 = vld [vmem:[#allocation8 + $0x4c8] sm:$0xff]
    %v1321 = vld [vmem:[#allocation8 + $0x4d0] sm:$0xff]
    %v1322 = vld [vmem:[#allocation8 + $0x4d8] sm:$0xff]
    %v1323 = vld [vmem:[#allocation8 + $0x4e0] sm:$0xff]
    %v1324 = vld [vmem:[#allocation8 + $0x4e8] sm:$0xff]
    %v1325 = vld [vmem:[#allocation8 + $0x4f0] sm:$0xff]
    %v1326 = vld [vmem:[#allocation8 + $0x4f8] sm:$0xff]
    %v1327 = vld [vmem:[#allocation8 + $0x500] sm:$0xff]
    %v1328 = vld [vmem:[#allocation8 + $0x508] sm:$0xff]
    %v1329 = vld [vmem:[#allocation8 + $0x510] sm:$0xff]
    %v1330 = vld [vmem:[#allocation8 + $0x518] sm:$0xff]
    %v1331 = vld [vmem:[#allocation8 + $0x520] sm:$0xff]
    %v1332 = vld [vmem:[#allocation8 + $0x528] sm:$0xff]
    %v1333 = vld [vmem:[#allocation8 + $0x530] sm:$0xff]
    %v1334 = vld [vmem:[#allocation8 + $0x538] sm:$0xff]
    %v1335 = vld [vmem:[#allocation8 + $0x540] sm:$0xff]
    %v1336 = vld [vmem:[#allocation8 + $0x548] sm:$0xff]
    %v1337 = vld [vmem:[#allocation8 + $0x550] sm:$0xff]
    %v1338 = vld [vmem:[#allocation8 + $0x558] sm:$0xff]
    %v1339 = vld [vmem:[#allocation8 + $0x560] sm:$0xff]
    %v1340 = vld [vmem:[#allocation8 + $0x568] sm:$0xff]
    %v1341 = vld [vmem:[#allocation8 + $0x570] sm:$0xff]
    %v1342 = vld [vmem:[#allocation8 + $0x578] sm:$0xff]
    %v1343 = vld [vmem:[#allocation8 + $0x580] sm:$0xff]
    %v1344 = vld [vmem:[#allocation8 + $0x588] sm:$0xff]
    %v1345 = vld [vmem:[#allocation8 + $0x590] sm:$0xff]
    %v1346 = vld [vmem:[#allocation8 + $0x598] sm:$0xff]
    %v1347 = vld [vmem:[#allocation8 + $0x5a0] sm:$0xff]
    %v1348 = vld [vmem:[#allocation8 + $0x5a8] sm:$0xff]
    %v1349 = vld [vmem:[#allocation8 + $0x5b0] sm:$0xff]
    %v1350 = vld [vmem:[#allocation8 + $0x5b8] sm:$0xff]
    %v1351 = vld [vmem:[#allocation8 + $0x5c0] sm:$0xff]
    %v1352 = vld [vmem:[#allocation8 + $0x5c8] sm:$0xff]
    %v1353 = vld [vmem:[#allocation8 + $0x5d0] sm:$0xff]
    %v1354 = vld [vmem:[#allocation8 + $0x5d8] sm:$0xff]
    %v1355 = vld [vmem:[#allocation8 + $0x5e0] sm:$0xff]
    %v1356 = vld [vmem:[#allocation8 + $0x5e8] sm:$0xff]
    %v1357 = vld [vmem:[#allocation8 + $0x5f0] sm:$0xff]
    %v1358 = vld [vmem:[#allocation8 + $0x5f8] sm:$0xff]
    %v1359 = vld [vmem:[#allocation8 + $0x600] sm:$0xff]
    %v1360 = vld [vmem:[#allocation8 + $0x608] sm:$0xff]
    %v1361 = vld [vmem:[#allocation8 + $0x610] sm:$0xff]
    %v1362 = vld [vmem:[#allocation8 + $0x618] sm:$0xff]
    %v1363 = vld [vmem:[#allocation8 + $0x620] sm:$0xff]
    %v1364 = vld [vmem:[#allocation8 + $0x628] sm:$0xff]
    %v1365 = vld [vmem:[#allocation8 + $0x630] sm:$0xff]
    %v1366 = vld [vmem:[#allocation8 + $0x638] sm:$0xff]
    %v1367 = vld [vmem:[#allocation8 + $0x640] sm:$0xff]
    %v1368 = vld [vmem:[#allocation8 + $0x648] sm:$0xff]
    %v1369 = vld [vmem:[#allocation8 + $0x650] sm:$0xff]
    %v1370 = vld [vmem:[#allocation8 + $0x658] sm:$0xff]
    %v1371 = vld [vmem:[#allocation8 + $0x660] sm:$0xff]
    %v1372 = vld [vmem:[#allocation8 + $0x668] sm:$0xff]
    %v1373 = vld [vmem:[#allocation8 + $0x670] sm:$0xff]
    %v1374 = vld [vmem:[#allocation8 + $0x678] sm:$0xff]
    %v1375 = vld [vmem:[#allocation8 + $0x680] sm:$0xff]
    %v1376 = vld [vmem:[#allocation8 + $0x688] sm:$0xff]
    %v1377 = vld [vmem:[#allocation8 + $0x690] sm:$0xff]
    %v1378 = vld [vmem:[#allocation8 + $0x698] sm:$0xff]
    %v1379 = vld [vmem:[#allocation8 + $0x6a0] sm:$0xff]
    %v1380 = vld [vmem:[#allocation8 + $0x6a8] sm:$0xff]
    %v1381 = vld [vmem:[#allocation8 + $0x6b0] sm:$0xff]
    %v1382 = vld [vmem:[#allocation8 + $0x6b8] sm:$0xff]
    %v1383 = vld [vmem:[#allocation8 + $0x6c0] sm:$0xff]
    %v1384 = vld [vmem:[#allocation8 + $0x6c8] sm:$0xff]
    %v1385 = vld [vmem:[#allocation8 + $0x6d0] sm:$0xff]
    %v1386 = vld [vmem:[#allocation8 + $0x6d8] sm:$0xff]
    %v1387 = vld [vmem:[#allocation8 + $0x6e0] sm:$0xff]
    %v1388 = vld [vmem:[#allocation8 + $0x6e8] sm:$0xff]
    %v1389 = vld [vmem:[#allocation8 + $0x6f0] sm:$0xff]
    %v1390 = vld [vmem:[#allocation8 + $0x6f8] sm:$0xff]
    %v1391 = vld [vmem:[#allocation8 + $0x700] sm:$0xff]
    %v1392 = vld [vmem:[#allocation8 + $0x708] sm:$0xff]
    %v1393 = vld [vmem:[#allocation8 + $0x710] sm:$0xff]
    %v1394 = vld [vmem:[#allocation8 + $0x718] sm:$0xff]
    %v1395 = vld [vmem:[#allocation8 + $0x720] sm:$0xff]
    %v1396 = vld [vmem:[#allocation8 + $0x728] sm:$0xff]
    %v1397 = vld [vmem:[#allocation8 + $0x730] sm:$0xff]
    %v1398 = vld [vmem:[#allocation8 + $0x738] sm:$0xff]
    %v1399 = vld [vmem:[#allocation8 + $0x740] sm:$0xff]
    %v1400 = vld [vmem:[#allocation8 + $0x748] sm:$0xff]
    %v1401 = vld [vmem:[#allocation8 + $0x750] sm:$0xff]
    %v1402 = vld [vmem:[#allocation8 + $0x758] sm:$0xff]
    %v1403 = vld [vmem:[#allocation8 + $0x760] sm:$0xff]
    %v1404 = vld [vmem:[#allocation8 + $0x768] sm:$0xff]
    %v1405 = vld [vmem:[#allocation8 + $0x770] sm:$0xff]
    %v1406 = vld [vmem:[#allocation8 + $0x778] sm:$0xff]
    %v1407 = vld [vmem:[#allocation8 + $0x780] sm:$0xff]
    %v1408 = vld [vmem:[#allocation8 + $0x788] sm:$0xff]
    %v1409 = vld [vmem:[#allocation8 + $0x790] sm:$0xff]
    %v1410 = vld [vmem:[#allocation8 + $0x798] sm:$0xff]
    %v1411 = vld [vmem:[#allocation8 + $0x7a0] sm:$0xff]
    %v1412 = vld [vmem:[#allocation8 + $0x7a8] sm:$0xff]
    %v1413 = vld [vmem:[#allocation8 + $0x7b0] sm:$0xff]
    %v1414 = vld [vmem:[#allocation8 + $0x7b8] sm:$0xff]
    %v1415 = vld [vmem:[#allocation8 + $0x7c0] sm:$0xff]
    %v1416 = vld [vmem:[#allocation8 + $0x7c8] sm:$0xff]
    %v1417 = vld [vmem:[#allocation8 + $0x7d0] sm:$0xff]
    %v1418 = vld [vmem:[#allocation8 + $0x7d8] sm:$0xff]
    %v1419 = vld [vmem:[#allocation8 + $0x7e0] sm:$0xff]
    %v1420 = vld [vmem:[#allocation8 + $0x7e8] sm:$0xff]
    %v1421 = vld [vmem:[#allocation8 + $0x7f0] sm:$0xff]
    %v1422 = vld [vmem:[#allocation8 + $0x7f8] sm:$0xff]
    %v1423 = vld [vmem:[#allocation8 + $0x800] sm:$0xff]
    %v1424 = vld [vmem:[#allocation8 + $0x808] sm:$0xff]
    %v1425 = vld [vmem:[#allocation8 + $0x810] sm:$0xff]
    %v1426 = vld [vmem:[#allocation8 + $0x818] sm:$0xff]
    %v1427 = vld [vmem:[#allocation8 + $0x820] sm:$0xff]
    %v1428 = vld [vmem:[#allocation8 + $0x828] sm:$0xff]
    %v1429 = vld [vmem:[#allocation8 + $0x830] sm:$0xff]
    %v1430 = vld [vmem:[#allocation8 + $0x838] sm:$0xff]
    %v1431 = vld [vmem:[#allocation8 + $0x840] sm:$0xff]
    %v1432 = vld [vmem:[#allocation8 + $0x848] sm:$0xff]
    %v1433 = vld [vmem:[#allocation8 + $0x850] sm:$0xff]
    %v1434 = vld [vmem:[#allocation8 + $0x858] sm:$0xff]
    %v1435 = vld [vmem:[#allocation8 + $0x860] sm:$0xff]
    %v1436 = vld [vmem:[#allocation8 + $0x868] sm:$0xff]
    %v1437 = vld [vmem:[#allocation8 + $0x870] sm:$0xff]
    %v1438 = vld [vmem:[#allocation8 + $0x878] sm:$0xff]
    %v1439 = vld [vmem:[#allocation8 + $0x880] sm:$0xff]
    %v1440 = vld [vmem:[#allocation8 + $0x888] sm:$0xff]
    %v1441 = vld [vmem:[#allocation8 + $0x890] sm:$0xff]
    %v1442 = vld [vmem:[#allocation8 + $0x898] sm:$0xff]
    %v1443 = vld [vmem:[#allocation8 + $0x8a0] sm:$0xff]
    %v1444 = vld [vmem:[#allocation8 + $0x8a8] sm:$0xff]
    %v1445 = vld [vmem:[#allocation8 + $0x8b0] sm:$0xff]
    %v1446 = vld [vmem:[#allocation8 + $0x8b8] sm:$0xff]
    %v1447 = vld [vmem:[#allocation8 + $0x8c0] sm:$0xff]
    %v1448 = vld [vmem:[#allocation8 + $0x8c8] sm:$0xff]
    %v1449 = vld [vmem:[#allocation8 + $0x8d0] sm:$0xff]
    %v1450 = vld [vmem:[#allocation8 + $0x8d8] sm:$0xff]
    %v1451 = vld [vmem:[#allocation8 + $0x8e0] sm:$0xff]
    %v1452 = vld [vmem:[#allocation8 + $0x8e8] sm:$0xff]
    %v1453 = vld [vmem:[#allocation8 + $0x8f0] sm:$0xff]
    %v1454 = vld [vmem:[#allocation8 + $0x8f8] sm:$0xff]
    %v1455 = vld [vmem:[#allocation8 + $0x900] sm:$0xff]
    %v1456 = vld [vmem:[#allocation8 + $0x908] sm:$0xff]
    %v1457 = vld [vmem:[#allocation8 + $0x910] sm:$0xff]
    %v1458 = vld [vmem:[#allocation8 + $0x918] sm:$0xff]
    %v1459 = vld [vmem:[#allocation8 + $0x920] sm:$0xff]
    %v1460 = vld [vmem:[#allocation8 + $0x928] sm:$0xff]
    %v1461 = vld [vmem:[#allocation8 + $0x930] sm:$0xff]
    %v1462 = vld [vmem:[#allocation8 + $0x938] sm:$0xff]
    %v1463 = vld [vmem:[#allocation8 + $0x940] sm:$0xff]
    %v1464 = vld [vmem:[#allocation8 + $0x948] sm:$0xff]
    %v1465 = vld [vmem:[#allocation8 + $0x950] sm:$0xff]
    %v1466 = vld [vmem:[#allocation8 + $0x958] sm:$0xff]
    %v1467 = vld [vmem:[#allocation8 + $0x960] sm:$0xff]
    %v1468 = vld [vmem:[#allocation8 + $0x968] sm:$0xff]
    %v1469 = vld [vmem:[#allocation8 + $0x970] sm:$0xff]
    %v1470 = vld [vmem:[#allocation8 + $0x978] sm:$0xff]
    %v1471 = vld [vmem:[#allocation8 + $0x980] sm:$0xff]
    %v1472 = vld [vmem:[#allocation8 + $0x988] sm:$0xff]
    %v1473 = vld [vmem:[#allocation8 + $0x990] sm:$0xff]
    %v1474 = vld [vmem:[#allocation8 + $0x998] sm:$0xff]
    %v1475 = vld [vmem:[#allocation8 + $0x9a0] sm:$0xff]
    %v1476 = vld [vmem:[#allocation8 + $0x9a8] sm:$0xff]
    %v1477 = vld [vmem:[#allocation8 + $0x9b0] sm:$0xff]
    %v1478 = vld [vmem:[#allocation8 + $0x9b8] sm:$0xff]
    %v1479 = vld [vmem:[#allocation8 + $0x9c0] sm:$0xff]
    %v1480 = vld [vmem:[#allocation8 + $0x9c8] sm:$0xff]
    %v1481 = vld [vmem:[#allocation8 + $0x9d0] sm:$0xff]
    %v1482 = vld [vmem:[#allocation8 + $0x9d8] sm:$0xff]
    %v1483 = vld [vmem:[#allocation8 + $0x9e0] sm:$0xff]
    %v1484 = vld [vmem:[#allocation8 + $0x9e8] sm:$0xff]
    %v1485 = vld [vmem:[#allocation8 + $0x9f0] sm:$0xff]
    %v1486 = vld [vmem:[#allocation8 + $0x9f8] sm:$0xff]
    %v1487 = vld [vmem:[#allocation8 + $0xa00] sm:$0xff]
    %v1488 = vld [vmem:[#allocation8 + $0xa08] sm:$0xff]
    %v1489 = vld [vmem:[#allocation8 + $0xa10] sm:$0xff]
    %v1490 = vld [vmem:[#allocation8 + $0xa18] sm:$0xff]
    %v1491 = vld [vmem:[#allocation8 + $0xa20] sm:$0xff]
    %v1492 = vld [vmem:[#allocation8 + $0xa28] sm:$0xff]
    %v1493 = vld [vmem:[#allocation8 + $0xa30] sm:$0xff]
    %v1494 = vld [vmem:[#allocation8 + $0xa38] sm:$0xff]
    %v1495 = vld [vmem:[#allocation8 + $0xa40] sm:$0xff]
    %v1496 = vld [vmem:[#allocation8 + $0xa48] sm:$0xff]
    %v1497 = vld [vmem:[#allocation8 + $0xa50] sm:$0xff]
    %v1498 = vld [vmem:[#allocation8 + $0xa58] sm:$0xff]
    %v1499 = vld [vmem:[#allocation8 + $0xa60] sm:$0xff]
    %v1500 = vld [vmem:[#allocation8 + $0xa68] sm:$0xff]
    %v1501 = vld [vmem:[#allocation8 + $0xa70] sm:$0xff]
    %v1502 = vld [vmem:[#allocation8 + $0xa78] sm:$0xff]
    %v1503 = vld [vmem:[#allocation8 + $0xa80] sm:$0xff]
    %v1504 = vld [vmem:[#allocation8 + $0xa88] sm:$0xff]
    %v1505 = vld [vmem:[#allocation8 + $0xa90] sm:$0xff]
    %v1506 = vld [vmem:[#allocation8 + $0xa98] sm:$0xff]
    %v1507 = vld [vmem:[#allocation8 + $0xaa0] sm:$0xff]
    %v1508 = vld [vmem:[#allocation8 + $0xaa8] sm:$0xff]
    %v1509 = vld [vmem:[#allocation8 + $0xab0] sm:$0xff]
    %v1510 = vld [vmem:[#allocation8 + $0xab8] sm:$0xff]
    %v1511 = vld [vmem:[#allocation8 + $0xac0] sm:$0xff]
    %v1512 = vld [vmem:[#allocation8 + $0xac8] sm:$0xff]
    %v1513 = vld [vmem:[#allocation8 + $0xad0] sm:$0xff]
    %v1514 = vld [vmem:[#allocation8 + $0xad8] sm:$0xff]
    %v1515 = vld [vmem:[#allocation8 + $0xae0] sm:$0xff]
    %v1516 = vld [vmem:[#allocation8 + $0xae8] sm:$0xff]
    %v1517 = vld [vmem:[#allocation8 + $0xaf0] sm:$0xff]
    %v1518 = vld [vmem:[#allocation8 + $0xaf8] sm:$0xff]
    %v1519 = vld [vmem:[#allocation8 + $0xb00] sm:$0xff]
    %v1520 = vld [vmem:[#allocation8 + $0xb08] sm:$0xff]
    %v1521 = vld [vmem:[#allocation8 + $0xb10] sm:$0xff]
    %v1522 = vld [vmem:[#allocation8 + $0xb18] sm:$0xff]
    %v1523 = vld [vmem:[#allocation8 + $0xb20] sm:$0xff]
    %v1524 = vld [vmem:[#allocation8 + $0xb28] sm:$0xff]
    %v1525 = vld [vmem:[#allocation8 + $0xb30] sm:$0xff]
    %v1526 = vld [vmem:[#allocation8 + $0xb38] sm:$0xff]
    %v1527 = vld [vmem:[#allocation8 + $0xb40] sm:$0xff]
    %v1528 = vld [vmem:[#allocation8 + $0xb48] sm:$0xff]
    %v1529 = vld [vmem:[#allocation8 + $0xb50] sm:$0xff]
    %v1530 = vld [vmem:[#allocation8 + $0xb58] sm:$0xff]
    %v1531 = vld [vmem:[#allocation8 + $0xb60] sm:$0xff]
    %v1532 = vld [vmem:[#allocation8 + $0xb68] sm:$0xff]
    %v1533 = vld [vmem:[#allocation8 + $0xb70] sm:$0xff]
    %v1534 = vld [vmem:[#allocation8 + $0xb78] sm:$0xff]
    %v1535 = vld [vmem:[#allocation8 + $0xb80] sm:$0xff]
    %v1536 = vld [vmem:[#allocation8 + $0xb88] sm:$0xff]
    %v1537 = vld [vmem:[#allocation8 + $0xb90] sm:$0xff]
    %v1538 = vld [vmem:[#allocation8 + $0xb98] sm:$0xff]
    %v1539 = vld [vmem:[#allocation8 + $0xba0] sm:$0xff]
    %v1540 = vld [vmem:[#allocation8 + $0xba8] sm:$0xff]
    %v1541 = vld [vmem:[#allocation8 + $0xbb0] sm:$0xff]
    %v1542 = vld [vmem:[#allocation8 + $0xbb8] sm:$0xff]
    %v1543 = vld [vmem:[#allocation8 + $0xbc0] sm:$0xff]
    %v1544 = vld [vmem:[#allocation8 + $0xbc8] sm:$0xff]
    %v1545 = vld [vmem:[#allocation8 + $0xbd0] sm:$0xff]
    %v1546 = vld [vmem:[#allocation8 + $0xbd8] sm:$0xff]
    %v1547 = vld [vmem:[#allocation8 + $0xbe0] sm:$0xff]
    %v1548 = vld [vmem:[#allocation8 + $0xbe8] sm:$0xff]
    %v1549 = vld [vmem:[#allocation8 + $0xbf0] sm:$0xff]
    %v1550 = vld [vmem:[#allocation8 + $0xbf8] sm:$0xff]
    %v1551 = vld [vmem:[#allocation8 + $0xc00] sm:$0xff]
    %v1552 = vld [vmem:[#allocation8 + $0xc08] sm:$0xff]
    %v1553 = vld [vmem:[#allocation8 + $0xc10] sm:$0xff]
    %v1554 = vld [vmem:[#allocation8 + $0xc18] sm:$0xff]
    %v1555 = vld [vmem:[#allocation8 + $0xc20] sm:$0xff]
    %v1556 = vld [vmem:[#allocation8 + $0xc28] sm:$0xff]
    %v1557 = vld [vmem:[#allocation8 + $0xc30] sm:$0xff]
    %v1558 = vld [vmem:[#allocation8 + $0xc38] sm:$0xff]
    %v1559 = vld [vmem:[#allocation8 + $0xc40] sm:$0xff]
    %v1560 = vld [vmem:[#allocation8 + $0xc48] sm:$0xff]
    %v1561 = vld [vmem:[#allocation8 + $0xc50] sm:$0xff]
    %v1562 = vld [vmem:[#allocation8 + $0xc58] sm:$0xff]
    %v1563 = vld [vmem:[#allocation8 + $0xc60] sm:$0xff]
    %v1564 = vld [vmem:[#allocation8 + $0xc68] sm:$0xff]
    %v1565 = vld [vmem:[#allocation8 + $0xc70] sm:$0xff]
    %v1566 = vld [vmem:[#allocation8 + $0xc78] sm:$0xff]
    %v1567 = vld [vmem:[#allocation8 + $0xc80] sm:$0xff]
    %v1568 = vld [vmem:[#allocation8 + $0xc88] sm:$0xff]
    %v1569 = vld [vmem:[#allocation8 + $0xc90] sm:$0xff]
    %v1570 = vld [vmem:[#allocation8 + $0xc98] sm:$0xff]
    %v1571 = vld [vmem:[#allocation8 + $0xca0] sm:$0xff]
    %v1572 = vld [vmem:[#allocation8 + $0xca8] sm:$0xff]
    %v1573 = vld [vmem:[#allocation8 + $0xcb0] sm:$0xff]
    %v1574 = vld [vmem:[#allocation8 + $0xcb8] sm:$0xff]
    %v1575 = vld [vmem:[#allocation8 + $0xcc0] sm:$0xff]
    %v1576 = vld [vmem:[#allocation8 + $0xcc8] sm:$0xff]
    %v1577 = vld [vmem:[#allocation8 + $0xcd0] sm:$0xff]
    %v1578 = vld [vmem:[#allocation8 + $0xcd8] sm:$0xff]
    %v1579 = vld [vmem:[#allocation8 + $0xce0] sm:$0xff]
    %v1580 = vld [vmem:[#allocation8 + $0xce8] sm:$0xff]
    %v1581 = vld [vmem:[#allocation8 + $0xcf0] sm:$0xff]
    %v1582 = vld [vmem:[#allocation8 + $0xcf8] sm:$0xff]
    %v1583 = vld [vmem:[#allocation8 + $0xd00] sm:$0xff]
    %v1584 = vld [vmem:[#allocation8 + $0xd08] sm:$0xff]
    %v1585 = vld [vmem:[#allocation8 + $0xd10] sm:$0xff]
    %v1586 = vld [vmem:[#allocation8 + $0xd18] sm:$0xff]
    %v1587 = vld [vmem:[#allocation8 + $0xd20] sm:$0xff]
    %v1588 = vld [vmem:[#allocation8 + $0xd28] sm:$0xff]
    %v1589 = vld [vmem:[#allocation8 + $0xd30] sm:$0xff]
    %v1590 = vld [vmem:[#allocation8 + $0xd38] sm:$0xff]
    %v1591 = vld [vmem:[#allocation8 + $0xd40] sm:$0xff]
    %v1592 = vld [vmem:[#allocation8 + $0xd48] sm:$0xff]
    %v1593 = vld [vmem:[#allocation8 + $0xd50] sm:$0xff]
    %v1594 = vld [vmem:[#allocation8 + $0xd58] sm:$0xff]
    %v1595 = vld [vmem:[#allocation8 + $0xd60] sm:$0xff]
    %v1596 = vld [vmem:[#allocation8 + $0xd68] sm:$0xff]
    %v1597 = vld [vmem:[#allocation8 + $0xd70] sm:$0xff]
    %v1598 = vld [vmem:[#allocation8 + $0xd78] sm:$0xff]
    %v1599 = vld [vmem:[#allocation8 + $0xd80] sm:$0xff]
    %v1600 = vld [vmem:[#allocation8 + $0xd88] sm:$0xff]
    %v1601 = vld [vmem:[#allocation8 + $0xd90] sm:$0xff]
    %v1602 = vld [vmem:[#allocation8 + $0xd98] sm:$0xff]
    %v1603 = vld [vmem:[#allocation8 + $0xda0] sm:$0xff]
    %v1604 = vld [vmem:[#allocation8 + $0xda8] sm:$0xff]
    %v1605 = vld [vmem:[#allocation8 + $0xdb0] sm:$0xff]
    %v1606 = vld [vmem:[#allocation8 + $0xdb8] sm:$0xff]
    %v1607 = vld [vmem:[#allocation8 + $0xdc0] sm:$0xff]
    %v1608 = vld [vmem:[#allocation8 + $0xdc8] sm:$0xff]
    %v1609 = vld [vmem:[#allocation8 + $0xdd0] sm:$0xff]
    %v1610 = vld [vmem:[#allocation8 + $0xdd8] sm:$0xff]
    %v1611 = vld [vmem:[#allocation8 + $0xde0] sm:$0xff]
    %v1612 = vld [vmem:[#allocation8 + $0xde8] sm:$0xff]
    %v1613 = vld [vmem:[#allocation8 + $0xdf0] sm:$0xff]
    %v1614 = vld [vmem:[#allocation8 + $0xdf8] sm:$0xff]
    %v1615 = vld [vmem:[#allocation8 + $0xe00] sm:$0xff]
    %v1616 = vld [vmem:[#allocation8 + $0xe08] sm:$0xff]
    %v1617 = vld [vmem:[#allocation8 + $0xe10] sm:$0xff]
    %v1618 = vld [vmem:[#allocation8 + $0xe18] sm:$0xff]
    %v1619 = vld [vmem:[#allocation8 + $0xe20] sm:$0xff]
    %v1620 = vld [vmem:[#allocation8 + $0xe28] sm:$0xff]
    %v1621 = vld [vmem:[#allocation8 + $0xe30] sm:$0xff]
    %v1622 = vld [vmem:[#allocation8 + $0xe38] sm:$0xff]
    %v1623 = vld [vmem:[#allocation8 + $0xe40] sm:$0xff]
    %v1624 = vld [vmem:[#allocation8 + $0xe48] sm:$0xff]
    %v1625 = vld [vmem:[#allocation8 + $0xe50] sm:$0xff]
    %v1626 = vld [vmem:[#allocation8 + $0xe58] sm:$0xff]
    %v1627 = vld [vmem:[#allocation8 + $0xe60] sm:$0xff]
    %v1628 = vld [vmem:[#allocation8 + $0xe68] sm:$0xff]
    %v1629 = vld [vmem:[#allocation8 + $0xe70] sm:$0xff]
    %v1630 = vld [vmem:[#allocation8 + $0xe78] sm:$0xff]
    %v1631 = vld [vmem:[#allocation8 + $0xe80] sm:$0xff]
    %v1632 = vld [vmem:[#allocation8 + $0xe88] sm:$0xff]
    %v1633 = vld [vmem:[#allocation8 + $0xe90] sm:$0xff]
    %v1634 = vld [vmem:[#allocation8 + $0xe98] sm:$0xff]
    %v1635 = vld [vmem:[#allocation8 + $0xea0] sm:$0xff]
    %v1636 = vld [vmem:[#allocation8 + $0xea8] sm:$0xff]
    %v1637 = vld [vmem:[#allocation8 + $0xeb0] sm:$0xff]
    %v1638 = vld [vmem:[#allocation8 + $0xeb8] sm:$0xff]
    %v1639 = vld [vmem:[#allocation8 + $0xec0] sm:$0xff]
    %v1640 = vld [vmem:[#allocation8 + $0xec8] sm:$0xff]
    %v1641 = vld [vmem:[#allocation8 + $0xed0] sm:$0xff]
    %v1642 = vld [vmem:[#allocation8 + $0xed8] sm:$0xff]
    %v1643 = vld [vmem:[#allocation8 + $0xee0] sm:$0xff]
    %v1644 = vld [vmem:[#allocation8 + $0xee8] sm:$0xff]
    %v1645 = vld [vmem:[#allocation8 + $0xef0] sm:$0xff]
    %v1646 = vld [vmem:[#allocation8 + $0xef8] sm:$0xff]
    %v1647 = vld [vmem:[#allocation8 + $0xf00] sm:$0xff]
    %v1648 = vld [vmem:[#allocation8 + $0xf08] sm:$0xff]
    %v1649 = vld [vmem:[#allocation8 + $0xf10] sm:$0xff]
    %v1650 = vld [vmem:[#allocation8 + $0xf18] sm:$0xff]
    %v1651 = vld [vmem:[#allocation8 + $0xf20] sm:$0xff]
    %v1652 = vld [vmem:[#allocation8 + $0xf28] sm:$0xff]
    %v1653 = vld [vmem:[#allocation8 + $0xf30] sm:$0xff]
    %v1654 = vld [vmem:[#allocation8 + $0xf38] sm:$0xff]
    %v1655 = vld [vmem:[#allocation8 + $0xf40] sm:$0xff]
    %v1656 = vld [vmem:[#allocation8 + $0xf48] sm:$0xff]
    %v1657 = vld [vmem:[#allocation8 + $0xf50] sm:$0xff]
    %v1658 = vld [vmem:[#allocation8 + $0xf58] sm:$0xff]
    %v1659 = vld [vmem:[#allocation8 + $0xf60] sm:$0xff]
    %v1660 = vld [vmem:[#allocation8 + $0xf68] sm:$0xff]
    %v1661 = vld [vmem:[#allocation8 + $0xf70] sm:$0xff]
    %v1662 = vld [vmem:[#allocation8 + $0xf78] sm:$0xff]
    %v1663 = vld [vmem:[#allocation8 + $0xf80] sm:$0xff]
    %v1664 = vld [vmem:[#allocation8 + $0xf88] sm:$0xff]
    %v1665 = vld [vmem:[#allocation8 + $0xf90] sm:$0xff]
    %v1666 = vld [vmem:[#allocation8 + $0xf98] sm:$0xff]
    %v1667 = vld [vmem:[#allocation8 + $0xfa0] sm:$0xff]
    %v1668 = vld [vmem:[#allocation8 + $0xfa8] sm:$0xff]
    %v1669 = vld [vmem:[#allocation8 + $0xfb0] sm:$0xff]
    %v1670 = vld [vmem:[#allocation8 + $0xfb8] sm:$0xff]
    %v1671 = vld [vmem:[#allocation8 + $0xfc0] sm:$0xff]
    %v1672 = vld [vmem:[#allocation8 + $0xfc8] sm:$0xff]
    %v1673 = vld [vmem:[#allocation8 + $0xfd0] sm:$0xff]
    %v1674 = vld [vmem:[#allocation8 + $0xfd8] sm:$0xff]
    %v1675 = vld [vmem:[#allocation8 + $0xfe0] sm:$0xff]
    %v1676 = vld [vmem:[#allocation8 + $0xfe8] sm:$0xff]
    %v1677 = vld [vmem:[#allocation8 + $0xff0] sm:$0xff]
    %v1678 = vld [vmem:[#allocation8 + $0xff8] sm:$0xff]
    %v1679 = vld [vmem:[#allocation10] sm:$0xf]
    %v1681 = vlaneseq
    %v1682 = vshrl.u32 %v1681, 7
    %v1683 = vsub.s32 0, %v1682
    %v1684 = vrot.slane %v1679, %v1683
    %v1685 = vlaneseq
    %v1686 = vshrl.u32 %v1685, 7
    %v1687 = vsub.s32 1, %v1686
    %v1688 = vrot.slane %v1679, %v1687
    %v1689 = vlaneseq
    %v1690 = vshrl.u32 %v1689, 7
    %v1691 = vsub.s32 2, %v1690
    %v1692 = vrot.slane %v1679, %v1691
    %v1693 = vlaneseq
    %v1694 = vshrl.u32 %v1693, 7
    %v1695 = vsub.s32 3, %v1694
    %v1696 = vrot.slane %v1679, %v1695
    %1701 = vmatprep.subr.mxu0 %v1168
    %1702 = vmatpush1.msra.mxu0 %v1167
    %1703 = vmatprep.subr.mxu0 %v1172
    %1704 = vmatpush1.msra.mxu0 %v1171
    %1705 = vmatprep.subr.mxu0 %v1176
    %1706 = vmatpush1.msra.mxu0 %v1175
    %1707 = vmatprep.subr.mxu0 %v1180
    %1708 = vmatpush1.msra.mxu0 %v1179
    %1709 = vmatprep.subr.mxu0 %v1184
    %1710 = vmatpush1.msra.mxu0 %v1183
    %1711 = vmatprep.subr.mxu0 %v1188
    %1712 = vmatpush1.msra.mxu0 %v1187
    %1713 = vmatprep.subr.mxu0 %v1192
    %1714 = vmatpush1.msra.mxu0 %v1191
    %1715 = vmatprep.subr.mxu0 %v1196
    %1716 = vmatpush1.msra.mxu0 %v1195
    %1717 = vmatprep.subr.mxu0 %v1200
    %1718 = vmatpush1.msra.mxu0 %v1199
    %1719 = vmatprep.subr.mxu0 %v1204
    %1720 = vmatpush1.msra.mxu0 %v1203
    %1721 = vmatprep.subr.mxu0 %v1208
    %1722 = vmatpush1.msra.mxu0 %v1207
    %1723 = vmatprep.subr.mxu0 %v1212
    %1724 = vmatpush1.msra.mxu0 %v1211
    %1725 = vmatprep.subr.mxu0 %v1216
    %1726 = vmatpush1.msra.mxu0 %v1215
    %1727 = vmatprep.subr.mxu0 %v1220
    %1728 = vmatpush1.msra.mxu0 %v1219
    %1729 = vmatprep.subr.mxu0 %v1224
    %1730 = vmatpush1.msra.mxu0 %v1223
    %1731 = vmatprep.subr.mxu0 %v1228
    %1732 = vmatpush1.msra.mxu0 %v1227
    %1733 = vmatprep.subr.mxu0 %v1232
    %1734 = vmatpush1.msra.mxu0 %v1231
    %1735 = vmatprep.subr.mxu0 %v1236
    %1736 = vmatpush1.msra.mxu0 %v1235
    %1737 = vmatprep.subr.mxu0 %v1240
    %1738 = vmatpush1.msra.mxu0 %v1239
    %1739 = vmatprep.subr.mxu0 %v1244
    %1740 = vmatpush1.msra.mxu0 %v1243
    %1741 = vmatprep.subr.mxu0 %v1248
    %1742 = vmatpush1.msra.mxu0 %v1247
    %1743 = vmatprep.subr.mxu0 %v1252
    %1744 = vmatpush1.msra.mxu0 %v1251
    %1745 = vmatprep.subr.mxu0 %v1256
    %1746 = vmatpush1.msra.mxu0 %v1255
    %1747 = vmatprep.subr.mxu0 %v1260
    %1748 = vmatpush1.msra.mxu0 %v1259
    %1749 = vmatprep.subr.mxu0 %v1264
    %1750 = vmatpush1.msra.mxu0 %v1263
    %1751 = vmatprep.subr.mxu0 %v1268
    %1752 = vmatpush1.msra.mxu0 %v1267
    %1753 = vmatprep.subr.mxu0 %v1272
    %1754 = vmatpush1.msra.mxu0 %v1271
    %1755 = vmatprep.subr.mxu0 %v1276
    %1756 = vmatpush1.msra.mxu0 %v1275
    %1757 = vmatprep.subr.mxu0 %v1280
    %1758 = vmatpush1.msra.mxu0 %v1279
    %1759 = vmatprep.subr.mxu0 %v1284
    %1760 = vmatpush1.msra.mxu0 %v1283
    %1761 = vmatprep.subr.mxu0 %v1288
    %1762 = vmatpush1.msra.mxu0 %v1287
    %1763 = vmatprep.subr.mxu0 %v1292
    %1764 = vmatpush1.msra.mxu0 %v1291
    %1765 = vmatprep.mubr.f32.mxu0 %v1040
    %1766 = vmatmul.mubr.f32.gmra.mrb[0].mxu0 %v1039
    %v1767 = vpop.f32.mrb[0].mxu0
    %v1768 = vadd.f32 %v1684, %v1767
    %v1769 = vpop.f32.mrb[0].mxu0
    %v1770 = vadd.f32 %v1688, %v1769
    %1771 = vmatprep.mubr.f32.mxu0 %v1048
    %1772 = vmatmul.mubr.f32.gmra.mrb[0].mxu0 %v1047
    %v1773 = vpop.f32.mrb[0].mxu0
    %v1774 = vadd.f32 %v1684, %v1773
    %v1775 = vpop.f32.mrb[0].mxu0
    %v1776 = vadd.f32 %v1688, %v1775
    %1777 = vmatprep.mubr.f32.mxu0 %v1056
    %1778 = vmatmul.mubr.f32.gmra.mrb[0].mxu0 %v1055
    %v1779 = vpop.f32.mrb[0].mxu0
    %v1780 = vadd.f32 %v1684, %v1779
    %v1781 = vpop.f32.mrb[0].mxu0
    %v1782 = vadd.f32 %v1688, %v1781
    %1783 = vmatprep.mubr.f32.mxu0 %v1064
    %1784 = vmatmul.mubr.f32.gmra.mrb[0].mxu0 %v1063
    %v1785 = vpop.f32.mrb[0].mxu0
    %v1786 = vadd.f32 %v1684, %v1785
    %v1787 = vpop.f32.mrb[0].mxu0
    %v1788 = vadd.f32 %v1688, %v1787
    %1789 = vmatprep.mubr.f32.mxu0 %v1072
    %1790 = vmatmul.mubr.f32.gmra.mrb[0].mxu0 %v1071
    %v1791 = vpop.f32.mrb[0].mxu0
    %v1792 = vadd.f32 %v1684, %v1791
    %v1793 = vpop.f32.mrb[0].mxu0
    %v1794 = vadd.f32 %v1688, %v1793
    %1795 = vmatprep.mubr.f32.mxu0 %v1080
    %1796 = vmatmul.mubr.f32.gmra.mrb[0].mxu0 %v1079
    %v1797 = vpop.f32.mrb[0].mxu0
    %v1798 = vadd.f32 %v1684, %v1797
    %v1799 = vpop.f32.mrb[0].mxu0
    %v1800 = vadd.f32 %v1688, %v1799
    %1801 = vmatprep.mubr.f32.mxu0 %v1088
    %1802 = vmatmul.mubr.f32.gmra.mrb[0].mxu0 %v1087
    %v1803 = vpop.f32.mrb[0].mxu0
    %v1804 = vadd.f32 %v1684, %v1803
    %v1805 = vpop.f32.mrb[0].mxu0
    %v1806 = vadd.f32 %v1688, %v1805
    %1807 = vmatprep.mubr.f32.mxu0 %v1096
    %1808 = vmatmul.mubr.f32.gmra.mrb[0].mxu0 %v1095
    %v1809 = vpop.f32.mrb[0].mxu0
    %v1810 = vadd.f32 %v1684, %v1809
    %v1811 = vpop.f32.mrb[0].mxu0
    %v1812 = vadd.f32 %v1688, %v1811
    %1813 = vmatprep.mubr.f32.mxu0 %v1104
    %1814 = vmatmul.mubr.f32.gmra.mrb[0].mxu0 %v1103
    %v1815 = vpop.f32.mrb[0].mxu0
    %v1816 = vadd.f32 %v1684, %v1815
    %v1817 = vpop.f32.mrb[0].mxu0
    %v1818 = vadd.f32 %v1688, %v1817
    %1819 = vmatprep.mubr.f32.mxu0 %v1112
    %1820 = vmatmul.mubr.f32.gmra.mrb[0].mxu0 %v1111
    %v1821 = vpop.f32.mrb[0].mxu0
    %v1822 = vadd.f32 %v1684, %v1821
    %v1823 = vpop.f32.mrb[0].mxu0
    %v1824 = vadd.f32 %v1688, %v1823
    %1825 = vmatprep.mubr.f32.mxu0 %v1120
    %1826 = vmatmul.mubr.f32.gmra.mrb[0].mxu0 %v1119
    %v1827 = vpop.f32.mrb[0].mxu0
    %v1828 = vadd.f32 %v1684, %v1827
    %v1829 = vpop.f32.mrb[0].mxu0
    %v1830 = vadd.f32 %v1688, %v1829
    %1831 = vmatprep.mubr.f32.mxu0 %v1128
    %1832 = vmatmul.mubr.f32.gmra.mrb[0].mxu0 %v1127
    %v1833 = vpop.f32.mrb[0].mxu0
    %v1834 = vadd.f32 %v1684, %v1833
    %v1835 = vpop.f32.mrb[0].mxu0
    %v1836 = vadd.f32 %v1688, %v1835
    %1837 = vmatprep.mubr.f32.mxu0 %v1136
    %1838 = vmatmul.mubr.f32.gmra.mrb[0].mxu0 %v1135
    %v1839 = vpop.f32.mrb[0].mxu0
    %v1840 = vadd.f32 %v1684, %v1839
    %v1841 = vpop.f32.mrb[0].mxu0
    %v1842 = vadd.f32 %v1688, %v1841
    %1843 = vmatprep.mubr.f32.mxu0 %v1144
    %1844 = vmatmul.mubr.f32.gmra.mrb[0].mxu0 %v1143
    %v1845 = vpop.f32.mrb[0].mxu0
    %v1846 = vadd.f32 %v1684, %v1845
    %v1847 = vpop.f32.mrb[0].mxu0
    %v1848 = vadd.f32 %v1688, %v1847
    %1849 = vmatprep.mubr.f32.mxu0 %v1152
    %1850 = vmatmul.mubr.f32.gmra.mrb[0].mxu0 %v1151
    %v1851 = vpop.f32.mrb[0].mxu0
    %v1852 = vadd.f32 %v1684, %v1851
    %v1853 = vpop.f32.mrb[0].mxu0
    %v1854 = vadd.f32 %v1688, %v1853
    %1855 = vmatprep.mubr.f32.mxu0 %v1160
    %1856 = vmatmul.mubr.f32.gmra.mrb[0].mxu0 %v1159
    %v1857 = vpop.f32.mrb[0].mxu0
    %v1858 = vadd.f32 %v1684, %v1857
    %v1859 = vpop.f32.mrb[0].mxu0
    %v1860 = vadd.f32 %v1688, %v1859
    %1861 = vdwg.mxu0
    %1862 = vmatprep.subr.mxu0 %v1296
    %1863 = vmatpush1.msra.mxu0 %v1295
    %1864 = vmatprep.subr.mxu0 %v1300
    %1865 = vmatpush1.msra.mxu0 %v1299
    %1866 = vmatprep.subr.mxu0 %v1304
    %1867 = vmatpush1.msra.mxu0 %v1303
    %1868 = vmatprep.subr.mxu0 %v1308
    %1869 = vmatpush1.msra.mxu0 %v1307
    %1870 = vmatprep.subr.mxu0 %v1312
    %1871 = vmatpush1.msra.mxu0 %v1311
    %1872 = vmatprep.subr.mxu0 %v1316
    %1873 = vmatpush1.msra.mxu0 %v1315
    %1874 = vmatprep.subr.mxu0 %v1320
    %1875 = vmatpush1.msra.mxu0 %v1319
    %1876 = vmatprep.subr.mxu0 %v1324
    %1877 = vmatpush1.msra.mxu0 %v1323
    %1878 = vmatprep.subr.mxu0 %v1328
    %1879 = vmatpush1.msra.mxu0 %v1327
    %1880 = vmatprep.subr.mxu0 %v1332
    %1881 = vmatpush1.msra.mxu0 %v1331
    %1882 = vmatprep.subr.mxu0 %v1336
    %1883 = vmatpush1.msra.mxu0 %v1335
    %1884 = vmatprep.subr.mxu0 %v1340
    %1885 = vmatpush1.msra.mxu0 %v1339
    %1886 = vmatprep.subr.mxu0 %v1344
    %1887 = vmatpush1.msra.mxu0 %v1343
    %1888 = vmatprep.subr.mxu0 %v1348
    %1889 = vmatpush1.msra.mxu0 %v1347
    %1890 = vmatprep.subr.mxu0 %v1352
    %1891 = vmatpush1.msra.mxu0 %v1351
    %1892 = vmatprep.subr.mxu0 %v1356
    %1893 = vmatpush1.msra.mxu0 %v1355
    %1894 = vmatprep.subr.mxu0 %v1360
    %1895 = vmatpush1.msra.mxu0 %v1359
    %1896 = vmatprep.subr.mxu0 %v1364
    %1897 = vmatpush1.msra.mxu0 %v1363
    %1898 = vmatprep.subr.mxu0 %v1368
    %1899 = vmatpush1.msra.mxu0 %v1367
    %1900 = vmatprep.subr.mxu0 %v1372
    %1901 = vmatpush1.msra.mxu0 %v1371
    %1902 = vmatprep.subr.mxu0 %v1376
    %1903 = vmatpush1.msra.mxu0 %v1375
    %1904 = vmatprep.subr.mxu0 %v1380
    %1905 = vmatpush1.msra.mxu0 %v1379
    %1906 = vmatprep.subr.mxu0 %v1384
    %1907 = vmatpush1.msra.mxu0 %v1383
    %1908 = vmatprep.subr.mxu0 %v1388
    %1909 = vmatpush1.msra.mxu0 %v1387
    %1910 = vmatprep.subr.mxu0 %v1392
    %1911 = vmatpush1.msra.mxu0 %v1391
    %1912 = vmatprep.subr.mxu0 %v1396
    %1913 = vmatpush1.msra.mxu0 %v1395
    %1914 = vmatprep.subr.mxu0 %v1400
    %1915 = vmatpush1.msra.mxu0 %v1399
    %1916 = vmatprep.subr.mxu0 %v1404
    %1917 = vmatpush1.msra.mxu0 %v1403
    %1918 = vmatprep.subr.mxu0 %v1408
    %1919 = vmatpush1.msra.mxu0 %v1407
    %1920 = vmatprep.subr.mxu0 %v1412
    %1921 = vmatpush1.msra.mxu0 %v1411
    %1922 = vmatprep.subr.mxu0 %v1416
    %1923 = vmatpush1.msra.mxu0 %v1415
    %1924 = vmatprep.subr.mxu0 %v1420
    %1925 = vmatpush1.msra.mxu0 %v1419
    %1926 = vmatprep.mubr.f32.mxu0 %v1042
    %1927 = vmatmul.mubr.f32.gmra.mrb[0].mxu0 %v1041
    %v1928 = vpop.f32.mrb[0].mxu0
    %v1929 = vadd.f32 %v1768, %v1928
    %v1930 = vpop.f32.mrb[0].mxu0
    %v1931 = vadd.f32 %v1770, %v1930
    %1932 = vmatprep.mubr.f32.mxu0 %v1050
    %1933 = vmatmul.mubr.f32.gmra.mrb[0].mxu0 %v1049
    %v1934 = vpop.f32.mrb[0].mxu0
    %v1935 = vadd.f32 %v1774, %v1934
    %v1936 = vpop.f32.mrb[0].mxu0
    %v1937 = vadd.f32 %v1776, %v1936
    %1938 = vmatprep.mubr.f32.mxu0 %v1058
    %1939 = vmatmul.mubr.f32.gmra.mrb[0].mxu0 %v1057
    %v1940 = vpop.f32.mrb[0].mxu0
    %v1941 = vadd.f32 %v1780, %v1940
    %v1942 = vpop.f32.mrb[0].mxu0
    %v1943 = vadd.f32 %v1782, %v1942
    %1944 = vmatprep.mubr.f32.mxu0 %v1066
    %1945 = vmatmul.mubr.f32.gmra.mrb[0].mxu0 %v1065
    %v1946 = vpop.f32.mrb[0].mxu0
    %v1947 = vadd.f32 %v1786, %v1946
    %v1948 = vpop.f32.mrb[0].mxu0
    %v1949 = vadd.f32 %v1788, %v1948
    %1950 = vmatprep.mubr.f32.mxu0 %v1074
    %1951 = vmatmul.mubr.f32.gmra.mrb[0].mxu0 %v1073
    %v1952 = vpop.f32.mrb[0].mxu0
    %v1953 = vadd.f32 %v1792, %v1952
    %v1954 = vpop.f32.mrb[0].mxu0
    %v1955 = vadd.f32 %v1794, %v1954
    %1956 = vmatprep.mubr.f32.mxu0 %v1082
    %1957 = vmatmul.mubr.f32.gmra.mrb[0].mxu0 %v1081
    %v1958 = vpop.f32.mrb[0].mxu0
    %v1959 = vadd.f32 %v1798, %v1958
    %v1960 = vpop.f32.mrb[0].mxu0
    %v1961 = vadd.f32 %v1800, %v1960
    %1962 = vmatprep.mubr.f32.mxu0 %v1090
    %1963 = vmatmul.mubr.f32.gmra.mrb[0].mxu0 %v1089
    %v1964 = vpop.f32.mrb[0].mxu0
    %v1965 = vadd.f32 %v1804, %v1964
    %v1966 = vpop.f32.mrb[0].mxu0
    %v1967 = vadd.f32 %v1806, %v1966
    %1968 = vmatprep.mubr.f32.mxu0 %v1098
    %1969 = vmatmul.mubr.f32.gmra.mrb[0].mxu0 %v1097
    %v1970 = vpop.f32.mrb[0].mxu0
    %v1971 = vadd.f32 %v1810, %v1970
    %v1972 = vpop.f32.mrb[0].mxu0
    %v1973 = vadd.f32 %v1812, %v1972
    %1974 = vmatprep.mubr.f32.mxu0 %v1106
    %1975 = vmatmul.mubr.f32.gmra.mrb[0].mxu0 %v1105
    %v1976 = vpop.f32.mrb[0].mxu0
    %v1977 = vadd.f32 %v1816, %v1976
    %v1978 = vpop.f32.mrb[0].mxu0
    %v1979 = vadd.f32 %v1818, %v1978
    %1980 = vmatprep.mubr.f32.mxu0 %v1114
    %1981 = vmatmul.mubr.f32.gmra.mrb[0].mxu0 %v1113
    %v1982 = vpop.f32.mrb[0].mxu0
    %v1983 = vadd.f32 %v1822, %v1982
    %v1984 = vpop.f32.mrb[0].mxu0
    %v1985 = vadd.f32 %v1824, %v1984
    %1986 = vmatprep.mubr.f32.mxu0 %v1122
    %1987 = vmatmul.mubr.f32.gmra.mrb[0].mxu0 %v1121
    %v1988 = vpop.f32.mrb[0].mxu0
    %v1989 = vadd.f32 %v1828, %v1988
    %v1990 = vpop.f32.mrb[0].mxu0
    %v1991 = vadd.f32 %v1830, %v1990
    %1992 = vmatprep.mubr.f32.mxu0 %v1130
    %1993 = vmatmul.mubr.f32.gmra.mrb[0].mxu0 %v1129
    %v1994 = vpop.f32.mrb[0].mxu0
    %v1995 = vadd.f32 %v1834, %v1994
    %v1996 = vpop.f32.mrb[0].mxu0
    %v1997 = vadd.f32 %v1836, %v1996
    %1998 = vmatprep.mubr.f32.mxu0 %v1138
    %1999 = vmatmul.mubr.f32.gmra.mrb[0].mxu0 %v1137
    %v2000 = vpop.f32.mrb[0].mxu0
    %v2001 = vadd.f32 %v1840, %v2000
    %v2002 = vpop.f32.mrb[0].mxu0
    %v2003 = vadd.f32 %v1842, %v2002
    %2004 = vmatprep.mubr.f32.mxu0 %v1146
    %2005 = vmatmul.mubr.f32.gmra.mrb[0].mxu0 %v1145
    %v2006 = vpop.f32.mrb[0].mxu0
    %v2007 = vadd.f32 %v1846, %v2006
    %v2008 = vpop.f32.mrb[0].mxu0
    %v2009 = vadd.f32 %v1848, %v2008
    %2010 = vmatprep.mubr.f32.mxu0 %v1154
    %2011 = vmatmul.mubr.f32.gmra.mrb[0].mxu0 %v1153
    %v2012 = vpop.f32.mrb[0].mxu0
    %v2013 = vadd.f32 %v1852, %v2012
    %v2014 = vpop.f32.mrb[0].mxu0
    %v2015 = vadd.f32 %v1854, %v2014
    %2016 = vmatprep.mubr.f32.mxu0 %v1162
    %2017 = vmatmul.mubr.f32.gmra.mrb[0].mxu0 %v1161
    %v2018 = vpop.f32.mrb[0].mxu0
    %v2019 = vadd.f32 %v1858, %v2018
    %v2020 = vpop.f32.mrb[0].mxu0
    %v2021 = vadd.f32 %v1860, %v2020
    %2022 = vdwg.mxu0
    %2023 = vmatprep.subr.mxu0 %v1424
    %2024 = vmatpush1.msra.mxu0 %v1423
    %2025 = vmatprep.subr.mxu0 %v1428
    %2026 = vmatpush1.msra.mxu0 %v1427
    %2027 = vmatprep.subr.mxu0 %v1432
    %2028 = vmatpush1.msra.mxu0 %v1431
    %2029 = vmatprep.subr.mxu0 %v1436
    %2030 = vmatpush1.msra.mxu0 %v1435
    %2031 = vmatprep.subr.mxu0 %v1440
    %2032 = vmatpush1.msra.mxu0 %v1439
    %2033 = vmatprep.subr.mxu0 %v1444
    %2034 = vmatpush1.msra.mxu0 %v1443
    %2035 = vmatprep.subr.mxu0 %v1448
    %2036 = vmatpush1.msra.mxu0 %v1447
    %2037 = vmatprep.subr.mxu0 %v1452
    %2038 = vmatpush1.msra.mxu0 %v1451
    %2039 = vmatprep.subr.mxu0 %v1456
    %2040 = vmatpush1.msra.mxu0 %v1455
    %2041 = vmatprep.subr.mxu0 %v1460
    %2042 = vmatpush1.msra.mxu0 %v1459
    %2043 = vmatprep.subr.mxu0 %v1464
    %2044 = vmatpush1.msra.mxu0 %v1463
    %2045 = vmatprep.subr.mxu0 %v1468
    %2046 = vmatpush1.msra.mxu0 %v1467
    %2047 = vmatprep.subr.mxu0 %v1472
    %2048 = vmatpush1.msra.mxu0 %v1471
    %2049 = vmatprep.subr.mxu0 %v1476
    %2050 = vmatpush1.msra.mxu0 %v1475
    %2051 = vmatprep.subr.mxu0 %v1480
    %2052 = vmatpush1.msra.mxu0 %v1479
    %2053 = vmatprep.subr.mxu0 %v1484
    %2054 = vmatpush1.msra.mxu0 %v1483
    %2055 = vmatprep.subr.mxu0 %v1488
    %2056 = vmatpush1.msra.mxu0 %v1487
    %2057 = vmatprep.subr.mxu0 %v1492
    %2058 = vmatpush1.msra.mxu0 %v1491
    %2059 = vmatprep.subr.mxu0 %v1496
    %2060 = vmatpush1.msra.mxu0 %v1495
    %2061 = vmatprep.subr.mxu0 %v1500
    %2062 = vmatpush1.msra.mxu0 %v1499
    %2063 = vmatprep.subr.mxu0 %v1504
    %2064 = vmatpush1.msra.mxu0 %v1503
    %2065 = vmatprep.subr.mxu0 %v1508
    %2066 = vmatpush1.msra.mxu0 %v1507
    %2067 = vmatprep.subr.mxu0 %v1512
    %2068 = vmatpush1.msra.mxu0 %v1511
    %2069 = vmatprep.subr.mxu0 %v1516
    %2070 = vmatpush1.msra.mxu0 %v1515
    %2071 = vmatprep.subr.mxu0 %v1520
    %2072 = vmatpush1.msra.mxu0 %v1519
    %2073 = vmatprep.subr.mxu0 %v1524
    %2074 = vmatpush1.msra.mxu0 %v1523
    %2075 = vmatprep.subr.mxu0 %v1528
    %2076 = vmatpush1.msra.mxu0 %v1527
    %2077 = vmatprep.subr.mxu0 %v1532
    %2078 = vmatpush1.msra.mxu0 %v1531
    %2079 = vmatprep.subr.mxu0 %v1536
    %2080 = vmatpush1.msra.mxu0 %v1535
    %2081 = vmatprep.subr.mxu0 %v1540
    %2082 = vmatpush1.msra.mxu0 %v1539
    %2083 = vmatprep.subr.mxu0 %v1544
    %2084 = vmatpush1.msra.mxu0 %v1543
    %2085 = vmatprep.subr.mxu0 %v1548
    %2086 = vmatpush1.msra.mxu0 %v1547
    %2087 = vmatprep.mubr.f32.mxu0 %v1044
    %2088 = vmatmul.mubr.f32.gmra.mrb[0].mxu0 %v1043
    %v2089 = vpop.f32.mrb[0].mxu0
    %v2090 = vadd.f32 %v1929, %v2089
    %v2091 = vpop.f32.mrb[0].mxu0
    %v2092 = vadd.f32 %v1931, %v2091
    %2093 = vmatprep.mubr.f32.mxu0 %v1052
    %2094 = vmatmul.mubr.f32.gmra.mrb[0].mxu0 %v1051
    %v2095 = vpop.f32.mrb[0].mxu0
    %v2096 = vadd.f32 %v1935, %v2095
    %v2097 = vpop.f32.mrb[0].mxu0
    %v2098 = vadd.f32 %v1937, %v2097
    %2099 = vmatprep.mubr.f32.mxu0 %v1060
    %2100 = vmatmul.mubr.f32.gmra.mrb[0].mxu0 %v1059
    %v2101 = vpop.f32.mrb[0].mxu0
    %v2102 = vadd.f32 %v1941, %v2101
    %v2103 = vpop.f32.mrb[0].mxu0
    %v2104 = vadd.f32 %v1943, %v2103
    %2105 = vmatprep.mubr.f32.mxu0 %v1068
    %2106 = vmatmul.mubr.f32.gmra.mrb[0].mxu0 %v1067
    %v2107 = vpop.f32.mrb[0].mxu0
    %v2108 = vadd.f32 %v1947, %v2107
    %v2109 = vpop.f32.mrb[0].mxu0
    %v2110 = vadd.f32 %v1949, %v2109
    %2111 = vmatprep.mubr.f32.mxu0 %v1076
    %2112 = vmatmul.mubr.f32.gmra.mrb[0].mxu0 %v1075
    %v2113 = vpop.f32.mrb[0].mxu0
    %v2114 = vadd.f32 %v1953, %v2113
    %v2115 = vpop.f32.mrb[0].mxu0
    %v2116 = vadd.f32 %v1955, %v2115
    %2117 = vmatprep.mubr.f32.mxu0 %v1084
    %2118 = vmatmul.mubr.f32.gmra.mrb[0].mxu0 %v1083
    %v2119 = vpop.f32.mrb[0].mxu0
    %v2120 = vadd.f32 %v1959, %v2119
    %v2121 = vpop.f32.mrb[0].mxu0
    %v2122 = vadd.f32 %v1961, %v2121
    %2123 = vmatprep.mubr.f32.mxu0 %v1092
    %2124 = vmatmul.mubr.f32.gmra.mrb[0].mxu0 %v1091
    %v2125 = vpop.f32.mrb[0].mxu0
    %v2126 = vadd.f32 %v1965, %v2125
    %v2127 = vpop.f32.mrb[0].mxu0
    %v2128 = vadd.f32 %v1967, %v2127
    %2129 = vmatprep.mubr.f32.mxu0 %v1100
    %2130 = vmatmul.mubr.f32.gmra.mrb[0].mxu0 %v1099
    %v2131 = vpop.f32.mrb[0].mxu0
    %v2132 = vadd.f32 %v1971, %v2131
    %v2133 = vpop.f32.mrb[0].mxu0
    %v2134 = vadd.f32 %v1973, %v2133
    %2135 = vmatprep.mubr.f32.mxu0 %v1108
    %2136 = vmatmul.mubr.f32.gmra.mrb[0].mxu0 %v1107
    %v2137 = vpop.f32.mrb[0].mxu0
    %v2138 = vadd.f32 %v1977, %v2137
    %v2139 = vpop.f32.mrb[0].mxu0
    %v2140 = vadd.f32 %v1979, %v2139
    %2141 = vmatprep.mubr.f32.mxu0 %v1116
    %2142 = vmatmul.mubr.f32.gmra.mrb[0].mxu0 %v1115
    %v2143 = vpop.f32.mrb[0].mxu0
    %v2144 = vadd.f32 %v1983, %v2143
    %v2145 = vpop.f32.mrb[0].mxu0
    %v2146 = vadd.f32 %v1985, %v2145
    %2147 = vmatprep.mubr.f32.mxu0 %v1124
    %2148 = vmatmul.mubr.f32.gmra.mrb[0].mxu0 %v1123
    %v2149 = vpop.f32.mrb[0].mxu0
    %v2150 = vadd.f32 %v1989, %v2149
    %v2151 = vpop.f32.mrb[0].mxu0
    %v2152 = vadd.f32 %v1991, %v2151
    %2153 = vmatprep.mubr.f32.mxu0 %v1132
    %2154 = vmatmul.mubr.f32.gmra.mrb[0].mxu0 %v1131
    %v2155 = vpop.f32.mrb[0].mxu0
    %v2156 = vadd.f32 %v1995, %v2155
    %v2157 = vpop.f32.mrb[0].mxu0
    %v2158 = vadd.f32 %v1997, %v2157
    %2159 = vmatprep.mubr.f32.mxu0 %v1140
    %2160 = vmatmul.mubr.f32.gmra.mrb[0].mxu0 %v1139
    %v2161 = vpop.f32.mrb[0].mxu0
    %v2162 = vadd.f32 %v2001, %v2161
    %v2163 = vpop.f32.mrb[0].mxu0
    %v2164 = vadd.f32 %v2003, %v2163
    %2165 = vmatprep.mubr.f32.mxu0 %v1148
    %2166 = vmatmul.mubr.f32.gmra.mrb[0].mxu0 %v1147
    %v2167 = vpop.f32.mrb[0].mxu0
    %v2168 = vadd.f32 %v2007, %v2167
    %v2169 = vpop.f32.mrb[0].mxu0
    %v2170 = vadd.f32 %v2009, %v2169
    %2171 = vmatprep.mubr.f32.mxu0 %v1156
    %2172 = vmatmul.mubr.f32.gmra.mrb[0].mxu0 %v1155
    %v2173 = vpop.f32.mrb[0].mxu0
    %v2174 = vadd.f32 %v2013, %v2173
    %v2175 = vpop.f32.mrb[0].mxu0
    %v2176 = vadd.f32 %v2015, %v2175
    %2177 = vmatprep.mubr.f32.mxu0 %v1164
    %2178 = vmatmul.mubr.f32.gmra.mrb[0].mxu0 %v1163
    %v2179 = vpop.f32.mrb[0].mxu0
    %v2180 = vadd.f32 %v2019, %v2179
    %v2181 = vpop.f32.mrb[0].mxu0
    %v2182 = vadd.f32 %v2021, %v2181
    %2183 = vdwg.mxu0
    %2184 = vmatprep.subr.mxu0 %v1552
    %2185 = vmatpush1.msra.mxu0 %v1551
    %2186 = vmatprep.subr.mxu0 %v1556
    %2187 = vmatpush1.msra.mxu0 %v1555
    %2188 = vmatprep.subr.mxu0 %v1560
    %2189 = vmatpush1.msra.mxu0 %v1559
    %2190 = vmatprep.subr.mxu0 %v1564
    %2191 = vmatpush1.msra.mxu0 %v1563
    %2192 = vmatprep.subr.mxu0 %v1568
    %2193 = vmatpush1.msra.mxu0 %v1567
    %2194 = vmatprep.subr.mxu0 %v1572
    %2195 = vmatpush1.msra.mxu0 %v1571
    %2196 = vmatprep.subr.mxu0 %v1576
    %2197 = vmatpush1.msra.mxu0 %v1575
    %2198 = vmatprep.subr.mxu0 %v1580
    %2199 = vmatpush1.msra.mxu0 %v1579
    %2200 = vmatprep.subr.mxu0 %v1584
    %2201 = vmatpush1.msra.mxu0 %v1583
    %2202 = vmatprep.subr.mxu0 %v1588
    %2203 = vmatpush1.msra.mxu0 %v1587
    %2204 = vmatprep.subr.mxu0 %v1592
    %2205 = vmatpush1.msra.mxu0 %v1591
    %2206 = vmatprep.subr.mxu0 %v1596
    %2207 = vmatpush1.msra.mxu0 %v1595
    %2208 = vmatprep.subr.mxu0 %v1600
    %2209 = vmatpush1.msra.mxu0 %v1599
    %2210 = vmatprep.subr.mxu0 %v1604
    %2211 = vmatpush1.msra.mxu0 %v1603
    %2212 = vmatprep.subr.mxu0 %v1608
    %2213 = vmatpush1.msra.mxu0 %v1607
    %2214 = vmatprep.subr.mxu0 %v1612
    %2215 = vmatpush1.msra.mxu0 %v1611
    %2216 = vmatprep.subr.mxu0 %v1616
    %2217 = vmatpush1.msra.mxu0 %v1615
    %2218 = vmatprep.subr.mxu0 %v1620
    %2219 = vmatpush1.msra.mxu0 %v1619
    %2220 = vmatprep.subr.mxu0 %v1624
    %2221 = vmatpush1.msra.mxu0 %v1623
    %2222 = vmatprep.subr.mxu0 %v1628
    %2223 = vmatpush1.msra.mxu0 %v1627
    %2224 = vmatprep.subr.mxu0 %v1632
    %2225 = vmatpush1.msra.mxu0 %v1631
    %2226 = vmatprep.subr.mxu0 %v1636
    %2227 = vmatpush1.msra.mxu0 %v1635
    %2228 = vmatprep.subr.mxu0 %v1640
    %2229 = vmatpush1.msra.mxu0 %v1639
    %2230 = vmatprep.subr.mxu0 %v1644
    %2231 = vmatpush1.msra.mxu0 %v1643
    %2232 = vmatprep.subr.mxu0 %v1648
    %2233 = vmatpush1.msra.mxu0 %v1647
    %2234 = vmatprep.subr.mxu0 %v1652
    %2235 = vmatpush1.msra.mxu0 %v1651
    %2236 = vmatprep.subr.mxu0 %v1656
    %2237 = vmatpush1.msra.mxu0 %v1655
    %2238 = vmatprep.subr.mxu0 %v1660
    %2239 = vmatpush1.msra.mxu0 %v1659
    %2240 = vmatprep.subr.mxu0 %v1664
    %2241 = vmatpush1.msra.mxu0 %v1663
    %2242 = vmatprep.subr.mxu0 %v1668
    %2243 = vmatpush1.msra.mxu0 %v1667
    %2244 = vmatprep.subr.mxu0 %v1672
    %2245 = vmatpush1.msra.mxu0 %v1671
    %2246 = vmatprep.subr.mxu0 %v1676
    %2247 = vmatpush1.msra.mxu0 %v1675
    %2248 = vmatprep.mubr.f32.mxu0 %v1046
    %2249 = vmatmul.mubr.f32.gmra.mrb[0].mxu0 %v1045
    %v2250 = vpop.f32.mrb[0].mxu0
    %v2251 = vadd.f32 %v2090, %v2250
    %v2252 = vpop.f32.mrb[0].mxu0
    %v2253 = vadd.f32 %v2092, %v2252
    %2254 = vmatprep.mubr.f32.mxu0 %v1054
    %2255 = vmatmul.mubr.f32.gmra.mrb[0].mxu0 %v1053
    %v2256 = vpop.f32.mrb[0].mxu0
    %v2257 = vadd.f32 %v2096, %v2256
    %v2258 = vpop.f32.mrb[0].mxu0
    %v2259 = vadd.f32 %v2098, %v2258
    %2260 = vmatprep.mubr.f32.mxu0 %v1062
    %2261 = vmatmul.mubr.f32.gmra.mrb[0].mxu0 %v1061
    %v2262 = vpop.f32.mrb[0].mxu0
    %v2263 = vadd.f32 %v2102, %v2262
    %v2264 = vpop.f32.mrb[0].mxu0
    %v2265 = vadd.f32 %v2104, %v2264
    %2266 = vmatprep.mubr.f32.mxu0 %v1070
    %2267 = vmatmul.mubr.f32.gmra.mrb[0].mxu0 %v1069
    %v2268 = vpop.f32.mrb[0].mxu0
    %v2269 = vadd.f32 %v2108, %v2268
    %v2270 = vpop.f32.mrb[0].mxu0
    %v2271 = vadd.f32 %v2110, %v2270
    %2272 = vmatprep.mubr.f32.mxu0 %v1078
    %2273 = vmatmul.mubr.f32.gmra.mrb[0].mxu0 %v1077
    %v2274 = vpop.f32.mrb[0].mxu0
    %v2275 = vadd.f32 %v2114, %v2274
    %v2276 = vpop.f32.mrb[0].mxu0
    %v2277 = vadd.f32 %v2116, %v2276
    %2278 = vmatprep.mubr.f32.mxu0 %v1086
    %2279 = vmatmul.mubr.f32.gmra.mrb[0].mxu0 %v1085
    %v2280 = vpop.f32.mrb[0].mxu0
    %v2281 = vadd.f32 %v2120, %v2280
    %v2282 = vpop.f32.mrb[0].mxu0
    %v2283 = vadd.f32 %v2122, %v2282
    %2284 = vmatprep.mubr.f32.mxu0 %v1094
    %2285 = vmatmul.mubr.f32.gmra.mrb[0].mxu0 %v1093
    %v2286 = vpop.f32.mrb[0].mxu0
    %v2287 = vadd.f32 %v2126, %v2286
    %v2288 = vpop.f32.mrb[0].mxu0
    %v2289 = vadd.f32 %v2128, %v2288
    %2290 = vmatprep.mubr.f32.mxu0 %v1102
    %2291 = vmatmul.mubr.f32.gmra.mrb[0].mxu0 %v1101
    %v2292 = vpop.f32.mrb[0].mxu0
    %v2293 = vadd.f32 %v2132, %v2292
    %v2294 = vpop.f32.mrb[0].mxu0
    %v2295 = vadd.f32 %v2134, %v2294
    %2296 = vmatprep.mubr.f32.mxu0 %v1110
    %2297 = vmatmul.mubr.f32.gmra.mrb[0].mxu0 %v1109
    %v2298 = vpop.f32.mrb[0].mxu0
    %v2299 = vadd.f32 %v2138, %v2298
    %v2300 = vpop.f32.mrb[0].mxu0
    %v2301 = vadd.f32 %v2140, %v2300
    %2302 = vmatprep.mubr.f32.mxu0 %v1118
    %2303 = vmatmul.mubr.f32.gmra.mrb[0].mxu0 %v1117
    %v2304 = vpop.f32.mrb[0].mxu0
    %v2305 = vadd.f32 %v2144, %v2304
    %v2306 = vpop.f32.mrb[0].mxu0
    %v2307 = vadd.f32 %v2146, %v2306
    %2308 = vmatprep.mubr.f32.mxu0 %v1126
    %2309 = vmatmul.mubr.f32.gmra.mrb[0].mxu0 %v1125
    %v2310 = vpop.f32.mrb[0].mxu0
    %v2311 = vadd.f32 %v2150, %v2310
    %v2312 = vpop.f32.mrb[0].mxu0
    %v2313 = vadd.f32 %v2152, %v2312
    %2314 = vmatprep.mubr.f32.mxu0 %v1134
    %2315 = vmatmul.mubr.f32.gmra.mrb[0].mxu0 %v1133
    %v2316 = vpop.f32.mrb[0].mxu0
    %v2317 = vadd.f32 %v2156, %v2316
    %v2318 = vpop.f32.mrb[0].mxu0
    %v2319 = vadd.f32 %v2158, %v2318
    %2320 = vmatprep.mubr.f32.mxu0 %v1142
    %2321 = vmatmul.mubr.f32.gmra.mrb[0].mxu0 %v1141
    %v2322 = vpop.f32.mrb[0].mxu0
    %v2323 = vadd.f32 %v2162, %v2322
    %v2324 = vpop.f32.mrb[0].mxu0
    %v2325 = vadd.f32 %v2164, %v2324
    %2326 = vmatprep.mubr.f32.mxu0 %v1150
    %2327 = vmatmul.mubr.f32.gmra.mrb[0].mxu0 %v1149
    %v2328 = vpop.f32.mrb[0].mxu0
    %v2329 = vadd.f32 %v2168, %v2328
    %v2330 = vpop.f32.mrb[0].mxu0
    %v2331 = vadd.f32 %v2170, %v2330
    %2332 = vmatprep.mubr.f32.mxu0 %v1158
    %2333 = vmatmul.mubr.f32.gmra.mrb[0].mxu0 %v1157
    %v2334 = vpop.f32.mrb[0].mxu0
    %v2335 = vadd.f32 %v2174, %v2334
    %v2336 = vpop.f32.mrb[0].mxu0
    %v2337 = vadd.f32 %v2176, %v2336
    %2338 = vmatprep.mubr.f32.mxu0 %v1166
    %2339 = vmatmul.mubr.f32.gmra.mrb[0].mxu0 %v1165
    %v2340 = vpop.f32.mrb[0].mxu0
    %v2341 = vadd.f32 %v2180, %v2340
    %v2342 = vpop.f32.mrb[0].mxu0
    %v2343 = vadd.f32 %v2182, %v2342
    %2344 = vdwg.mxu0
    %2345 = vmatprep.subr.mxu0 %v1170
    %2346 = vmatpush1.msra.mxu0 %v1169
    %2347 = vmatprep.subr.mxu0 %v1174
    %2348 = vmatpush1.msra.mxu0 %v1173
    %2349 = vmatprep.subr.mxu0 %v1178
    %2350 = vmatpush1.msra.mxu0 %v1177
    %2351 = vmatprep.subr.mxu0 %v1182
    %2352 = vmatpush1.msra.mxu0 %v1181
    %2353 = vmatprep.subr.mxu0 %v1186
    %2354 = vmatpush1.msra.mxu0 %v1185
    %2355 = vmatprep.subr.mxu0 %v1190
    %2356 = vmatpush1.msra.mxu0 %v1189
    %2357 = vmatprep.subr.mxu0 %v1194
    %2358 = vmatpush1.msra.mxu0 %v1193
    %2359 = vmatprep.subr.mxu0 %v1198
    %2360 = vmatpush1.msra.mxu0 %v1197
    %2361 = vmatprep.subr.mxu0 %v1202
    %2362 = vmatpush1.msra.mxu0 %v1201
    %2363 = vmatprep.subr.mxu0 %v1206
    %2364 = vmatpush1.msra.mxu0 %v1205
    %2365 = vmatprep.subr.mxu0 %v1210
    %2366 = vmatpush1.msra.mxu0 %v1209
    %2367 = vmatprep.subr.mxu0 %v1214
    %2368 = vmatpush1.msra.mxu0 %v1213
    %2369 = vmatprep.subr.mxu0 %v1218
    %2370 = vmatpush1.msra.mxu0 %v1217
    %2371 = vmatprep.subr.mxu0 %v1222
    %2372 = vmatpush1.msra.mxu0 %v1221
    %2373 = vmatprep.subr.mxu0 %v1226
    %2374 = vmatpush1.msra.mxu0 %v1225
    %2375 = vmatprep.subr.mxu0 %v1230
    %2376 = vmatpush1.msra.mxu0 %v1229
    %2377 = vmatprep.subr.mxu0 %v1234
    %2378 = vmatpush1.msra.mxu0 %v1233
    %2379 = vmatprep.subr.mxu0 %v1238
    %2380 = vmatpush1.msra.mxu0 %v1237
    %2381 = vmatprep.subr.mxu0 %v1242
    %2382 = vmatpush1.msra.mxu0 %v1241
    %2383 = vmatprep.subr.mxu0 %v1246
    %2384 = vmatpush1.msra.mxu0 %v1245
    %2385 = vmatprep.subr.mxu0 %v1250
    %2386 = vmatpush1.msra.mxu0 %v1249
    %2387 = vmatprep.subr.mxu0 %v1254
    %2388 = vmatpush1.msra.mxu0 %v1253
    %2389 = vmatprep.subr.mxu0 %v1258
    %2390 = vmatpush1.msra.mxu0 %v1257
    %2391 = vmatprep.subr.mxu0 %v1262
    %2392 = vmatpush1.msra.mxu0 %v1261
    %2393 = vmatprep.subr.mxu0 %v1266
    %2394 = vmatpush1.msra.mxu0 %v1265
    %2395 = vmatprep.subr.mxu0 %v1270
    %2396 = vmatpush1.msra.mxu0 %v1269
    %2397 = vmatprep.subr.mxu0 %v1274
    %2398 = vmatpush1.msra.mxu0 %v1273
    %2399 = vmatprep.subr.mxu0 %v1278
    %2400 = vmatpush1.msra.mxu0 %v1277
    %2401 = vmatprep.subr.mxu0 %v1282
    %2402 = vmatpush1.msra.mxu0 %v1281
    %2403 = vmatprep.subr.mxu0 %v1286
    %2404 = vmatpush1.msra.mxu0 %v1285
    %2405 = vmatprep.subr.mxu0 %v1290
    %2406 = vmatpush1.msra.mxu0 %v1289
    %2407 = vmatprep.subr.mxu0 %v1294
    %2408 = vmatpush1.msra.mxu0 %v1293
    %2409 = vmatprep.mubr.f32.mxu0 %v1040
    %2410 = vmatmul.mubr.f32.gmra.mrb[0].mxu0 %v1039
    %v2411 = vpop.f32.mrb[0].mxu0
    %v2412 = vadd.f32 %v1692, %v2411
    %v2413 = vpop.f32.mrb[0].mxu0
    %v2414 = vadd.f32 %v1696, %v2413
    %2415 = vmatprep.mubr.f32.mxu0 %v1048
    %2416 = vmatmul.mubr.f32.gmra.mrb[0].mxu0 %v1047
    %v2417 = vpop.f32.mrb[0].mxu0
    %v2418 = vadd.f32 %v1692, %v2417
    %v2419 = vpop.f32.mrb[0].mxu0
    %v2420 = vadd.f32 %v1696, %v2419
    %2421 = vmatprep.mubr.f32.mxu0 %v1056
    %2422 = vmatmul.mubr.f32.gmra.mrb[0].mxu0 %v1055
    %v2423 = vpop.f32.mrb[0].mxu0
    %v2424 = vadd.f32 %v1692, %v2423
    %v2425 = vpop.f32.mrb[0].mxu0
    %v2426 = vadd.f32 %v1696, %v2425
    %2427 = vmatprep.mubr.f32.mxu0 %v1064
    %2428 = vmatmul.mubr.f32.gmra.mrb[0].mxu0 %v1063
    %v2429 = vpop.f32.mrb[0].mxu0
    %v2430 = vadd.f32 %v1692, %v2429
    %v2431 = vpop.f32.mrb[0].mxu0
    %v2432 = vadd.f32 %v1696, %v2431
    %2433 = vmatprep.mubr.f32.mxu0 %v1072
    %2434 = vmatmul.mubr.f32.gmra.mrb[0].mxu0 %v1071
    %v2435 = vpop.f32.mrb[0].mxu0
    %v2436 = vadd.f32 %v1692, %v2435
    %v2437 = vpop.f32.mrb[0].mxu0
    %v2438 = vadd.f32 %v1696, %v2437
    %2439 = vmatprep.mubr.f32.mxu0 %v1080
    %2440 = vmatmul.mubr.f32.gmra.mrb[0].mxu0 %v1079
    %v2441 = vpop.f32.mrb[0].mxu0
    %v2442 = vadd.f32 %v1692, %v2441
    %v2443 = vpop.f32.mrb[0].mxu0
    %v2444 = vadd.f32 %v1696, %v2443
    %2445 = vmatprep.mubr.f32.mxu0 %v1088
    %2446 = vmatmul.mubr.f32.gmra.mrb[0].mxu0 %v1087
    %v2447 = vpop.f32.mrb[0].mxu0
    %v2448 = vadd.f32 %v1692, %v2447
    %v2449 = vpop.f32.mrb[0].mxu0
    %v2450 = vadd.f32 %v1696, %v2449
    %2451 = vmatprep.mubr.f32.mxu0 %v1096
    %2452 = vmatmul.mubr.f32.gmra.mrb[0].mxu0 %v1095
    %v2453 = vpop.f32.mrb[0].mxu0
    %v2454 = vadd.f32 %v1692, %v2453
    %v2455 = vpop.f32.mrb[0].mxu0
    %v2456 = vadd.f32 %v1696, %v2455
    %2457 = vmatprep.mubr.f32.mxu0 %v1104
    %2458 = vmatmul.mubr.f32.gmra.mrb[0].mxu0 %v1103
    %v2459 = vpop.f32.mrb[0].mxu0
    %v2460 = vadd.f32 %v1692, %v2459
    %v2461 = vpop.f32.mrb[0].mxu0
    %v2462 = vadd.f32 %v1696, %v2461
    %2463 = vmatprep.mubr.f32.mxu0 %v1112
    %2464 = vmatmul.mubr.f32.gmra.mrb[0].mxu0 %v1111
    %v2465 = vpop.f32.mrb[0].mxu0
    %v2466 = vadd.f32 %v1692, %v2465
    %v2467 = vpop.f32.mrb[0].mxu0
    %v2468 = vadd.f32 %v1696, %v2467
    %2469 = vmatprep.mubr.f32.mxu0 %v1120
    %2470 = vmatmul.mubr.f32.gmra.mrb[0].mxu0 %v1119
    %v2471 = vpop.f32.mrb[0].mxu0
    %v2472 = vadd.f32 %v1692, %v2471
    %v2473 = vpop.f32.mrb[0].mxu0
    %v2474 = vadd.f32 %v1696, %v2473
    %2475 = vmatprep.mubr.f32.mxu0 %v1128
    %2476 = vmatmul.mubr.f32.gmra.mrb[0].mxu0 %v1127
    %v2477 = vpop.f32.mrb[0].mxu0
    %v2478 = vadd.f32 %v1692, %v2477
    %v2479 = vpop.f32.mrb[0].mxu0
    %v2480 = vadd.f32 %v1696, %v2479
    %2481 = vmatprep.mubr.f32.mxu0 %v1136
    %2482 = vmatmul.mubr.f32.gmra.mrb[0].mxu0 %v1135
    %v2483 = vpop.f32.mrb[0].mxu0
    %v2484 = vadd.f32 %v1692, %v2483
    %v2485 = vpop.f32.mrb[0].mxu0
    %v2486 = vadd.f32 %v1696, %v2485
    %2487 = vmatprep.mubr.f32.mxu0 %v1144
    %2488 = vmatmul.mubr.f32.gmra.mrb[0].mxu0 %v1143
    %v2489 = vpop.f32.mrb[0].mxu0
    %v2490 = vadd.f32 %v1692, %v2489
    %v2491 = vpop.f32.mrb[0].mxu0
    %v2492 = vadd.f32 %v1696, %v2491
    %2493 = vmatprep.mubr.f32.mxu0 %v1152
    %2494 = vmatmul.mubr.f32.gmra.mrb[0].mxu0 %v1151
    %v2495 = vpop.f32.mrb[0].mxu0
    %v2496 = vadd.f32 %v1692, %v2495
    %v2497 = vpop.f32.mrb[0].mxu0
    %v2498 = vadd.f32 %v1696, %v2497
    %2499 = vmatprep.mubr.f32.mxu0 %v1160
    %2500 = vmatmul.mubr.f32.gmra.mrb[0].mxu0 %v1159
    %v2501 = vpop.f32.mrb[0].mxu0
    %v2502 = vadd.f32 %v1692, %v2501
    %v2503 = vpop.f32.mrb[0].mxu0
    %v2504 = vadd.f32 %v1696, %v2503
    %2505 = vdwg.mxu0
    %2506 = vmatprep.subr.mxu0 %v1298
    %2507 = vmatpush1.msra.mxu0 %v1297
    %2508 = vmatprep.subr.mxu0 %v1302
    %2509 = vmatpush1.msra.mxu0 %v1301
    %2510 = vmatprep.subr.mxu0 %v1306
    %2511 = vmatpush1.msra.mxu0 %v1305
    %2512 = vmatprep.subr.mxu0 %v1310
    %2513 = vmatpush1.msra.mxu0 %v1309
    %2514 = vmatprep.subr.mxu0 %v1314
    %2515 = vmatpush1.msra.mxu0 %v1313
    %2516 = vmatprep.subr.mxu0 %v1318
    %2517 = vmatpush1.msra.mxu0 %v1317
    %2518 = vmatprep.subr.mxu0 %v1322
    %2519 = vmatpush1.msra.mxu0 %v1321
    %2520 = vmatprep.subr.mxu0 %v1326
    %2521 = vmatpush1.msra.mxu0 %v1325
    %2522 = vmatprep.subr.mxu0 %v1330
    %2523 = vmatpush1.msra.mxu0 %v1329
    %2524 = vmatprep.subr.mxu0 %v1334
    %2525 = vmatpush1.msra.mxu0 %v1333
    %2526 = vmatprep.subr.mxu0 %v1338
    %2527 = vmatpush1.msra.mxu0 %v1337
    %2528 = vmatprep.subr.mxu0 %v1342
    %2529 = vmatpush1.msra.mxu0 %v1341
    %2530 = vmatprep.subr.mxu0 %v1346
    %2531 = vmatpush1.msra.mxu0 %v1345
    %2532 = vmatprep.subr.mxu0 %v1350
    %2533 = vmatpush1.msra.mxu0 %v1349
    %2534 = vmatprep.subr.mxu0 %v1354
    %2535 = vmatpush1.msra.mxu0 %v1353
    %2536 = vmatprep.subr.mxu0 %v1358
    %2537 = vmatpush1.msra.mxu0 %v1357
    %2538 = vmatprep.subr.mxu0 %v1362
    %2539 = vmatpush1.msra.mxu0 %v1361
    %2540 = vmatprep.subr.mxu0 %v1366
    %2541 = vmatpush1.msra.mxu0 %v1365
    %2542 = vmatprep.subr.mxu0 %v1370
    %2543 = vmatpush1.msra.mxu0 %v1369
    %2544 = vmatprep.subr.mxu0 %v1374
    %2545 = vmatpush1.msra.mxu0 %v1373
    %2546 = vmatprep.subr.mxu0 %v1378
    %2547 = vmatpush1.msra.mxu0 %v1377
    %2548 = vmatprep.subr.mxu0 %v1382
    %2549 = vmatpush1.msra.mxu0 %v1381
    %2550 = vmatprep.subr.mxu0 %v1386
    %2551 = vmatpush1.msra.mxu0 %v1385
    %2552 = vmatprep.subr.mxu0 %v1390
    %2553 = vmatpush1.msra.mxu0 %v1389
    %2554 = vmatprep.subr.mxu0 %v1394
    %2555 = vmatpush1.msra.mxu0 %v1393
    %2556 = vmatprep.subr.mxu0 %v1398
    %2557 = vmatpush1.msra.mxu0 %v1397
    %2558 = vmatprep.subr.mxu0 %v1402
    %2559 = vmatpush1.msra.mxu0 %v1401
    %2560 = vmatprep.subr.mxu0 %v1406
    %2561 = vmatpush1.msra.mxu0 %v1405
    %2562 = vmatprep.subr.mxu0 %v1410
    %2563 = vmatpush1.msra.mxu0 %v1409
    %2564 = vmatprep.subr.mxu0 %v1414
    %2565 = vmatpush1.msra.mxu0 %v1413
    %2566 = vmatprep.subr.mxu0 %v1418
    %2567 = vmatpush1.msra.mxu0 %v1417
    %2568 = vmatprep.subr.mxu0 %v1422
    %2569 = vmatpush1.msra.mxu0 %v1421
    %2570 = vmatprep.mubr.f32.mxu0 %v1042
    %2571 = vmatmul.mubr.f32.gmra.mrb[0].mxu0 %v1041
    %v2572 = vpop.f32.mrb[0].mxu0
    %v2573 = vadd.f32 %v2412, %v2572
    %v2574 = vpop.f32.mrb[0].mxu0
    %v2575 = vadd.f32 %v2414, %v2574
    %2576 = vmatprep.mubr.f32.mxu0 %v1050
    %2577 = vmatmul.mubr.f32.gmra.mrb[0].mxu0 %v1049
    %v2578 = vpop.f32.mrb[0].mxu0
    %v2579 = vadd.f32 %v2418, %v2578
    %v2580 = vpop.f32.mrb[0].mxu0
    %v2581 = vadd.f32 %v2420, %v2580
    %2582 = vmatprep.mubr.f32.mxu0 %v1058
    %2583 = vmatmul.mubr.f32.gmra.mrb[0].mxu0 %v1057
    %v2584 = vpop.f32.mrb[0].mxu0
    %v2585 = vadd.f32 %v2424, %v2584
    %v2586 = vpop.f32.mrb[0].mxu0
    %v2587 = vadd.f32 %v2426, %v2586
    %2588 = vmatprep.mubr.f32.mxu0 %v1066
    %2589 = vmatmul.mubr.f32.gmra.mrb[0].mxu0 %v1065
    %v2590 = vpop.f32.mrb[0].mxu0
    %v2591 = vadd.f32 %v2430, %v2590
    %v2592 = vpop.f32.mrb[0].mxu0
    %v2593 = vadd.f32 %v2432, %v2592
    %2594 = vmatprep.mubr.f32.mxu0 %v1074
    %2595 = vmatmul.mubr.f32.gmra.mrb[0].mxu0 %v1073
    %v2596 = vpop.f32.mrb[0].mxu0
    %v2597 = vadd.f32 %v2436, %v2596
    %v2598 = vpop.f32.mrb[0].mxu0
    %v2599 = vadd.f32 %v2438, %v2598
    %2600 = vmatprep.mubr.f32.mxu0 %v1082
    %2601 = vmatmul.mubr.f32.gmra.mrb[0].mxu0 %v1081
    %v2602 = vpop.f32.mrb[0].mxu0
    %v2603 = vadd.f32 %v2442, %v2602
    %v2604 = vpop.f32.mrb[0].mxu0
    %v2605 = vadd.f32 %v2444, %v2604
    %2606 = vmatprep.mubr.f32.mxu0 %v1090
    %2607 = vmatmul.mubr.f32.gmra.mrb[0].mxu0 %v1089
    %v2608 = vpop.f32.mrb[0].mxu0
    %v2609 = vadd.f32 %v2448, %v2608
    %v2610 = vpop.f32.mrb[0].mxu0
    %v2611 = vadd.f32 %v2450, %v2610
    %2612 = vmatprep.mubr.f32.mxu0 %v1098
    %2613 = vmatmul.mubr.f32.gmra.mrb[0].mxu0 %v1097
    %v2614 = vpop.f32.mrb[0].mxu0
    %v2615 = vadd.f32 %v2454, %v2614
    %v2616 = vpop.f32.mrb[0].mxu0
    %v2617 = vadd.f32 %v2456, %v2616
    %2618 = vmatprep.mubr.f32.mxu0 %v1106
    %2619 = vmatmul.mubr.f32.gmra.mrb[0].mxu0 %v1105
    %v2620 = vpop.f32.mrb[0].mxu0
    %v2621 = vadd.f32 %v2460, %v2620
    %v2622 = vpop.f32.mrb[0].mxu0
    %v2623 = vadd.f32 %v2462, %v2622
    %2624 = vmatprep.mubr.f32.mxu0 %v1114
    %2625 = vmatmul.mubr.f32.gmra.mrb[0].mxu0 %v1113
    %v2626 = vpop.f32.mrb[0].mxu0
    %v2627 = vadd.f32 %v2466, %v2626
    %v2628 = vpop.f32.mrb[0].mxu0
    %v2629 = vadd.f32 %v2468, %v2628
    %2630 = vmatprep.mubr.f32.mxu0 %v1122
    %2631 = vmatmul.mubr.f32.gmra.mrb[0].mxu0 %v1121
    %v2632 = vpop.f32.mrb[0].mxu0
    %v2633 = vadd.f32 %v2472, %v2632
    %v2634 = vpop.f32.mrb[0].mxu0
    %v2635 = vadd.f32 %v2474, %v2634
    %2636 = vmatprep.mubr.f32.mxu0 %v1130
    %2637 = vmatmul.mubr.f32.gmra.mrb[0].mxu0 %v1129
    %v2638 = vpop.f32.mrb[0].mxu0
    %v2639 = vadd.f32 %v2478, %v2638
    %v2640 = vpop.f32.mrb[0].mxu0
    %v2641 = vadd.f32 %v2480, %v2640
    %2642 = vmatprep.mubr.f32.mxu0 %v1138
    %2643 = vmatmul.mubr.f32.gmra.mrb[0].mxu0 %v1137
    %v2644 = vpop.f32.mrb[0].mxu0
    %v2645 = vadd.f32 %v2484, %v2644
    %v2646 = vpop.f32.mrb[0].mxu0
    %v2647 = vadd.f32 %v2486, %v2646
    %2648 = vmatprep.mubr.f32.mxu0 %v1146
    %2649 = vmatmul.mubr.f32.gmra.mrb[0].mxu0 %v1145
    %v2650 = vpop.f32.mrb[0].mxu0
    %v2651 = vadd.f32 %v2490, %v2650
    %v2652 = vpop.f32.mrb[0].mxu0
    %v2653 = vadd.f32 %v2492, %v2652
    %2654 = vmatprep.mubr.f32.mxu0 %v1154
    %2655 = vmatmul.mubr.f32.gmra.mrb[0].mxu0 %v1153
    %v2656 = vpop.f32.mrb[0].mxu0
    %v2657 = vadd.f32 %v2496, %v2656
    %v2658 = vpop.f32.mrb[0].mxu0
    %v2659 = vadd.f32 %v2498, %v2658
    %2660 = vmatprep.mubr.f32.mxu0 %v1162
    %2661 = vmatmul.mubr.f32.gmra.mrb[0].mxu0 %v1161
    %v2662 = vpop.f32.mrb[0].mxu0
    %v2663 = vadd.f32 %v2502, %v2662
    %v2664 = vpop.f32.mrb[0].mxu0
    %v2665 = vadd.f32 %v2504, %v2664
    %2666 = vdwg.mxu0
    %2667 = vmatprep.subr.mxu0 %v1426
    %2668 = vmatpush1.msra.mxu0 %v1425
    %2669 = vmatprep.subr.mxu0 %v1430
    %2670 = vmatpush1.msra.mxu0 %v1429
    %2671 = vmatprep.subr.mxu0 %v1434
    %2672 = vmatpush1.msra.mxu0 %v1433
    %2673 = vmatprep.subr.mxu0 %v1438
    %2674 = vmatpush1.msra.mxu0 %v1437
    %2675 = vmatprep.subr.mxu0 %v1442
    %2676 = vmatpush1.msra.mxu0 %v1441
    %2677 = vmatprep.subr.mxu0 %v1446
    %2678 = vmatpush1.msra.mxu0 %v1445
    %2679 = vmatprep.subr.mxu0 %v1450
    %2680 = vmatpush1.msra.mxu0 %v1449
    %2681 = vmatprep.subr.mxu0 %v1454
    %2682 = vmatpush1.msra.mxu0 %v1453
    %2683 = vmatprep.subr.mxu0 %v1458
    %2684 = vmatpush1.msra.mxu0 %v1457
    %2685 = vmatprep.subr.mxu0 %v1462
    %2686 = vmatpush1.msra.mxu0 %v1461
    %2687 = vmatprep.subr.mxu0 %v1466
    %2688 = vmatpush1.msra.mxu0 %v1465
    %2689 = vmatprep.subr.mxu0 %v1470
    %2690 = vmatpush1.msra.mxu0 %v1469
    %2691 = vmatprep.subr.mxu0 %v1474
    %2692 = vmatpush1.msra.mxu0 %v1473
    %2693 = vmatprep.subr.mxu0 %v1478
    %2694 = vmatpush1.msra.mxu0 %v1477
    %2695 = vmatprep.subr.mxu0 %v1482
    %2696 = vmatpush1.msra.mxu0 %v1481
    %2697 = vmatprep.subr.mxu0 %v1486
    %2698 = vmatpush1.msra.mxu0 %v1485
    %2699 = vmatprep.subr.mxu0 %v1490
    %2700 = vmatpush1.msra.mxu0 %v1489
    %2701 = vmatprep.subr.mxu0 %v1494
    %2702 = vmatpush1.msra.mxu0 %v1493
    %2703 = vmatprep.subr.mxu0 %v1498
    %2704 = vmatpush1.msra.mxu0 %v1497
    %2705 = vmatprep.subr.mxu0 %v1502
    %2706 = vmatpush1.msra.mxu0 %v1501
    %2707 = vmatprep.subr.mxu0 %v1506
    %2708 = vmatpush1.msra.mxu0 %v1505
    %2709 = vmatprep.subr.mxu0 %v1510
    %2710 = vmatpush1.msra.mxu0 %v1509
    %2711 = vmatprep.subr.mxu0 %v1514
    %2712 = vmatpush1.msra.mxu0 %v1513
    %2713 = vmatprep.subr.mxu0 %v1518
    %2714 = vmatpush1.msra.mxu0 %v1517
    %2715 = vmatprep.subr.mxu0 %v1522
    %2716 = vmatpush1.msra.mxu0 %v1521
    %2717 = vmatprep.subr.mxu0 %v1526
    %2718 = vmatpush1.msra.mxu0 %v1525
    %2719 = vmatprep.subr.mxu0 %v1530
    %2720 = vmatpush1.msra.mxu0 %v1529
    %2721 = vmatprep.subr.mxu0 %v1534
    %2722 = vmatpush1.msra.mxu0 %v1533
    %2723 = vmatprep.subr.mxu0 %v1538
    %2724 = vmatpush1.msra.mxu0 %v1537
    %2725 = vmatprep.subr.mxu0 %v1542
    %2726 = vmatpush1.msra.mxu0 %v1541
    %2727 = vmatprep.subr.mxu0 %v1546
    %2728 = vmatpush1.msra.mxu0 %v1545
    %2729 = vmatprep.subr.mxu0 %v1550
    %2730 = vmatpush1.msra.mxu0 %v1549
    %2731 = vmatprep.mubr.f32.mxu0 %v1044
    %2732 = vmatmul.mubr.f32.gmra.mrb[0].mxu0 %v1043
    %v2733 = vpop.f32.mrb[0].mxu0
    %v2734 = vadd.f32 %v2573, %v2733
    %v2735 = vpop.f32.mrb[0].mxu0
    %v2736 = vadd.f32 %v2575, %v2735
    %2737 = vmatprep.mubr.f32.mxu0 %v1052
    %2738 = vmatmul.mubr.f32.gmra.mrb[0].mxu0 %v1051
    %v2739 = vpop.f32.mrb[0].mxu0
    %v2740 = vadd.f32 %v2579, %v2739
    %v2741 = vpop.f32.mrb[0].mxu0
    %v2742 = vadd.f32 %v2581, %v2741
    %2743 = vmatprep.mubr.f32.mxu0 %v1060
    %2744 = vmatmul.mubr.f32.gmra.mrb[0].mxu0 %v1059
    %v2745 = vpop.f32.mrb[0].mxu0
    %v2746 = vadd.f32 %v2585, %v2745
    %v2747 = vpop.f32.mrb[0].mxu0
    %v2748 = vadd.f32 %v2587, %v2747
    %2749 = vmatprep.mubr.f32.mxu0 %v1068
    %2750 = vmatmul.mubr.f32.gmra.mrb[0].mxu0 %v1067
    %v2751 = vpop.f32.mrb[0].mxu0
    %v2752 = vadd.f32 %v2591, %v2751
    %v2753 = vpop.f32.mrb[0].mxu0
    %v2754 = vadd.f32 %v2593, %v2753
    %2755 = vmatprep.mubr.f32.mxu0 %v1076
    %2756 = vmatmul.mubr.f32.gmra.mrb[0].mxu0 %v1075
    %v2757 = vpop.f32.mrb[0].mxu0
    %v2758 = vadd.f32 %v2597, %v2757
    %v2759 = vpop.f32.mrb[0].mxu0
    %v2760 = vadd.f32 %v2599, %v2759
    %2761 = vmatprep.mubr.f32.mxu0 %v1084
    %2762 = vmatmul.mubr.f32.gmra.mrb[0].mxu0 %v1083
    %v2763 = vpop.f32.mrb[0].mxu0
    %v2764 = vadd.f32 %v2603, %v2763
    %v2765 = vpop.f32.mrb[0].mxu0
    %v2766 = vadd.f32 %v2605, %v2765
    %2767 = vmatprep.mubr.f32.mxu0 %v1092
    %2768 = vmatmul.mubr.f32.gmra.mrb[0].mxu0 %v1091
    %v2769 = vpop.f32.mrb[0].mxu0
    %v2770 = vadd.f32 %v2609, %v2769
    %v2771 = vpop.f32.mrb[0].mxu0
    %v2772 = vadd.f32 %v2611, %v2771
    %2773 = vmatprep.mubr.f32.mxu0 %v1100
    %2774 = vmatmul.mubr.f32.gmra.mrb[0].mxu0 %v1099
    %v2775 = vpop.f32.mrb[0].mxu0
    %v2776 = vadd.f32 %v2615, %v2775
    %v2777 = vpop.f32.mrb[0].mxu0
    %v2778 = vadd.f32 %v2617, %v2777
    %2779 = vmatprep.mubr.f32.mxu0 %v1108
    %2780 = vmatmul.mubr.f32.gmra.mrb[0].mxu0 %v1107
    %v2781 = vpop.f32.mrb[0].mxu0
    %v2782 = vadd.f32 %v2621, %v2781
    %v2783 = vpop.f32.mrb[0].mxu0
    %v2784 = vadd.f32 %v2623, %v2783
    %2785 = vmatprep.mubr.f32.mxu0 %v1116
    %2786 = vmatmul.mubr.f32.gmra.mrb[0].mxu0 %v1115
    %v2787 = vpop.f32.mrb[0].mxu0
    %v2788 = vadd.f32 %v2627, %v2787
    %v2789 = vpop.f32.mrb[0].mxu0
    %v2790 = vadd.f32 %v2629, %v2789
    %2791 = vmatprep.mubr.f32.mxu0 %v1124
    %2792 = vmatmul.mubr.f32.gmra.mrb[0].mxu0 %v1123
    %v2793 = vpop.f32.mrb[0].mxu0
    %v2794 = vadd.f32 %v2633, %v2793
    %v2795 = vpop.f32.mrb[0].mxu0
    %v2796 = vadd.f32 %v2635, %v2795
    %2797 = vmatprep.mubr.f32.mxu0 %v1132
    %2798 = vmatmul.mubr.f32.gmra.mrb[0].mxu0 %v1131
    %v2799 = vpop.f32.mrb[0].mxu0
    %v2800 = vadd.f32 %v2639, %v2799
    %v2801 = vpop.f32.mrb[0].mxu0
    %v2802 = vadd.f32 %v2641, %v2801
    %2803 = vmatprep.mubr.f32.mxu0 %v1140
    %2804 = vmatmul.mubr.f32.gmra.mrb[0].mxu0 %v1139
    %v2805 = vpop.f32.mrb[0].mxu0
    %v2806 = vadd.f32 %v2645, %v2805
    %v2807 = vpop.f32.mrb[0].mxu0
    %v2808 = vadd.f32 %v2647, %v2807
    %2809 = vmatprep.mubr.f32.mxu0 %v1148
    %2810 = vmatmul.mubr.f32.gmra.mrb[0].mxu0 %v1147
    %v2811 = vpop.f32.mrb[0].mxu0
    %v2812 = vadd.f32 %v2651, %v2811
    %v2813 = vpop.f32.mrb[0].mxu0
    %v2814 = vadd.f32 %v2653, %v2813
    %2815 = vmatprep.mubr.f32.mxu0 %v1156
    %2816 = vmatmul.mubr.f32.gmra.mrb[0].mxu0 %v1155
    %v2817 = vpop.f32.mrb[0].mxu0
    %v2818 = vadd.f32 %v2657, %v2817
    %v2819 = vpop.f32.mrb[0].mxu0
    %v2820 = vadd.f32 %v2659, %v2819
    %2821 = vmatprep.mubr.f32.mxu0 %v1164
    %2822 = vmatmul.mubr.f32.gmra.mrb[0].mxu0 %v1163
    %v2823 = vpop.f32.mrb[0].mxu0
    %v2824 = vadd.f32 %v2663, %v2823
    %v2825 = vpop.f32.mrb[0].mxu0
    %v2826 = vadd.f32 %v2665, %v2825
    %2827 = vdwg.mxu0
    %2828 = vmatprep.subr.mxu0 %v1554
    %2829 = vmatpush1.msra.mxu0 %v1553
    %2830 = vmatprep.subr.mxu0 %v1558
    %2831 = vmatpush1.msra.mxu0 %v1557
    %2832 = vmatprep.subr.mxu0 %v1562
    %2833 = vmatpush1.msra.mxu0 %v1561
    %2834 = vmatprep.subr.mxu0 %v1566
    %2835 = vmatpush1.msra.mxu0 %v1565
    %2836 = vmatprep.subr.mxu0 %v1570
    %2837 = vmatpush1.msra.mxu0 %v1569
    %2838 = vmatprep.subr.mxu0 %v1574
    %2839 = vmatpush1.msra.mxu0 %v1573
    %2840 = vmatprep.subr.mxu0 %v1578
    %2841 = vmatpush1.msra.mxu0 %v1577
    %2842 = vmatprep.subr.mxu0 %v1582
    %2843 = vmatpush1.msra.mxu0 %v1581
    %2844 = vmatprep.subr.mxu0 %v1586
    %2845 = vmatpush1.msra.mxu0 %v1585
    %2846 = vmatprep.subr.mxu0 %v1590
    %2847 = vmatpush1.msra.mxu0 %v1589
    %2848 = vmatprep.subr.mxu0 %v1594
    %2849 = vmatpush1.msra.mxu0 %v1593
    %2850 = vmatprep.subr.mxu0 %v1598
    %2851 = vmatpush1.msra.mxu0 %v1597
    %2852 = vmatprep.subr.mxu0 %v1602
    %2853 = vmatpush1.msra.mxu0 %v1601
    %2854 = vmatprep.subr.mxu0 %v1606
    %2855 = vmatpush1.msra.mxu0 %v1605
    %2856 = vmatprep.subr.mxu0 %v1610
    %2857 = vmatpush1.msra.mxu0 %v1609
    %2858 = vmatprep.subr.mxu0 %v1614
    %2859 = vmatpush1.msra.mxu0 %v1613
    %2860 = vmatprep.subr.mxu0 %v1618
    %2861 = vmatpush1.msra.mxu0 %v1617
    %2862 = vmatprep.subr.mxu0 %v1622
    %2863 = vmatpush1.msra.mxu0 %v1621
    %2864 = vmatprep.subr.mxu0 %v1626
    %2865 = vmatpush1.msra.mxu0 %v1625
    %2866 = vmatprep.subr.mxu0 %v1630
    %2867 = vmatpush1.msra.mxu0 %v1629
    %2868 = vmatprep.subr.mxu0 %v1634
    %2869 = vmatpush1.msra.mxu0 %v1633
    %2870 = vmatprep.subr.mxu0 %v1638
    %2871 = vmatpush1.msra.mxu0 %v1637
    %2872 = vmatprep.subr.mxu0 %v1642
    %2873 = vmatpush1.msra.mxu0 %v1641
    %2874 = vmatprep.subr.mxu0 %v1646
    %2875 = vmatpush1.msra.mxu0 %v1645
    %2876 = vmatprep.subr.mxu0 %v1650
    %2877 = vmatpush1.msra.mxu0 %v1649
    %2878 = vmatprep.subr.mxu0 %v1654
    %2879 = vmatpush1.msra.mxu0 %v1653
    %2880 = vmatprep.subr.mxu0 %v1658
    %2881 = vmatpush1.msra.mxu0 %v1657
    %2882 = vmatprep.subr.mxu0 %v1662
    %2883 = vmatpush1.msra.mxu0 %v1661
    %2884 = vmatprep.subr.mxu0 %v1666
    %2885 = vmatpush1.msra.mxu0 %v1665
    %2886 = vmatprep.subr.mxu0 %v1670
    %2887 = vmatpush1.msra.mxu0 %v1669
    %2888 = vmatprep.subr.mxu0 %v1674
    %2889 = vmatpush1.msra.mxu0 %v1673
    %2890 = vmatprep.subr.mxu0 %v1678
    %2891 = vmatpush1.msra.mxu0 %v1677
    %2892 = vmatprep.mubr.f32.mxu0 %v1046
    %2893 = vmatmul.mubr.f32.gmra.mrb[0].mxu0 %v1045
    %v2894 = vpop.f32.mrb[0].mxu0
    %v2895 = vadd.f32 %v2734, %v2894
    %v2896 = vpop.f32.mrb[0].mxu0
    %v2897 = vadd.f32 %v2736, %v2896
    %2898 = vmatprep.mubr.f32.mxu0 %v1054
    %2899 = vmatmul.mubr.f32.gmra.mrb[0].mxu0 %v1053
    %v2900 = vpop.f32.mrb[0].mxu0
    %v2901 = vadd.f32 %v2740, %v2900
    %v2902 = vpop.f32.mrb[0].mxu0
    %v2903 = vadd.f32 %v2742, %v2902
    %2904 = vmatprep.mubr.f32.mxu0 %v1062
    %2905 = vmatmul.mubr.f32.gmra.mrb[0].mxu0 %v1061
    %v2906 = vpop.f32.mrb[0].mxu0
    %v2907 = vadd.f32 %v2746, %v2906
    %v2908 = vpop.f32.mrb[0].mxu0
    %v2909 = vadd.f32 %v2748, %v2908
    %2910 = vmatprep.mubr.f32.mxu0 %v1070
    %2911 = vmatmul.mubr.f32.gmra.mrb[0].mxu0 %v1069
    %v2912 = vpop.f32.mrb[0].mxu0
    %v2913 = vadd.f32 %v2752, %v2912
    %v2914 = vpop.f32.mrb[0].mxu0
    %v2915 = vadd.f32 %v2754, %v2914
    %2916 = vmatprep.mubr.f32.mxu0 %v1078
    %2917 = vmatmul.mubr.f32.gmra.mrb[0].mxu0 %v1077
    %v2918 = vpop.f32.mrb[0].mxu0
    %v2919 = vadd.f32 %v2758, %v2918
    %v2920 = vpop.f32.mrb[0].mxu0
    %v2921 = vadd.f32 %v2760, %v2920
    %2922 = vmatprep.mubr.f32.mxu0 %v1086
    %2923 = vmatmul.mubr.f32.gmra.mrb[0].mxu0 %v1085
    %v2924 = vpop.f32.mrb[0].mxu0
    %v2925 = vadd.f32 %v2764, %v2924
    %v2926 = vpop.f32.mrb[0].mxu0
    %v2927 = vadd.f32 %v2766, %v2926
    %2928 = vmatprep.mubr.f32.mxu0 %v1094
    %2929 = vmatmul.mubr.f32.gmra.mrb[0].mxu0 %v1093
    %v2930 = vpop.f32.mrb[0].mxu0
    %v2931 = vadd.f32 %v2770, %v2930
    %v2932 = vpop.f32.mrb[0].mxu0
    %v2933 = vadd.f32 %v2772, %v2932
    %2934 = vmatprep.mubr.f32.mxu0 %v1102
    %2935 = vmatmul.mubr.f32.gmra.mrb[0].mxu0 %v1101
    %v2936 = vpop.f32.mrb[0].mxu0
    %v2937 = vadd.f32 %v2776, %v2936
    %v2938 = vpop.f32.mrb[0].mxu0
    %v2939 = vadd.f32 %v2778, %v2938
    %2940 = vmatprep.mubr.f32.mxu0 %v1110
    %2941 = vmatmul.mubr.f32.gmra.mrb[0].mxu0 %v1109
    %v2942 = vpop.f32.mrb[0].mxu0
    %v2943 = vadd.f32 %v2782, %v2942
    %v2944 = vpop.f32.mrb[0].mxu0
    %v2945 = vadd.f32 %v2784, %v2944
    %2946 = vmatprep.mubr.f32.mxu0 %v1118
    %2947 = vmatmul.mubr.f32.gmra.mrb[0].mxu0 %v1117
    %v2948 = vpop.f32.mrb[0].mxu0
    %v2949 = vadd.f32 %v2788, %v2948
    %v2950 = vpop.f32.mrb[0].mxu0
    %v2951 = vadd.f32 %v2790, %v2950
    %2952 = vmatprep.mubr.f32.mxu0 %v1126
    %2953 = vmatmul.mubr.f32.gmra.mrb[0].mxu0 %v1125
    %v2954 = vpop.f32.mrb[0].mxu0
    %v2955 = vadd.f32 %v2794, %v2954
    %v2956 = vpop.f32.mrb[0].mxu0
    %v2957 = vadd.f32 %v2796, %v2956
    %2958 = vmatprep.mubr.f32.mxu0 %v1134
    %2959 = vmatmul.mubr.f32.gmra.mrb[0].mxu0 %v1133
    %v2960 = vpop.f32.mrb[0].mxu0
    %v2961 = vadd.f32 %v2800, %v2960
    %v2962 = vpop.f32.mrb[0].mxu0
    %v2963 = vadd.f32 %v2802, %v2962
    %2964 = vmatprep.mubr.f32.mxu0 %v1142
    %2965 = vmatmul.mubr.f32.gmra.mrb[0].mxu0 %v1141
    %v2966 = vpop.f32.mrb[0].mxu0
    %v2967 = vadd.f32 %v2806, %v2966
    %v2968 = vpop.f32.mrb[0].mxu0
    %v2969 = vadd.f32 %v2808, %v2968
    %2970 = vmatprep.mubr.f32.mxu0 %v1150
    %2971 = vmatmul.mubr.f32.gmra.mrb[0].mxu0 %v1149
    %v2972 = vpop.f32.mrb[0].mxu0
    %v2973 = vadd.f32 %v2812, %v2972
    %v2974 = vpop.f32.mrb[0].mxu0
    %v2975 = vadd.f32 %v2814, %v2974
    %2976 = vmatprep.mubr.f32.mxu0 %v1158
    %2977 = vmatmul.mubr.f32.gmra.mrb[0].mxu0 %v1157
    %v2978 = vpop.f32.mrb[0].mxu0
    %v2979 = vadd.f32 %v2818, %v2978
    %v2980 = vpop.f32.mrb[0].mxu0
    %v2981 = vadd.f32 %v2820, %v2980
    %2982 = vmatprep.mubr.f32.mxu0 %v1166
    %2983 = vmatmul.mubr.f32.gmra.mrb[0].mxu0 %v1165
    %v2984 = vpop.f32.mrb[0].mxu0
    %v2985 = vadd.f32 %v2824, %v2984
    %v2986 = vpop.f32.mrb[0].mxu0
    %v2987 = vadd.f32 %v2826, %v2986
    %2988 = vdwg.mxu0
    %v2989 = vmax.f32 %v2251, 0.0
    %v2990 = vmax.f32 %v2253, 0.0
    %v2991 = vmax.f32 %v2895, 0.0
    %v2992 = vmax.f32 %v2897, 0.0
    %v2993 = vmax.f32 %v2257, 0.0
    %v2994 = vmax.f32 %v2259, 0.0
    %v2995 = vmax.f32 %v2901, 0.0
    %v2996 = vmax.f32 %v2903, 0.0
    %v2997 = vmax.f32 %v2263, 0.0
    %v2998 = vmax.f32 %v2265, 0.0
    %v2999 = vmax.f32 %v2907, 0.0
    %v3000 = vmax.f32 %v2909, 0.0
    %v3001 = vmax.f32 %v2269, 0.0
    %v3002 = vmax.f32 %v2271, 0.0
    %v3003 = vmax.f32 %v2913, 0.0
    %v3004 = vmax.f32 %v2915, 0.0
    %v3005 = vmax.f32 %v2275, 0.0
    %v3006 = vmax.f32 %v2277, 0.0
    %v3007 = vmax.f32 %v2919, 0.0
    %v3008 = vmax.f32 %v2921, 0.0
    %v3009 = vmax.f32 %v2281, 0.0
    %v3010 = vmax.f32 %v2283, 0.0
    %v3011 = vmax.f32 %v2925, 0.0
    %v3012 = vmax.f32 %v2927, 0.0
    %v3013 = vmax.f32 %v2287, 0.0
    %v3014 = vmax.f32 %v2289, 0.0
    %v3015 = vmax.f32 %v2931, 0.0
    %v3016 = vmax.f32 %v2933, 0.0
    %v3017 = vmax.f32 %v2293, 0.0
    %v3018 = vmax.f32 %v2295, 0.0
    %v3019 = vmax.f32 %v2937, 0.0
    %v3020 = vmax.f32 %v2939, 0.0
    %v3021 = vmax.f32 %v2299, 0.0
    %v3022 = vmax.f32 %v2301, 0.0
    %v3023 = vmax.f32 %v2943, 0.0
    %v3024 = vmax.f32 %v2945, 0.0
    %v3025 = vmax.f32 %v2305, 0.0
    %v3026 = vmax.f32 %v2307, 0.0
    %v3027 = vmax.f32 %v2949, 0.0
    %v3028 = vmax.f32 %v2951, 0.0
    %v3029 = vmax.f32 %v2311, 0.0
    %v3030 = vmax.f32 %v2313, 0.0
    %v3031 = vmax.f32 %v2955, 0.0
    %v3032 = vmax.f32 %v2957, 0.0
    %v3033 = vmax.f32 %v2317, 0.0
    %v3034 = vmax.f32 %v2319, 0.0
    %v3035 = vmax.f32 %v2961, 0.0
    %v3036 = vmax.f32 %v2963, 0.0
    %v3037 = vmax.f32 %v2323, 0.0
    %v3038 = vmax.f32 %v2325, 0.0
    %v3039 = vmax.f32 %v2967, 0.0
    %v3040 = vmax.f32 %v2969, 0.0
    %v3041 = vmax.f32 %v2329, 0.0
    %v3042 = vmax.f32 %v2331, 0.0
    %v3043 = vmax.f32 %v2973, 0.0
    %v3044 = vmax.f32 %v2975, 0.0
    %v3045 = vmax.f32 %v2335, 0.0
    %v3046 = vmax.f32 %v2337, 0.0
    %v3047 = vmax.f32 %v2979, 0.0
    %v3048 = vmax.f32 %v2981, 0.0
    %v3049 = vmax.f32 %v2341, 0.0
    %v3050 = vmax.f32 %v2343, 0.0
    %v3051 = vmax.f32 %v2985, 0.0
    %v3052 = vmax.f32 %v2987, 0.0
    %v3053 = vld [vmem:[#allocation11] sm:$0xff]
    %v3054 = vld [vmem:[#allocation11 + $0x8] sm:$0xff]
    %v3055 = vld [vmem:[#allocation11 + $0x10] sm:$0xff]
    %v3056 = vld [vmem:[#allocation11 + $0x18] sm:$0xff]
    %v3057 = vld [vmem:[#allocation11 + $0x20] sm:$0xff]
    %v3058 = vld [vmem:[#allocation11 + $0x28] sm:$0xff]
    %v3059 = vld [vmem:[#allocation11 + $0x30] sm:$0xff]
    %v3060 = vld [vmem:[#allocation11 + $0x38] sm:$0xff]
    %v3061 = vld [vmem:[#allocation11 + $0x40] sm:$0xff]
    %v3062 = vld [vmem:[#allocation11 + $0x48] sm:$0xff]
    %v3063 = vld [vmem:[#allocation11 + $0x50] sm:$0xff]
    %v3064 = vld [vmem:[#allocation11 + $0x58] sm:$0xff]
    %v3065 = vld [vmem:[#allocation11 + $0x60] sm:$0xff]
    %v3066 = vld [vmem:[#allocation11 + $0x68] sm:$0xff]
    %v3067 = vld [vmem:[#allocation11 + $0x70] sm:$0xff]
    %v3068 = vld [vmem:[#allocation11 + $0x78] sm:$0xff]
    %v3069 = vld [vmem:[#allocation11 + $0x80] sm:$0xff]
    %v3070 = vld [vmem:[#allocation11 + $0x88] sm:$0xff]
    %v3071 = vld [vmem:[#allocation11 + $0x90] sm:$0xff]
    %v3072 = vld [vmem:[#allocation11 + $0x98] sm:$0xff]
    %v3073 = vld [vmem:[#allocation11 + $0xa0] sm:$0xff]
    %v3074 = vld [vmem:[#allocation11 + $0xa8] sm:$0xff]
    %v3075 = vld [vmem:[#allocation11 + $0xb0] sm:$0xff]
    %v3076 = vld [vmem:[#allocation11 + $0xb8] sm:$0xff]
    %v3077 = vld [vmem:[#allocation11 + $0xc0] sm:$0xff]
    %v3078 = vld [vmem:[#allocation11 + $0xc8] sm:$0xff]
    %v3079 = vld [vmem:[#allocation11 + $0xd0] sm:$0xff]
    %v3080 = vld [vmem:[#allocation11 + $0xd8] sm:$0xff]
    %v3081 = vld [vmem:[#allocation11 + $0xe0] sm:$0xff]
    %v3082 = vld [vmem:[#allocation11 + $0xe8] sm:$0xff]
    %v3083 = vld [vmem:[#allocation11 + $0xf0] sm:$0xff]
    %v3084 = vld [vmem:[#allocation11 + $0xf8] sm:$0xff]
    %v3085 = vld [vmem:[#allocation11 + $0x100] sm:$0xff]
    %v3086 = vld [vmem:[#allocation11 + $0x108] sm:$0xff]
    %v3087 = vld [vmem:[#allocation11 + $0x110] sm:$0xff]
    %v3088 = vld [vmem:[#allocation11 + $0x118] sm:$0xff]
    %v3089 = vld [vmem:[#allocation11 + $0x120] sm:$0xff]
    %v3090 = vld [vmem:[#allocation11 + $0x128] sm:$0xff]
    %v3091 = vld [vmem:[#allocation11 + $0x130] sm:$0xff]
    %v3092 = vld [vmem:[#allocation11 + $0x138] sm:$0xff]
    %v3093 = vld [vmem:[#allocation11 + $0x140] sm:$0xff]
    %v3094 = vld [vmem:[#allocation11 + $0x148] sm:$0xff]
    %v3095 = vld [vmem:[#allocation11 + $0x150] sm:$0xff]
    %v3096 = vld [vmem:[#allocation11 + $0x158] sm:$0xff]
    %v3097 = vld [vmem:[#allocation11 + $0x160] sm:$0xff]
    %v3098 = vld [vmem:[#allocation11 + $0x168] sm:$0xff]
    %v3099 = vld [vmem:[#allocation11 + $0x170] sm:$0xff]
    %v3100 = vld [vmem:[#allocation11 + $0x178] sm:$0xff]
    %v3101 = vld [vmem:[#allocation11 + $0x180] sm:$0xff]
    %v3102 = vld [vmem:[#allocation11 + $0x188] sm:$0xff]
    %v3103 = vld [vmem:[#allocation11 + $0x190] sm:$0xff]
    %v3104 = vld [vmem:[#allocation11 + $0x198] sm:$0xff]
    %v3105 = vld [vmem:[#allocation11 + $0x1a0] sm:$0xff]
    %v3106 = vld [vmem:[#allocation11 + $0x1a8] sm:$0xff]
    %v3107 = vld [vmem:[#allocation11 + $0x1b0] sm:$0xff]
    %v3108 = vld [vmem:[#allocation11 + $0x1b8] sm:$0xff]
    %v3109 = vld [vmem:[#allocation11 + $0x1c0] sm:$0xff]
    %v3110 = vld [vmem:[#allocation11 + $0x1c8] sm:$0xff]
    %v3111 = vld [vmem:[#allocation11 + $0x1d0] sm:$0xff]
    %v3112 = vld [vmem:[#allocation11 + $0x1d8] sm:$0xff]
    %v3113 = vld [vmem:[#allocation11 + $0x1e0] sm:$0xff]
    %v3114 = vld [vmem:[#allocation11 + $0x1e8] sm:$0xff]
    %v3115 = vld [vmem:[#allocation11 + $0x1f0] sm:$0xff]
    %v3116 = vld [vmem:[#allocation11 + $0x1f8] sm:$0xff]
    %v3117 = vld [vmem:[#allocation11 + $0x200] sm:$0xff]
    %v3118 = vld [vmem:[#allocation11 + $0x208] sm:$0xff]
    %v3119 = vld [vmem:[#allocation11 + $0x210] sm:$0xff]
    %v3120 = vld [vmem:[#allocation11 + $0x218] sm:$0xff]
    %v3121 = vld [vmem:[#allocation11 + $0x220] sm:$0xff]
    %v3122 = vld [vmem:[#allocation11 + $0x228] sm:$0xff]
    %v3123 = vld [vmem:[#allocation11 + $0x230] sm:$0xff]
    %v3124 = vld [vmem:[#allocation11 + $0x238] sm:$0xff]
    %v3125 = vld [vmem:[#allocation11 + $0x240] sm:$0xff]
    %v3126 = vld [vmem:[#allocation11 + $0x248] sm:$0xff]
    %v3127 = vld [vmem:[#allocation11 + $0x250] sm:$0xff]
    %v3128 = vld [vmem:[#allocation11 + $0x258] sm:$0xff]
    %v3129 = vld [vmem:[#allocation11 + $0x260] sm:$0xff]
    %v3130 = vld [vmem:[#allocation11 + $0x268] sm:$0xff]
    %v3131 = vld [vmem:[#allocation11 + $0x270] sm:$0xff]
    %v3132 = vld [vmem:[#allocation11 + $0x278] sm:$0xff]
    %v3133 = vld [vmem:[#allocation11 + $0x280] sm:$0xff]
    %v3134 = vld [vmem:[#allocation11 + $0x288] sm:$0xff]
    %v3135 = vld [vmem:[#allocation11 + $0x290] sm:$0xff]
    %v3136 = vld [vmem:[#allocation11 + $0x298] sm:$0xff]
    %v3137 = vld [vmem:[#allocation11 + $0x2a0] sm:$0xff]
    %v3138 = vld [vmem:[#allocation11 + $0x2a8] sm:$0xff]
    %v3139 = vld [vmem:[#allocation11 + $0x2b0] sm:$0xff]
    %v3140 = vld [vmem:[#allocation11 + $0x2b8] sm:$0xff]
    %v3141 = vld [vmem:[#allocation11 + $0x2c0] sm:$0xff]
    %v3142 = vld [vmem:[#allocation11 + $0x2c8] sm:$0xff]
    %v3143 = vld [vmem:[#allocation11 + $0x2d0] sm:$0xff]
    %v3144 = vld [vmem:[#allocation11 + $0x2d8] sm:$0xff]
    %v3145 = vld [vmem:[#allocation11 + $0x2e0] sm:$0xff]
    %v3146 = vld [vmem:[#allocation11 + $0x2e8] sm:$0xff]
    %v3147 = vld [vmem:[#allocation11 + $0x2f0] sm:$0xff]
    %v3148 = vld [vmem:[#allocation11 + $0x2f8] sm:$0xff]
    %v3149 = vld [vmem:[#allocation11 + $0x300] sm:$0xff]
    %v3150 = vld [vmem:[#allocation11 + $0x308] sm:$0xff]
    %v3151 = vld [vmem:[#allocation11 + $0x310] sm:$0xff]
    %v3152 = vld [vmem:[#allocation11 + $0x318] sm:$0xff]
    %v3153 = vld [vmem:[#allocation11 + $0x320] sm:$0xff]
    %v3154 = vld [vmem:[#allocation11 + $0x328] sm:$0xff]
    %v3155 = vld [vmem:[#allocation11 + $0x330] sm:$0xff]
    %v3156 = vld [vmem:[#allocation11 + $0x338] sm:$0xff]
    %v3157 = vld [vmem:[#allocation11 + $0x340] sm:$0xff]
    %v3158 = vld [vmem:[#allocation11 + $0x348] sm:$0xff]
    %v3159 = vld [vmem:[#allocation11 + $0x350] sm:$0xff]
    %v3160 = vld [vmem:[#allocation11 + $0x358] sm:$0xff]
    %v3161 = vld [vmem:[#allocation11 + $0x360] sm:$0xff]
    %v3162 = vld [vmem:[#allocation11 + $0x368] sm:$0xff]
    %v3163 = vld [vmem:[#allocation11 + $0x370] sm:$0xff]
    %v3164 = vld [vmem:[#allocation11 + $0x378] sm:$0xff]
    %v3165 = vld [vmem:[#allocation11 + $0x380] sm:$0xff]
    %v3166 = vld [vmem:[#allocation11 + $0x388] sm:$0xff]
    %v3167 = vld [vmem:[#allocation11 + $0x390] sm:$0xff]
    %v3168 = vld [vmem:[#allocation11 + $0x398] sm:$0xff]
    %v3169 = vld [vmem:[#allocation11 + $0x3a0] sm:$0xff]
    %v3170 = vld [vmem:[#allocation11 + $0x3a8] sm:$0xff]
    %v3171 = vld [vmem:[#allocation11 + $0x3b0] sm:$0xff]
    %v3172 = vld [vmem:[#allocation11 + $0x3b8] sm:$0xff]
    %v3173 = vld [vmem:[#allocation11 + $0x3c0] sm:$0xff]
    %v3174 = vld [vmem:[#allocation11 + $0x3c8] sm:$0xff]
    %v3175 = vld [vmem:[#allocation11 + $0x3d0] sm:$0xff]
    %v3176 = vld [vmem:[#allocation11 + $0x3d8] sm:$0xff]
    %v3177 = vld [vmem:[#allocation11 + $0x3e0] sm:$0xff]
    %v3178 = vld [vmem:[#allocation11 + $0x3e8] sm:$0xff]
    %v3179 = vld [vmem:[#allocation11 + $0x3f0] sm:$0xff]
    %v3180 = vld [vmem:[#allocation11 + $0x3f8] sm:$0xff]
    %v3181 = vld [vmem:[#allocation13] sm:$0x3]
    %v3183 = vlaneseq
    %v3184 = vshrl.u32 %v3183, 7
    %v3185 = vsub.s32 0, %v3184
    %v3186 = vrot.slane %v3181, %v3185
    %v3187 = vlaneseq
    %v3188 = vshrl.u32 %v3187, 7
    %v3189 = vsub.s32 1, %v3188
    %v3190 = vrot.slane %v3181, %v3189
    %3193 = vmatprep.subr.mxu0 %v3054
    %3194 = vmatpush1.msra.mxu0 %v3053
    %3195 = vmatprep.subr.mxu0 %v3056
    %3196 = vmatpush1.msra.mxu0 %v3055
    %3197 = vmatprep.subr.mxu0 %v3058
    %3198 = vmatpush1.msra.mxu0 %v3057
    %3199 = vmatprep.subr.mxu0 %v3060
    %3200 = vmatpush1.msra.mxu0 %v3059
    %3201 = vmatprep.subr.mxu0 %v3062
    %3202 = vmatpush1.msra.mxu0 %v3061
    %3203 = vmatprep.subr.mxu0 %v3064
    %3204 = vmatpush1.msra.mxu0 %v3063
    %3205 = vmatprep.subr.mxu0 %v3066
    %3206 = vmatpush1.msra.mxu0 %v3065
    %3207 = vmatprep.subr.mxu0 %v3068
    %3208 = vmatpush1.msra.mxu0 %v3067
    %3209 = vmatprep.subr.mxu0 %v3070
    %3210 = vmatpush1.msra.mxu0 %v3069
    %3211 = vmatprep.subr.mxu0 %v3072
    %3212 = vmatpush1.msra.mxu0 %v3071
    %3213 = vmatprep.subr.mxu0 %v3074
    %3214 = vmatpush1.msra.mxu0 %v3073
    %3215 = vmatprep.subr.mxu0 %v3076
    %3216 = vmatpush1.msra.mxu0 %v3075
    %3217 = vmatprep.subr.mxu0 %v3078
    %3218 = vmatpush1.msra.mxu0 %v3077
    %3219 = vmatprep.subr.mxu0 %v3080
    %3220 = vmatpush1.msra.mxu0 %v3079
    %3221 = vmatprep.subr.mxu0 %v3082
    %3222 = vmatpush1.msra.mxu0 %v3081
    %3223 = vmatprep.subr.mxu0 %v3084
    %3224 = vmatpush1.msra.mxu0 %v3083
    %3225 = vmatprep.subr.mxu0 %v3086
    %3226 = vmatpush1.msra.mxu0 %v3085
    %3227 = vmatprep.subr.mxu0 %v3088
    %3228 = vmatpush1.msra.mxu0 %v3087
    %3229 = vmatprep.subr.mxu0 %v3090
    %3230 = vmatpush1.msra.mxu0 %v3089
    %3231 = vmatprep.subr.mxu0 %v3092
    %3232 = vmatpush1.msra.mxu0 %v3091
    %3233 = vmatprep.subr.mxu0 %v3094
    %3234 = vmatpush1.msra.mxu0 %v3093
    %3235 = vmatprep.subr.mxu0 %v3096
    %3236 = vmatpush1.msra.mxu0 %v3095
    %3237 = vmatprep.subr.mxu0 %v3098
    %3238 = vmatpush1.msra.mxu0 %v3097
    %3239 = vmatprep.subr.mxu0 %v3100
    %3240 = vmatpush1.msra.mxu0 %v3099
    %3241 = vmatprep.subr.mxu0 %v3102
    %3242 = vmatpush1.msra.mxu0 %v3101
    %3243 = vmatprep.subr.mxu0 %v3104
    %3244 = vmatpush1.msra.mxu0 %v3103
    %3245 = vmatprep.subr.mxu0 %v3106
    %3246 = vmatpush1.msra.mxu0 %v3105
    %3247 = vmatprep.subr.mxu0 %v3108
    %3248 = vmatpush1.msra.mxu0 %v3107
    %3249 = vmatprep.subr.mxu0 %v3110
    %3250 = vmatpush1.msra.mxu0 %v3109
    %3251 = vmatprep.subr.mxu0 %v3112
    %3252 = vmatpush1.msra.mxu0 %v3111
    %3253 = vmatprep.subr.mxu0 %v3114
    %3254 = vmatpush1.msra.mxu0 %v3113
    %3255 = vmatprep.subr.mxu0 %v3116
    %3256 = vmatpush1.msra.mxu0 %v3115
    %3257 = vmatprep.mubr.f32.mxu0 %v2990
    %3258 = vmatmul.mubr.f32.gmra.mrb[0].mxu0 %v2989
    %v3259 = vpop.f32.mrb[0].mxu0
    %v3260 = vadd.f32 %v3186, %v3259
    %v3261 = vpop.f32.mrb[0].mxu0
    %v3262 = vadd.f32 %v3190, %v3261
    %3263 = vmatprep.mubr.f32.mxu0 %v2994
    %3264 = vmatmul.mubr.f32.gmra.mrb[0].mxu0 %v2993
    %v3265 = vpop.f32.mrb[0].mxu0
    %v3266 = vadd.f32 %v3186, %v3265
    %v3267 = vpop.f32.mrb[0].mxu0
    %v3268 = vadd.f32 %v3190, %v3267
    %3269 = vmatprep.mubr.f32.mxu0 %v2998
    %3270 = vmatmul.mubr.f32.gmra.mrb[0].mxu0 %v2997
    %v3271 = vpop.f32.mrb[0].mxu0
    %v3272 = vadd.f32 %v3186, %v3271
    %v3273 = vpop.f32.mrb[0].mxu0
    %v3274 = vadd.f32 %v3190, %v3273
    %3275 = vmatprep.mubr.f32.mxu0 %v3002
    %3276 = vmatmul.mubr.f32.gmra.mrb[0].mxu0 %v3001
    %v3277 = vpop.f32.mrb[0].mxu0
    %v3278 = vadd.f32 %v3186, %v3277
    %v3279 = vpop.f32.mrb[0].mxu0
    %v3280 = vadd.f32 %v3190, %v3279
    %3281 = vmatprep.mubr.f32.mxu0 %v3006
    %3282 = vmatmul.mubr.f32.gmra.mrb[0].mxu0 %v3005
    %v3283 = vpop.f32.mrb[0].mxu0
    %v3284 = vadd.f32 %v3186, %v3283
    %v3285 = vpop.f32.mrb[0].mxu0
    %v3286 = vadd.f32 %v3190, %v3285
    %3287 = vmatprep.mubr.f32.mxu0 %v3010
    %3288 = vmatmul.mubr.f32.gmra.mrb[0].mxu0 %v3009
    %v3289 = vpop.f32.mrb[0].mxu0
    %v3290 = vadd.f32 %v3186, %v3289
    %v3291 = vpop.f32.mrb[0].mxu0
    %v3292 = vadd.f32 %v3190, %v3291
    %3293 = vmatprep.mubr.f32.mxu0 %v3014
    %3294 = vmatmul.mubr.f32.gmra.mrb[0].mxu0 %v3013
    %v3295 = vpop.f32.mrb[0].mxu0
    %v3296 = vadd.f32 %v3186, %v3295
    %v3297 = vpop.f32.mrb[0].mxu0
    %v3298 = vadd.f32 %v3190, %v3297
    %3299 = vmatprep.mubr.f32.mxu0 %v3018
    %3300 = vmatmul.mubr.f32.gmra.mrb[0].mxu0 %v3017
    %v3301 = vpop.f32.mrb[0].mxu0
    %v3302 = vadd.f32 %v3186, %v3301
    %v3303 = vpop.f32.mrb[0].mxu0
    %v3304 = vadd.f32 %v3190, %v3303
    %3305 = vmatprep.mubr.f32.mxu0 %v3022
    %3306 = vmatmul.mubr.f32.gmra.mrb[0].mxu0 %v3021
    %v3307 = vpop.f32.mrb[0].mxu0
    %v3308 = vadd.f32 %v3186, %v3307
    %v3309 = vpop.f32.mrb[0].mxu0
    %v3310 = vadd.f32 %v3190, %v3309
    %3311 = vmatprep.mubr.f32.mxu0 %v3026
    %3312 = vmatmul.mubr.f32.gmra.mrb[0].mxu0 %v3025
    %v3313 = vpop.f32.mrb[0].mxu0
    %v3314 = vadd.f32 %v3186, %v3313
    %v3315 = vpop.f32.mrb[0].mxu0
    %v3316 = vadd.f32 %v3190, %v3315
    %3317 = vmatprep.mubr.f32.mxu0 %v3030
    %3318 = vmatmul.mubr.f32.gmra.mrb[0].mxu0 %v3029
    %v3319 = vpop.f32.mrb[0].mxu0
    %v3320 = vadd.f32 %v3186, %v3319
    %v3321 = vpop.f32.mrb[0].mxu0
    %v3322 = vadd.f32 %v3190, %v3321
    %3323 = vmatprep.mubr.f32.mxu0 %v3034
    %3324 = vmatmul.mubr.f32.gmra.mrb[0].mxu0 %v3033
    %v3325 = vpop.f32.mrb[0].mxu0
    %v3326 = vadd.f32 %v3186, %v3325
    %v3327 = vpop.f32.mrb[0].mxu0
    %v3328 = vadd.f32 %v3190, %v3327
    %3329 = vmatprep.mubr.f32.mxu0 %v3038
    %3330 = vmatmul.mubr.f32.gmra.mrb[0].mxu0 %v3037
    %v3331 = vpop.f32.mrb[0].mxu0
    %v3332 = vadd.f32 %v3186, %v3331
    %v3333 = vpop.f32.mrb[0].mxu0
    %v3334 = vadd.f32 %v3190, %v3333
    %3335 = vmatprep.mubr.f32.mxu0 %v3042
    %3336 = vmatmul.mubr.f32.gmra.mrb[0].mxu0 %v3041
    %v3337 = vpop.f32.mrb[0].mxu0
    %v3338 = vadd.f32 %v3186, %v3337
    %v3339 = vpop.f32.mrb[0].mxu0
    %v3340 = vadd.f32 %v3190, %v3339
    %3341 = vmatprep.mubr.f32.mxu0 %v3046
    %3342 = vmatmul.mubr.f32.gmra.mrb[0].mxu0 %v3045
    %v3343 = vpop.f32.mrb[0].mxu0
    %v3344 = vadd.f32 %v3186, %v3343
    %v3345 = vpop.f32.mrb[0].mxu0
    %v3346 = vadd.f32 %v3190, %v3345
    %3347 = vmatprep.mubr.f32.mxu0 %v3050
    %3348 = vmatmul.mubr.f32.gmra.mrb[0].mxu0 %v3049
    %v3349 = vpop.f32.mrb[0].mxu0
    %v3350 = vadd.f32 %v3186, %v3349
    %v3351 = vpop.f32.mrb[0].mxu0
    %v3352 = vadd.f32 %v3190, %v3351
    %3353 = vdwg.mxu0
    %3354 = vmatprep.subr.mxu0 %v3118
    %3355 = vmatpush1.msra.mxu0 %v3117
    %3356 = vmatprep.subr.mxu0 %v3120
    %3357 = vmatpush1.msra.mxu0 %v3119
    %3358 = vmatprep.subr.mxu0 %v3122
    %3359 = vmatpush1.msra.mxu0 %v3121
    %3360 = vmatprep.subr.mxu0 %v3124
    %3361 = vmatpush1.msra.mxu0 %v3123
    %3362 = vmatprep.subr.mxu0 %v3126
    %3363 = vmatpush1.msra.mxu0 %v3125
    %3364 = vmatprep.subr.mxu0 %v3128
    %3365 = vmatpush1.msra.mxu0 %v3127
    %3366 = vmatprep.subr.mxu0 %v3130
    %3367 = vmatpush1.msra.mxu0 %v3129
    %3368 = vmatprep.subr.mxu0 %v3132
    %3369 = vmatpush1.msra.mxu0 %v3131
    %3370 = vmatprep.subr.mxu0 %v3134
    %3371 = vmatpush1.msra.mxu0 %v3133
    %3372 = vmatprep.subr.mxu0 %v3136
    %3373 = vmatpush1.msra.mxu0 %v3135
    %3374 = vmatprep.subr.mxu0 %v3138
    %3375 = vmatpush1.msra.mxu0 %v3137
    %3376 = vmatprep.subr.mxu0 %v3140
    %3377 = vmatpush1.msra.mxu0 %v3139
    %3378 = vmatprep.subr.mxu0 %v3142
    %3379 = vmatpush1.msra.mxu0 %v3141
    %3380 = vmatprep.subr.mxu0 %v3144
    %3381 = vmatpush1.msra.mxu0 %v3143
    %3382 = vmatprep.subr.mxu0 %v3146
    %3383 = vmatpush1.msra.mxu0 %v3145
    %3384 = vmatprep.subr.mxu0 %v3148
    %3385 = vmatpush1.msra.mxu0 %v3147
    %3386 = vmatprep.subr.mxu0 %v3150
    %3387 = vmatpush1.msra.mxu0 %v3149
    %3388 = vmatprep.subr.mxu0 %v3152
    %3389 = vmatpush1.msra.mxu0 %v3151
    %3390 = vmatprep.subr.mxu0 %v3154
    %3391 = vmatpush1.msra.mxu0 %v3153
    %3392 = vmatprep.subr.mxu0 %v3156
    %3393 = vmatpush1.msra.mxu0 %v3155
    %3394 = vmatprep.subr.mxu0 %v3158
    %3395 = vmatpush1.msra.mxu0 %v3157
    %3396 = vmatprep.subr.mxu0 %v3160
    %3397 = vmatpush1.msra.mxu0 %v3159
    %3398 = vmatprep.subr.mxu0 %v3162
    %3399 = vmatpush1.msra.mxu0 %v3161
    %3400 = vmatprep.subr.mxu0 %v3164
    %3401 = vmatpush1.msra.mxu0 %v3163
    %3402 = vmatprep.subr.mxu0 %v3166
    %3403 = vmatpush1.msra.mxu0 %v3165
    %3404 = vmatprep.subr.mxu0 %v3168
    %3405 = vmatpush1.msra.mxu0 %v3167
    %3406 = vmatprep.subr.mxu0 %v3170
    %3407 = vmatpush1.msra.mxu0 %v3169
    %3408 = vmatprep.subr.mxu0 %v3172
    %3409 = vmatpush1.msra.mxu0 %v3171
    %3410 = vmatprep.subr.mxu0 %v3174
    %3411 = vmatpush1.msra.mxu0 %v3173
    %3412 = vmatprep.subr.mxu0 %v3176
    %3413 = vmatpush1.msra.mxu0 %v3175
    %3414 = vmatprep.subr.mxu0 %v3178
    %3415 = vmatpush1.msra.mxu0 %v3177
    %3416 = vmatprep.subr.mxu0 %v3180
    %3417 = vmatpush1.msra.mxu0 %v3179
    %3418 = vmatprep.mubr.f32.mxu0 %v2992
    %3419 = vmatmul.mubr.f32.gmra.mrb[0].mxu0 %v2991
    %v3420 = vpop.f32.mrb[0].mxu0
    %v3421 = vadd.f32 %v3260, %v3420
    %v3422 = vpop.f32.mrb[0].mxu0
    %v3423 = vadd.f32 %v3262, %v3422
    %3424 = vmatprep.mubr.f32.mxu0 %v2996
    %3425 = vmatmul.mubr.f32.gmra.mrb[0].mxu0 %v2995
    %v3426 = vpop.f32.mrb[0].mxu0
    %v3427 = vadd.f32 %v3266, %v3426
    %v3428 = vpop.f32.mrb[0].mxu0
    %v3429 = vadd.f32 %v3268, %v3428
    %3430 = vmatprep.mubr.f32.mxu0 %v3000
    %3431 = vmatmul.mubr.f32.gmra.mrb[0].mxu0 %v2999
    %v3432 = vpop.f32.mrb[0].mxu0
    %v3433 = vadd.f32 %v3272, %v3432
    %v3434 = vpop.f32.mrb[0].mxu0
    %v3435 = vadd.f32 %v3274, %v3434
    %3436 = vmatprep.mubr.f32.mxu0 %v3004
    %3437 = vmatmul.mubr.f32.gmra.mrb[0].mxu0 %v3003
    %v3438 = vpop.f32.mrb[0].mxu0
    %v3439 = vadd.f32 %v3278, %v3438
    %v3440 = vpop.f32.mrb[0].mxu0
    %v3441 = vadd.f32 %v3280, %v3440
    %3442 = vmatprep.mubr.f32.mxu0 %v3008
    %3443 = vmatmul.mubr.f32.gmra.mrb[0].mxu0 %v3007
    %v3444 = vpop.f32.mrb[0].mxu0
    %v3445 = vadd.f32 %v3284, %v3444
    %v3446 = vpop.f32.mrb[0].mxu0
    %v3447 = vadd.f32 %v3286, %v3446
    %3448 = vmatprep.mubr.f32.mxu0 %v3012
    %3449 = vmatmul.mubr.f32.gmra.mrb[0].mxu0 %v3011
    %v3450 = vpop.f32.mrb[0].mxu0
    %v3451 = vadd.f32 %v3290, %v3450
    %v3452 = vpop.f32.mrb[0].mxu0
    %v3453 = vadd.f32 %v3292, %v3452
    %3454 = vmatprep.mubr.f32.mxu0 %v3016
    %3455 = vmatmul.mubr.f32.gmra.mrb[0].mxu0 %v3015
    %v3456 = vpop.f32.mrb[0].mxu0
    %v3457 = vadd.f32 %v3296, %v3456
    %v3458 = vpop.f32.mrb[0].mxu0
    %v3459 = vadd.f32 %v3298, %v3458
    %3460 = vmatprep.mubr.f32.mxu0 %v3020
    %3461 = vmatmul.mubr.f32.gmra.mrb[0].mxu0 %v3019
    %v3462 = vpop.f32.mrb[0].mxu0
    %v3463 = vadd.f32 %v3302, %v3462
    %v3464 = vpop.f32.mrb[0].mxu0
    %v3465 = vadd.f32 %v3304, %v3464
    %3466 = vmatprep.mubr.f32.mxu0 %v3024
    %3467 = vmatmul.mubr.f32.gmra.mrb[0].mxu0 %v3023
    %v3468 = vpop.f32.mrb[0].mxu0
    %v3469 = vadd.f32 %v3308, %v3468
    %v3470 = vpop.f32.mrb[0].mxu0
    %v3471 = vadd.f32 %v3310, %v3470
    %3472 = vmatprep.mubr.f32.mxu0 %v3028
    %3473 = vmatmul.mubr.f32.gmra.mrb[0].mxu0 %v3027
    %v3474 = vpop.f32.mrb[0].mxu0
    %v3475 = vadd.f32 %v3314, %v3474
    %v3476 = vpop.f32.mrb[0].mxu0
    %v3477 = vadd.f32 %v3316, %v3476
    %3478 = vmatprep.mubr.f32.mxu0 %v3032
    %3479 = vmatmul.mubr.f32.gmra.mrb[0].mxu0 %v3031
    %v3480 = vpop.f32.mrb[0].mxu0
    %v3481 = vadd.f32 %v3320, %v3480
    %v3482 = vpop.f32.mrb[0].mxu0
    %v3483 = vadd.f32 %v3322, %v3482
    %3484 = vmatprep.mubr.f32.mxu0 %v3036
    %3485 = vmatmul.mubr.f32.gmra.mrb[0].mxu0 %v3035
    %v3486 = vpop.f32.mrb[0].mxu0
    %v3487 = vadd.f32 %v3326, %v3486
    %v3488 = vpop.f32.mrb[0].mxu0
    %v3489 = vadd.f32 %v3328, %v3488
    %3490 = vmatprep.mubr.f32.mxu0 %v3040
    %3491 = vmatmul.mubr.f32.gmra.mrb[0].mxu0 %v3039
    %v3492 = vpop.f32.mrb[0].mxu0
    %v3493 = vadd.f32 %v3332, %v3492
    %v3494 = vpop.f32.mrb[0].mxu0
    %v3495 = vadd.f32 %v3334, %v3494
    %3496 = vmatprep.mubr.f32.mxu0 %v3044
    %3497 = vmatmul.mubr.f32.gmra.mrb[0].mxu0 %v3043
    %v3498 = vpop.f32.mrb[0].mxu0
    %v3499 = vadd.f32 %v3338, %v3498
    %v3500 = vpop.f32.mrb[0].mxu0
    %v3501 = vadd.f32 %v3340, %v3500
    %3502 = vmatprep.mubr.f32.mxu0 %v3048
    %3503 = vmatmul.mubr.f32.gmra.mrb[0].mxu0 %v3047
    %v3504 = vpop.f32.mrb[0].mxu0
    %v3505 = vadd.f32 %v3344, %v3504
    %v3506 = vpop.f32.mrb[0].mxu0
    %v3507 = vadd.f32 %v3346, %v3506
    %3508 = vmatprep.mubr.f32.mxu0 %v3052
    %3509 = vmatmul.mubr.f32.gmra.mrb[0].mxu0 %v3051
    %v3510 = vpop.f32.mrb[0].mxu0
    %v3511 = vadd.f32 %v3350, %v3510
    %v3512 = vpop.f32.mrb[0].mxu0
    %v3513 = vadd.f32 %v3352, %v3512
    %3514 = vdwg.mxu0
    %v3515 = vmax.f32 %v3421, 0.0
    %v3516 = vmax.f32 %v3423, 0.0
    %v3517 = vmax.f32 %v3427, 0.0
    %v3518 = vmax.f32 %v3429, 0.0
    %v3519 = vmax.f32 %v3433, 0.0
    %v3520 = vmax.f32 %v3435, 0.0
    %v3521 = vmax.f32 %v3439, 0.0
    %v3522 = vmax.f32 %v3441, 0.0
    %v3523 = vmax.f32 %v3445, 0.0
    %v3524 = vmax.f32 %v3447, 0.0
    %v3525 = vmax.f32 %v3451, 0.0
    %v3526 = vmax.f32 %v3453, 0.0
    %v3527 = vmax.f32 %v3457, 0.0
    %v3528 = vmax.f32 %v3459, 0.0
    %v3529 = vmax.f32 %v3463, 0.0
    %v3530 = vmax.f32 %v3465, 0.0
    %v3531 = vmax.f32 %v3469, 0.0
    %v3532 = vmax.f32 %v3471, 0.0
    %v3533 = vmax.f32 %v3475, 0.0
    %v3534 = vmax.f32 %v3477, 0.0
    %v3535 = vmax.f32 %v3481, 0.0
    %v3536 = vmax.f32 %v3483, 0.0
    %v3537 = vmax.f32 %v3487, 0.0
    %v3538 = vmax.f32 %v3489, 0.0
    %v3539 = vmax.f32 %v3493, 0.0
    %v3540 = vmax.f32 %v3495, 0.0
    %v3541 = vmax.f32 %v3499, 0.0
    %v3542 = vmax.f32 %v3501, 0.0
    %v3543 = vmax.f32 %v3505, 0.0
    %v3544 = vmax.f32 %v3507, 0.0
    %v3545 = vmax.f32 %v3511, 0.0
    %v3546 = vmax.f32 %v3513, 0.0
    %v3547 = vld [vmem:[#allocation14] sm:$0xff]
    %v3548 = vld [vmem:[#allocation14 + $0x8] sm:$0xff]
    %v3549 = vld [vmem:[#allocation14 + $0x10] sm:$0xff]
    %v3550 = vld [vmem:[#allocation14 + $0x18] sm:$0xff]
    %v3551 = vld [vmem:[#allocation14 + $0x20] sm:$0xff]
    %v3552 = vld [vmem:[#allocation14 + $0x28] sm:$0xff]
    %v3553 = vld [vmem:[#allocation14 + $0x30] sm:$0xff]
    %v3554 = vld [vmem:[#allocation14 + $0x38] sm:$0xff]
    %v3555 = vld [vmem:[#allocation14 + $0x40] sm:$0xff]
    %v3556 = vld [vmem:[#allocation14 + $0x48] sm:$0xff]
    %v3557 = vld [vmem:[#allocation14 + $0x50] sm:$0xff]
    %v3558 = vld [vmem:[#allocation14 + $0x58] sm:$0xff]
    %v3559 = vld [vmem:[#allocation14 + $0x60] sm:$0xff]
    %v3560 = vld [vmem:[#allocation14 + $0x68] sm:$0xff]
    %v3561 = vld [vmem:[#allocation14 + $0x70] sm:$0xff]
    %v3562 = vld [vmem:[#allocation14 + $0x78] sm:$0xff]
    %v3563 = vld [vmem:[#allocation14 + $0x80] sm:$0xff]
    %v3564 = vld [vmem:[#allocation14 + $0x88] sm:$0xff]
    %v3565 = vld [vmem:[#allocation14 + $0x90] sm:$0xff]
    %v3566 = vld [vmem:[#allocation14 + $0x98] sm:$0xff]
    %v3567 = vld [vmem:[#allocation14 + $0xa0] sm:$0xff]
    %v3568 = vld [vmem:[#allocation14 + $0xa8] sm:$0xff]
    %v3569 = vld [vmem:[#allocation14 + $0xb0] sm:$0xff]
    %v3570 = vld [vmem:[#allocation14 + $0xb8] sm:$0xff]
    %v3571 = vld [vmem:[#allocation14 + $0xc0] sm:$0xff]
    %v3572 = vld [vmem:[#allocation14 + $0xc8] sm:$0xff]
    %v3573 = vld [vmem:[#allocation14 + $0xd0] sm:$0xff]
    %v3574 = vld [vmem:[#allocation14 + $0xd8] sm:$0xff]
    %v3575 = vld [vmem:[#allocation14 + $0xe0] sm:$0xff]
    %v3576 = vld [vmem:[#allocation14 + $0xe8] sm:$0xff]
    %v3577 = vld [vmem:[#allocation14 + $0xf0] sm:$0xff]
    %v3578 = vld [vmem:[#allocation14 + $0xf8] sm:$0xff]
    %v3579 = vld [vmem:[#allocation16] sm:$0x1]
    %v3581 = vlaneseq
    %v3582 = vshrl.u32 %v3581, 7
    %v3583 = vsub.s32 0, %v3582
    %v3584 = vrot.slane %v3579, %v3583
    %3586 = vmatprep.subr.mxu0 0.0
    %3587 = vmatpush1.msra.mxu0 %v3547
    %3588 = vmatprep.subr.mxu0 0.0
    %3589 = vmatpush1.msra.mxu0 %v3548
    %3590 = vmatprep.subr.mxu0 0.0
    %3591 = vmatpush1.msra.mxu0 %v3549
    %3592 = vmatprep.subr.mxu0 0.0
    %3593 = vmatpush1.msra.mxu0 %v3550
    %3594 = vmatprep.subr.mxu0 0.0
    %3595 = vmatpush1.msra.mxu0 %v3551
    %3596 = vmatprep.subr.mxu0 0.0
    %3597 = vmatpush1.msra.mxu0 %v3552
    %3598 = vmatprep.subr.mxu0 0.0
    %3599 = vmatpush1.msra.mxu0 %v3553
    %3600 = vmatprep.subr.mxu0 0.0
    %3601 = vmatpush1.msra.mxu0 %v3554
    %3602 = vmatprep.subr.mxu0 0.0
    %3603 = vmatpush1.msra.mxu0 %v3555
    %3604 = vmatprep.subr.mxu0 0.0
    %3605 = vmatpush1.msra.mxu0 %v3556
    %3606 = vmatprep.subr.mxu0 0.0
    %3607 = vmatpush1.msra.mxu0 %v3557
    %3608 = vmatprep.subr.mxu0 0.0
    %3609 = vmatpush1.msra.mxu0 %v3558
    %3610 = vmatprep.subr.mxu0 0.0
    %3611 = vmatpush1.msra.mxu0 %v3559
    %3612 = vmatprep.subr.mxu0 0.0
    %3613 = vmatpush1.msra.mxu0 %v3560
    %3614 = vmatprep.subr.mxu0 0.0
    %3615 = vmatpush1.msra.mxu0 %v3561
    %3616 = vmatprep.subr.mxu0 0.0
    %3617 = vmatpush1.msra.mxu0 %v3562
    %3618 = vmatprep.subr.mxu0 0.0
    %3619 = vmatpush1.msra.mxu0 %v3563
    %3620 = vmatprep.subr.mxu0 0.0
    %3621 = vmatpush1.msra.mxu0 %v3564
    %3622 = vmatprep.subr.mxu0 0.0
    %3623 = vmatpush1.msra.mxu0 %v3565
    %3624 = vmatprep.subr.mxu0 0.0
    %3625 = vmatpush1.msra.mxu0 %v3566
    %3626 = vmatprep.subr.mxu0 0.0
    %3627 = vmatpush1.msra.mxu0 %v3567
    %3628 = vmatprep.subr.mxu0 0.0
    %3629 = vmatpush1.msra.mxu0 %v3568
    %3630 = vmatprep.subr.mxu0 0.0
    %3631 = vmatpush1.msra.mxu0 %v3569
    %3632 = vmatprep.subr.mxu0 0.0
    %3633 = vmatpush1.msra.mxu0 %v3570
    %3634 = vmatprep.subr.mxu0 0.0
    %3635 = vmatpush1.msra.mxu0 %v3571
    %3636 = vmatprep.subr.mxu0 0.0
    %3637 = vmatpush1.msra.mxu0 %v3572
    %3638 = vmatprep.subr.mxu0 0.0
    %3639 = vmatpush1.msra.mxu0 %v3573
    %3640 = vmatprep.subr.mxu0 0.0
    %3641 = vmatpush1.msra.mxu0 %v3574
    %3642 = vmatprep.subr.mxu0 0.0
    %3643 = vmatpush1.msra.mxu0 %v3575
    %3644 = vmatprep.subr.mxu0 0.0
    %3645 = vmatpush1.msra.mxu0 %v3576
    %3646 = vmatprep.subr.mxu0 0.0
    %3647 = vmatpush1.msra.mxu0 %v3577
    %3648 = vmatprep.subr.mxu0 0.0
    %3649 = vmatpush1.msra.mxu0 %v3578
    %3650 = vmatprep.mubr.f32.mxu0 %v3516
    %3651 = vmatmul.mubr.f32.gmra.mrb[0].mxu0 %v3515
    %v3652 = vpop.f32.mrb[0].mxu0
    %v3653 = vadd.f32 %v3584, %v3652
    %v3654 = vpop.f32.mrb[0].mxu0
    %3655 = vmatprep.mubr.f32.mxu0 %v3518
    %3656 = vmatmul.mubr.f32.gmra.mrb[0].mxu0 %v3517
    %v3657 = vpop.f32.mrb[0].mxu0
    %v3658 = vadd.f32 %v3584, %v3657
    %v3659 = vpop.f32.mrb[0].mxu0
    %3660 = vmatprep.mubr.f32.mxu0 %v3520
    %3661 = vmatmul.mubr.f32.gmra.mrb[0].mxu0 %v3519
    %v3662 = vpop.f32.mrb[0].mxu0
    %v3663 = vadd.f32 %v3584, %v3662
    %v3664 = vpop.f32.mrb[0].mxu0
    %3665 = vmatprep.mubr.f32.mxu0 %v3522
    %3666 = vmatmul.mubr.f32.gmra.mrb[0].mxu0 %v3521
    %v3667 = vpop.f32.mrb[0].mxu0
    %v3668 = vadd.f32 %v3584, %v3667
    %v3669 = vpop.f32.mrb[0].mxu0
    %3670 = vmatprep.mubr.f32.mxu0 %v3524
    %3671 = vmatmul.mubr.f32.gmra.mrb[0].mxu0 %v3523
    %v3672 = vpop.f32.mrb[0].mxu0
    %v3673 = vadd.f32 %v3584, %v3672
    %v3674 = vpop.f32.mrb[0].mxu0
    %3675 = vmatprep.mubr.f32.mxu0 %v3526
    %3676 = vmatmul.mubr.f32.gmra.mrb[0].mxu0 %v3525
    %v3677 = vpop.f32.mrb[0].mxu0
    %v3678 = vadd.f32 %v3584, %v3677
    %v3679 = vpop.f32.mrb[0].mxu0
    %3680 = vmatprep.mubr.f32.mxu0 %v3528
    %3681 = vmatmul.mubr.f32.gmra.mrb[0].mxu0 %v3527
    %v3682 = vpop.f32.mrb[0].mxu0
    %v3683 = vadd.f32 %v3584, %v3682
    %v3684 = vpop.f32.mrb[0].mxu0
    %3685 = vmatprep.mubr.f32.mxu0 %v3530
    %3686 = vmatmul.mubr.f32.gmra.mrb[0].mxu0 %v3529
    %v3687 = vpop.f32.mrb[0].mxu0
    %v3688 = vadd.f32 %v3584, %v3687
    %v3689 = vpop.f32.mrb[0].mxu0
    %3690 = vmatprep.mubr.f32.mxu0 %v3532
    %3691 = vmatmul.mubr.f32.gmra.mrb[0].mxu0 %v3531
    %v3692 = vpop.f32.mrb[0].mxu0
    %v3693 = vadd.f32 %v3584, %v3692
    %v3694 = vpop.f32.mrb[0].mxu0
    %3695 = vmatprep.mubr.f32.mxu0 %v3534
    %3696 = vmatmul.mubr.f32.gmra.mrb[0].mxu0 %v3533
    %v3697 = vpop.f32.mrb[0].mxu0
    %v3698 = vadd.f32 %v3584, %v3697
    %v3699 = vpop.f32.mrb[0].mxu0
    %3700 = vmatprep.mubr.f32.mxu0 %v3536
    %3701 = vmatmul.mubr.f32.gmra.mrb[0].mxu0 %v3535
    %v3702 = vpop.f32.mrb[0].mxu0
    %v3703 = vadd.f32 %v3584, %v3702
    %v3704 = vpop.f32.mrb[0].mxu0
    %3705 = vmatprep.mubr.f32.mxu0 %v3538
    %3706 = vmatmul.mubr.f32.gmra.mrb[0].mxu0 %v3537
    %v3707 = vpop.f32.mrb[0].mxu0
    %v3708 = vadd.f32 %v3584, %v3707
    %v3709 = vpop.f32.mrb[0].mxu0
    %3710 = vmatprep.mubr.f32.mxu0 %v3540
    %3711 = vmatmul.mubr.f32.gmra.mrb[0].mxu0 %v3539
    %v3712 = vpop.f32.mrb[0].mxu0
    %v3713 = vadd.f32 %v3584, %v3712
    %v3714 = vpop.f32.mrb[0].mxu0
    %3715 = vmatprep.mubr.f32.mxu0 %v3542
    %3716 = vmatmul.mubr.f32.gmra.mrb[0].mxu0 %v3541
    %v3717 = vpop.f32.mrb[0].mxu0
    %v3718 = vadd.f32 %v3584, %v3717
    %v3719 = vpop.f32.mrb[0].mxu0
    %3720 = vmatprep.mubr.f32.mxu0 %v3544
    %3721 = vmatmul.mubr.f32.gmra.mrb[0].mxu0 %v3543
    %v3722 = vpop.f32.mrb[0].mxu0
    %v3723 = vadd.f32 %v3584, %v3722
    %v3724 = vpop.f32.mrb[0].mxu0
    %3725 = vmatprep.mubr.f32.mxu0 %v3546
    %3726 = vmatmul.mubr.f32.gmra.mrb[0].mxu0 %v3545
    %v3727 = vpop.f32.mrb[0].mxu0
    %v3728 = vadd.f32 %v3584, %v3727
    %v3729 = vpop.f32.mrb[0].mxu0
    %3730 = vdwg.mxu0
    %v3731 = vmax.f32 %v3653, 0.0
    %v3732 = vmax.f32 %v3658, 0.0
    %v3733 = vmax.f32 %v3663, 0.0
    %v3734 = vmax.f32 %v3668, 0.0
    %v3735 = vmax.f32 %v3673, 0.0
    %v3736 = vmax.f32 %v3678, 0.0
    %v3737 = vmax.f32 %v3683, 0.0
    %v3738 = vmax.f32 %v3688, 0.0
    %v3739 = vmax.f32 %v3693, 0.0
    %v3740 = vmax.f32 %v3698, 0.0
    %v3741 = vmax.f32 %v3703, 0.0
    %v3742 = vmax.f32 %v3708, 0.0
    %v3743 = vmax.f32 %v3713, 0.0
    %v3744 = vmax.f32 %v3718, 0.0
    %v3745 = vmax.f32 %v3723, 0.0
    %v3746 = vmax.f32 %v3728, 0.0
    %v3747 = vld [vmem:[#allocation17] sm:$0xff]
    %v3748 = vld [vmem:[#allocation17 + $0x8] sm:$0xff]
    %v3749 = vld [vmem:[#allocation17 + $0x10] sm:$0xff]
    %v3750 = vld [vmem:[#allocation17 + $0x18] sm:$0xff]
    %v3751 = vld [vmem:[#allocation17 + $0x20] sm:$0xff]
    %v3752 = vld [vmem:[#allocation17 + $0x28] sm:$0xff]
    %v3753 = vld [vmem:[#allocation17 + $0x30] sm:$0xff]
    %v3754 = vld [vmem:[#allocation17 + $0x38] sm:$0xff]
    %v3755 = vld [vmem:[#allocation17 + $0x40] sm:$0xff]
    %v3756 = vld [vmem:[#allocation17 + $0x48] sm:$0xff]
    %v3757 = vld [vmem:[#allocation17 + $0x50] sm:$0xff]
    %v3758 = vld [vmem:[#allocation17 + $0x58] sm:$0xff]
    %v3759 = vld [vmem:[#allocation17 + $0x60] sm:$0xff]
    %v3760 = vld [vmem:[#allocation17 + $0x68] sm:$0xff]
    %v3761 = vld [vmem:[#allocation17 + $0x70] sm:$0xff]
    %v3762 = vld [vmem:[#allocation17 + $0x78] sm:$0xff]
    %v3763 = vld [vmem:[#allocation19] sm:$0x1]
    %v3765 = vlaneseq
    %v3766 = vshrl.u32 %v3765, 7
    %v3767 = vsub.s32 0, %v3766
    %v3768 = vrot.slane %v3763, %v3767
    %3770 = vmatprep.subr.mxu0 0.0
    %3771 = vmatpush1.msra.mxu0 %v3747
    %3772 = vmatprep.subr.mxu0 0.0
    %3773 = vmatpush1.msra.mxu0 %v3748
    %3774 = vmatprep.subr.mxu0 0.0
    %3775 = vmatpush1.msra.mxu0 %v3749
    %3776 = vmatprep.subr.mxu0 0.0
    %3777 = vmatpush1.msra.mxu0 %v3750
    %3778 = vmatprep.subr.mxu0 0.0
    %3779 = vmatpush1.msra.mxu0 %v3751
    %3780 = vmatprep.subr.mxu0 0.0
    %3781 = vmatpush1.msra.mxu0 %v3752
    %3782 = vmatprep.subr.mxu0 0.0
    %3783 = vmatpush1.msra.mxu0 %v3753
    %3784 = vmatprep.subr.mxu0 0.0
    %3785 = vmatpush1.msra.mxu0 %v3754
    %3786 = vmatprep.subr.mxu0 0.0
    %3787 = vmatpush1.msra.mxu0 %v3755
    %3788 = vmatprep.subr.mxu0 0.0
    %3789 = vmatpush1.msra.mxu0 %v3756
    %3790 = vmatprep.subr.mxu0 0.0
    %3791 = vmatpush1.msra.mxu0 %v3757
    %3792 = vmatprep.subr.mxu0 0.0
    %3793 = vmatpush1.msra.mxu0 %v3758
    %3794 = vmatprep.subr.mxu0 0.0
    %3795 = vmatpush1.msra.mxu0 %v3759
    %3796 = vmatprep.subr.mxu0 0.0
    %3797 = vmatpush1.msra.mxu0 %v3760
    %3798 = vmatprep.subr.mxu0 0.0
    %3799 = vmatpush1.msra.mxu0 %v3761
    %3800 = vmatprep.subr.mxu0 0.0
    %3801 = vmatpush1.msra.mxu0 %v3762
    %3802 = vmatprep.subr.mxu0 0.0
    %3803 = vmatpush1.msra.mxu0 0.0
    %3804 = vmatprep.subr.mxu0 0.0
    %3805 = vmatpush1.msra.mxu0 0.0
    %3806 = vmatprep.subr.mxu0 0.0
    %3807 = vmatpush1.msra.mxu0 0.0
    %3808 = vmatprep.subr.mxu0 0.0
    %3809 = vmatpush1.msra.mxu0 0.0
    %3810 = vmatprep.subr.mxu0 0.0
    %3811 = vmatpush1.msra.mxu0 0.0
    %3812 = vmatprep.subr.mxu0 0.0
    %3813 = vmatpush1.msra.mxu0 0.0
    %3814 = vmatprep.subr.mxu0 0.0
    %3815 = vmatpush1.msra.mxu0 0.0
    %3816 = vmatprep.subr.mxu0 0.0
    %3817 = vmatpush1.msra.mxu0 0.0
    %3818 = vmatprep.subr.mxu0 0.0
    %3819 = vmatpush1.msra.mxu0 0.0
    %3820 = vmatprep.subr.mxu0 0.0
    %3821 = vmatpush1.msra.mxu0 0.0
    %3822 = vmatprep.subr.mxu0 0.0
    %3823 = vmatpush1.msra.mxu0 0.0
    %3824 = vmatprep.subr.mxu0 0.0
    %3825 = vmatpush1.msra.mxu0 0.0
    %3826 = vmatprep.subr.mxu0 0.0
    %3827 = vmatpush1.msra.mxu0 0.0
    %3828 = vmatprep.subr.mxu0 0.0
    %3829 = vmatpush1.msra.mxu0 0.0
    %3830 = vmatprep.subr.mxu0 0.0
    %3831 = vmatpush1.msra.mxu0 0.0
    %3832 = vmatprep.subr.mxu0 0.0
    %3833 = vmatpush1.msra.mxu0 0.0
    %3834 = vmatprep.mubr.f32.mxu0 0.0
    %3835 = vmatmul.mubr.f32.gmra.mrb[0].mxu0 %v3731
    %v3836 = vpop.f32.mrb[0].mxu0
    %v3837 = vadd.f32 %v3768, %v3836
    %v3838 = vpop.f32.mrb[0].mxu0
    %3839 = vmatprep.mubr.f32.mxu0 0.0
    %3840 = vmatmul.mubr.f32.gmra.mrb[0].mxu0 %v3732
    %v3841 = vpop.f32.mrb[0].mxu0
    %v3842 = vadd.f32 %v3768, %v3841
    %v3843 = vpop.f32.mrb[0].mxu0
    %3844 = vmatprep.mubr.f32.mxu0 0.0
    %3845 = vmatmul.mubr.f32.gmra.mrb[0].mxu0 %v3733
    %v3846 = vpop.f32.mrb[0].mxu0
    %v3847 = vadd.f32 %v3768, %v3846
    %v3848 = vpop.f32.mrb[0].mxu0
    %3849 = vmatprep.mubr.f32.mxu0 0.0
    %3850 = vmatmul.mubr.f32.gmra.mrb[0].mxu0 %v3734
    %v3851 = vpop.f32.mrb[0].mxu0
    %v3852 = vadd.f32 %v3768, %v3851
    %v3853 = vpop.f32.mrb[0].mxu0
    %3854 = vmatprep.mubr.f32.mxu0 0.0
    %3855 = vmatmul.mubr.f32.gmra.mrb[0].mxu0 %v3735
    %v3856 = vpop.f32.mrb[0].mxu0
    %v3857 = vadd.f32 %v3768, %v3856
    %v3858 = vpop.f32.mrb[0].mxu0
    %3859 = vmatprep.mubr.f32.mxu0 0.0
    %3860 = vmatmul.mubr.f32.gmra.mrb[0].mxu0 %v3736
    %v3861 = vpop.f32.mrb[0].mxu0
    %v3862 = vadd.f32 %v3768, %v3861
    %v3863 = vpop.f32.mrb[0].mxu0
    %3864 = vmatprep.mubr.f32.mxu0 0.0
    %3865 = vmatmul.mubr.f32.gmra.mrb[0].mxu0 %v3737
    %v3866 = vpop.f32.mrb[0].mxu0
    %v3867 = vadd.f32 %v3768, %v3866
    %v3868 = vpop.f32.mrb[0].mxu0
    %3869 = vmatprep.mubr.f32.mxu0 0.0
    %3870 = vmatmul.mubr.f32.gmra.mrb[0].mxu0 %v3738
    %v3871 = vpop.f32.mrb[0].mxu0
    %v3872 = vadd.f32 %v3768, %v3871
    %v3873 = vpop.f32.mrb[0].mxu0
    %3874 = vmatprep.mubr.f32.mxu0 0.0
    %3875 = vmatmul.mubr.f32.gmra.mrb[0].mxu0 %v3739
    %v3876 = vpop.f32.mrb[0].mxu0
    %v3877 = vadd.f32 %v3768, %v3876
    %v3878 = vpop.f32.mrb[0].mxu0
    %3879 = vmatprep.mubr.f32.mxu0 0.0
    %3880 = vmatmul.mubr.f32.gmra.mrb[0].mxu0 %v3740
    %v3881 = vpop.f32.mrb[0].mxu0
    %v3882 = vadd.f32 %v3768, %v3881
    %v3883 = vpop.f32.mrb[0].mxu0
    %3884 = vmatprep.mubr.f32.mxu0 0.0
    %3885 = vmatmul.mubr.f32.gmra.mrb[0].mxu0 %v3741
    %v3886 = vpop.f32.mrb[0].mxu0
    %v3887 = vadd.f32 %v3768, %v3886
    %v3888 = vpop.f32.mrb[0].mxu0
    %3889 = vmatprep.mubr.f32.mxu0 0.0
    %3890 = vmatmul.mubr.f32.gmra.mrb[0].mxu0 %v3742
    %v3891 = vpop.f32.mrb[0].mxu0
    %v3892 = vadd.f32 %v3768, %v3891
    %v3893 = vpop.f32.mrb[0].mxu0
    %3894 = vmatprep.mubr.f32.mxu0 0.0
    %3895 = vmatmul.mubr.f32.gmra.mrb[0].mxu0 %v3743
    %v3896 = vpop.f32.mrb[0].mxu0
    %v3897 = vadd.f32 %v3768, %v3896
    %v3898 = vpop.f32.mrb[0].mxu0
    %3899 = vmatprep.mubr.f32.mxu0 0.0
    %3900 = vmatmul.mubr.f32.gmra.mrb[0].mxu0 %v3744
    %v3901 = vpop.f32.mrb[0].mxu0
    %v3902 = vadd.f32 %v3768, %v3901
    %v3903 = vpop.f32.mrb[0].mxu0
    %3904 = vmatprep.mubr.f32.mxu0 0.0
    %3905 = vmatmul.mubr.f32.gmra.mrb[0].mxu0 %v3745
    %v3906 = vpop.f32.mrb[0].mxu0
    %v3907 = vadd.f32 %v3768, %v3906
    %v3908 = vpop.f32.mrb[0].mxu0
    %3909 = vmatprep.mubr.f32.mxu0 0.0
    %3910 = vmatmul.mubr.f32.gmra.mrb[0].mxu0 %v3746
    %v3911 = vpop.f32.mrb[0].mxu0
    %v3912 = vadd.f32 %v3768, %v3911
    %v3913 = vpop.f32.mrb[0].mxu0
    %3914 = vdwg.mxu0
    %v3915 = vmax.f32 %v3837, 0.0
    %v3916 = vmax.f32 %v3842, 0.0
    %v3917 = vmax.f32 %v3847, 0.0
    %v3918 = vmax.f32 %v3852, 0.0
    %v3919 = vmax.f32 %v3857, 0.0
    %v3920 = vmax.f32 %v3862, 0.0
    %v3921 = vmax.f32 %v3867, 0.0
    %v3922 = vmax.f32 %v3872, 0.0
    %v3923 = vmax.f32 %v3877, 0.0
    %v3924 = vmax.f32 %v3882, 0.0
    %v3925 = vmax.f32 %v3887, 0.0
    %v3926 = vmax.f32 %v3892, 0.0
    %v3927 = vmax.f32 %v3897, 0.0
    %v3928 = vmax.f32 %v3902, 0.0
    %v3929 = vmax.f32 %v3907, 0.0
    %v3930 = vmax.f32 %v3912, 0.0
    %v3931 = vld [vmem:[#allocation20] sm:$0xff]
    %v3932 = vld [vmem:[#allocation20 + $0x8] sm:$0xff]
    %v3933 = vld [vmem:[#allocation20 + $0x10] sm:$0xff]
    %v3934 = vld [vmem:[#allocation20 + $0x18] sm:$0xff]
    %v3935 = vld [vmem:[#allocation20 + $0x20] sm:$0xff]
    %v3936 = vld [vmem:[#allocation20 + $0x28] sm:$0xff]
    %v3937 = vld [vmem:[#allocation20 + $0x30] sm:$0xff]
    %v3938 = vld [vmem:[#allocation20 + $0x38] sm:$0xff]
    %v3939 = vld [vmem:[#allocation20 + $0x40] sm:$0xff]
    %v3940 = vld [vmem:[#allocation20 + $0x48] sm:$0xff]
    %v3941 = vld [vmem:[#allocation20 + $0x50] sm:$0xff]
    %v3942 = vld [vmem:[#allocation20 + $0x58] sm:$0xff]
    %v3943 = vld [vmem:[#allocation20 + $0x60] sm:$0xff]
    %v3944 = vld [vmem:[#allocation20 + $0x68] sm:$0xff]
    %v3945 = vld [vmem:[#allocation20 + $0x70] sm:$0xff]
    %v3946 = vld [vmem:[#allocation20 + $0x78] sm:$0xff]
    %v3947 = vld [vmem:[#allocation22] sm:$0x1]
    %v3949 = vlaneseq
    %v3950 = vshrl.u32 %v3949, 7
    %v3951 = vsub.s32 0, %v3950
    %v3952 = vrot.slane %v3947, %v3951
    %3954 = vmatprep.subr.mxu0 0.0
    %3955 = vmatpush1.msra.mxu0 %v3931
    %3956 = vmatprep.subr.mxu0 0.0
    %3957 = vmatpush1.msra.mxu0 %v3932
    %3958 = vmatprep.subr.mxu0 0.0
    %3959 = vmatpush1.msra.mxu0 %v3933
    %3960 = vmatprep.subr.mxu0 0.0
    %3961 = vmatpush1.msra.mxu0 %v3934
    %3962 = vmatprep.subr.mxu0 0.0
    %3963 = vmatpush1.msra.mxu0 %v3935
    %3964 = vmatprep.subr.mxu0 0.0
    %3965 = vmatpush1.msra.mxu0 %v3936
    %3966 = vmatprep.subr.mxu0 0.0
    %3967 = vmatpush1.msra.mxu0 %v3937
    %3968 = vmatprep.subr.mxu0 0.0
    %3969 = vmatpush1.msra.mxu0 %v3938
    %3970 = vmatprep.subr.mxu0 0.0
    %3971 = vmatpush1.msra.mxu0 %v3939
    %3972 = vmatprep.subr.mxu0 0.0
    %3973 = vmatpush1.msra.mxu0 %v3940
    %3974 = vmatprep.subr.mxu0 0.0
    %3975 = vmatpush1.msra.mxu0 %v3941
    %3976 = vmatprep.subr.mxu0 0.0
    %3977 = vmatpush1.msra.mxu0 %v3942
    %3978 = vmatprep.subr.mxu0 0.0
    %3979 = vmatpush1.msra.mxu0 %v3943
    %3980 = vmatprep.subr.mxu0 0.0
    %3981 = vmatpush1.msra.mxu0 %v3944
    %3982 = vmatprep.subr.mxu0 0.0
    %3983 = vmatpush1.msra.mxu0 %v3945
    %3984 = vmatprep.subr.mxu0 0.0
    %3985 = vmatpush1.msra.mxu0 %v3946
    %3986 = vmatprep.subr.mxu0 0.0
    %3987 = vmatpush1.msra.mxu0 0.0
    %3988 = vmatprep.subr.mxu0 0.0
    %3989 = vmatpush1.msra.mxu0 0.0
    %3990 = vmatprep.subr.mxu0 0.0
    %3991 = vmatpush1.msra.mxu0 0.0
    %3992 = vmatprep.subr.mxu0 0.0
    %3993 = vmatpush1.msra.mxu0 0.0
    %3994 = vmatprep.subr.mxu0 0.0
    %3995 = vmatpush1.msra.mxu0 0.0
    %3996 = vmatprep.subr.mxu0 0.0
    %3997 = vmatpush1.msra.mxu0 0.0
    %3998 = vmatprep.subr.mxu0 0.0
    %3999 = vmatpush1.msra.mxu0 0.0
    %4000 = vmatprep.subr.mxu0 0.0
    %4001 = vmatpush1.msra.mxu0 0.0
    %4002 = vmatprep.subr.mxu0 0.0
    %4003 = vmatpush1.msra.mxu0 0.0
    %4004 = vmatprep.subr.mxu0 0.0
    %4005 = vmatpush1.msra.mxu0 0.0
    %4006 = vmatprep.subr.mxu0 0.0
    %4007 = vmatpush1.msra.mxu0 0.0
    %4008 = vmatprep.subr.mxu0 0.0
    %4009 = vmatpush1.msra.mxu0 0.0
    %4010 = vmatprep.subr.mxu0 0.0
    %4011 = vmatpush1.msra.mxu0 0.0
    %4012 = vmatprep.subr.mxu0 0.0
    %4013 = vmatpush1.msra.mxu0 0.0
    %4014 = vmatprep.subr.mxu0 0.0
    %4015 = vmatpush1.msra.mxu0 0.0
    %4016 = vmatprep.subr.mxu0 0.0
    %4017 = vmatpush1.msra.mxu0 0.0
    %4018 = vmatprep.mubr.f32.mxu0 0.0
    %4019 = vmatmul.mubr.f32.gmra.mrb[0].mxu0 %v3915
    %v4020 = vpop.f32.mrb[0].mxu0
    %v4021 = vadd.f32 %v3952, %v4020
    %v4022 = vpop.f32.mrb[0].mxu0
    %4023 = vmatprep.mubr.f32.mxu0 0.0
    %4024 = vmatmul.mubr.f32.gmra.mrb[0].mxu0 %v3916
    %v4025 = vpop.f32.mrb[0].mxu0
    %v4026 = vadd.f32 %v3952, %v4025
    %v4027 = vpop.f32.mrb[0].mxu0
    %4028 = vmatprep.mubr.f32.mxu0 0.0
    %4029 = vmatmul.mubr.f32.gmra.mrb[0].mxu0 %v3917
    %v4030 = vpop.f32.mrb[0].mxu0
    %v4031 = vadd.f32 %v3952, %v4030
    %v4032 = vpop.f32.mrb[0].mxu0
    %4033 = vmatprep.mubr.f32.mxu0 0.0
    %4034 = vmatmul.mubr.f32.gmra.mrb[0].mxu0 %v3918
    %v4035 = vpop.f32.mrb[0].mxu0
    %v4036 = vadd.f32 %v3952, %v4035
    %v4037 = vpop.f32.mrb[0].mxu0
    %4038 = vmatprep.mubr.f32.mxu0 0.0
    %4039 = vmatmul.mubr.f32.gmra.mrb[0].mxu0 %v3919
    %v4040 = vpop.f32.mrb[0].mxu0
    %v4041 = vadd.f32 %v3952, %v4040
    %v4042 = vpop.f32.mrb[0].mxu0
    %4043 = vmatprep.mubr.f32.mxu0 0.0
    %4044 = vmatmul.mubr.f32.gmra.mrb[0].mxu0 %v3920
    %v4045 = vpop.f32.mrb[0].mxu0
    %v4046 = vadd.f32 %v3952, %v4045
    %v4047 = vpop.f32.mrb[0].mxu0
    %4048 = vmatprep.mubr.f32.mxu0 0.0
    %4049 = vmatmul.mubr.f32.gmra.mrb[0].mxu0 %v3921
    %v4050 = vpop.f32.mrb[0].mxu0
    %v4051 = vadd.f32 %v3952, %v4050
    %v4052 = vpop.f32.mrb[0].mxu0
    %4053 = vmatprep.mubr.f32.mxu0 0.0
    %4054 = vmatmul.mubr.f32.gmra.mrb[0].mxu0 %v3922
    %v4055 = vpop.f32.mrb[0].mxu0
    %v4056 = vadd.f32 %v3952, %v4055
    %v4057 = vpop.f32.mrb[0].mxu0
    %4058 = vmatprep.mubr.f32.mxu0 0.0
    %4059 = vmatmul.mubr.f32.gmra.mrb[0].mxu0 %v3923
    %v4060 = vpop.f32.mrb[0].mxu0
    %v4061 = vadd.f32 %v3952, %v4060
    %v4062 = vpop.f32.mrb[0].mxu0
    %4063 = vmatprep.mubr.f32.mxu0 0.0
    %4064 = vmatmul.mubr.f32.gmra.mrb[0].mxu0 %v3924
    %v4065 = vpop.f32.mrb[0].mxu0
    %v4066 = vadd.f32 %v3952, %v4065
    %v4067 = vpop.f32.mrb[0].mxu0
    %4068 = vmatprep.mubr.f32.mxu0 0.0
    %4069 = vmatmul.mubr.f32.gmra.mrb[0].mxu0 %v3925
    %v4070 = vpop.f32.mrb[0].mxu0
    %v4071 = vadd.f32 %v3952, %v4070
    %v4072 = vpop.f32.mrb[0].mxu0
    %4073 = vmatprep.mubr.f32.mxu0 0.0
    %4074 = vmatmul.mubr.f32.gmra.mrb[0].mxu0 %v3926
    %v4075 = vpop.f32.mrb[0].mxu0
    %v4076 = vadd.f32 %v3952, %v4075
    %v4077 = vpop.f32.mrb[0].mxu0
    %4078 = vmatprep.mubr.f32.mxu0 0.0
    %4079 = vmatmul.mubr.f32.gmra.mrb[0].mxu0 %v3927
    %v4080 = vpop.f32.mrb[0].mxu0
    %v4081 = vadd.f32 %v3952, %v4080
    %v4082 = vpop.f32.mrb[0].mxu0
    %4083 = vmatprep.mubr.f32.mxu0 0.0
    %4084 = vmatmul.mubr.f32.gmra.mrb[0].mxu0 %v3928
    %v4085 = vpop.f32.mrb[0].mxu0
    %v4086 = vadd.f32 %v3952, %v4085
    %v4087 = vpop.f32.mrb[0].mxu0
    %4088 = vmatprep.mubr.f32.mxu0 0.0
    %4089 = vmatmul.mubr.f32.gmra.mrb[0].mxu0 %v3929
    %v4090 = vpop.f32.mrb[0].mxu0
    %v4091 = vadd.f32 %v3952, %v4090
    %v4092 = vpop.f32.mrb[0].mxu0
    %4093 = vmatprep.mubr.f32.mxu0 0.0
    %4094 = vmatmul.mubr.f32.gmra.mrb[0].mxu0 %v3930
    %v4095 = vpop.f32.mrb[0].mxu0
    %v4096 = vadd.f32 %v3952, %v4095
    %v4097 = vpop.f32.mrb[0].mxu0
    %4098 = vdwg.mxu0
    %4099 = vxpose.xlu0.b32.start [1/16] %v4021, 128
    %4100 = vxpose.xlu0.b32.cont [2/16] %v4026, 128
    %4101 = vxpose.xlu0.b32.cont [3/16] %v4031, 128
    %4102 = vxpose.xlu0.b32.cont [4/16] %v4036, 128
    %4103 = vxpose.xlu0.b32.cont [5/16] %v4041, 128
    %4104 = vxpose.xlu0.b32.cont [6/16] %v4046, 128
    %4105 = vxpose.xlu0.b32.cont [7/16] %v4051, 128
    %4106 = vxpose.xlu0.b32.cont [8/16] %v4056, 128
    %4107 = vxpose.xlu0.b32.cont [9/16] %v4061, 128
    %4108 = vxpose.xlu0.b32.cont [10/16] %v4066, 128
    %4109 = vxpose.xlu0.b32.cont [11/16] %v4071, 128
    %4110 = vxpose.xlu0.b32.cont [12/16] %v4076, 128
    %4111 = vxpose.xlu0.b32.cont [13/16] %v4081, 128
    %4112 = vxpose.xlu0.b32.cont [14/16] %v4086, 128
    %4113 = vxpose.xlu0.b32.cont [15/16] %v4091, 128
    %4114 = vxpose.xlu0.b32.end [16/16] %v4096, 128
    %v4115 = vpop.trf.xlu0
    %v4116 = vpop.trf.xlu0
    %v4117 = vpop.trf.xlu0
    %v4118 = vpop.trf.xlu0
    %v4119 = vpop.trf.xlu0
    %v4120 = vpop.trf.xlu0
    %v4121 = vpop.trf.xlu0
    %v4122 = vpop.trf.xlu0
    %v4123 = vpop.trf.xlu0
    %v4124 = vpop.trf.xlu0
    %v4125 = vpop.trf.xlu0
    %v4126 = vpop.trf.xlu0
    %v4127 = vpop.trf.xlu0
    %v4128 = vpop.trf.xlu0
    %v4129 = vpop.trf.xlu0
    %v4130 = vpop.trf.xlu0
    %4131 = vst [vmem:[#allocation23] sm:$0x1] %v4115
    // Predicated region
    $region106: #{tpu_custom_call.1} parent=1 // pred_check
      _
    $region107: #{tpu_custom_call.1} parent=1 // pred_check_branch
      %4133 = sbr.rel (0) target = $region109
    $region108: #{tpu_custom_call.1} parent=1 // pred_region
      %s4135 = ssub.s32 16, 16
      %4136 = vsyncadd [#allocation4], %s4135
      %s4138 = sshll.u32 [#allocation23], 4
      %s4139 = int_to_ptr.vmem [resolvable:$true] %s4138
      %4141 = dma.vmem_to_hbm [thread:$0]  %s4139, 16, %s13, [#allocation4]
    $region109: #{tpu_custom_call.1} parent=1 // pred_fallthru
      _
    // Predicated region
    $region110: #{tpu_custom_call.1} parent=1 // pred_check
      _
    $region111: #{tpu_custom_call.1} parent=1 // pred_check_branch
      %4143 = sbr.rel (0) target = $region113
    $region112: #{tpu_custom_call.1} parent=1 // pred_region
      %4144 = dma.done [#allocation4], 16
    $region113: #{tpu_custom_call.1} parent=1 // pred_fallthru
      _
    %4145 = vsyncpa [#allocation3], 1
    %4146 = vsyncpa [#allocation6], 1
    %4147 = vsyncpa [#allocation9], 1
    %4148 = vsyncpa [#allocation12], 1
    %4149 = vsyncpa [#allocation15], 1
    %4150 = vsyncpa [#allocation18], 1
    %4151 = vsyncpa [#allocation21], 1
    %4152 = vsyncpa [#allocation4], 1

</llo_original>
